<compile_context>
chip_gen: v5e
topology: v5e:2x2
jax: 0.10.0
libtpu: 0.0.40
codegen_flags: <defaults>
</compile_context>

<pallas_src>
import functools

import jax
import jax.numpy as jnp
import numpy as np
from jax.experimental import pallas as pl
from jax.experimental.pallas import tpu as pltpu

LANE = 128   # all channel / feature dims are padded to this lane width
SUB = 8      # f32 sublane tile


def _round_up(n, m):
    return ((n + m - 1) // m) * m


# ------------------------------ fused kernel --------------------------------

def _dqn_fused_kernel(*refs, batch, pad, off, head, l_slab, conv_ks, n_fc,
                      l_final):
    """Whole DQN forward in one kernel invocation.

    refs = [masks, x, (w_conv_i, b_conv_i)*n_conv, (w_fc_i, b_fc_i)*n_fc,
            out, slab_buf0, slab_buf1, flat_buf]

    Activations are channels-last.  Batch b's valid rows of a conv layer live
    at rows [head + b*l_slab + off, ... + L) of a
    (head + batch*l_slab + tail, 128) slab; every other row is zero and
    supplies the conv "same" padding, so each tap is one whole-slab matmul on a
    statically shifted slice of the slab.
    """
    n_conv = len(conv_ks)
    pos = 0
    masks_ref = refs[pos]; pos += 1
    x_ref = refs[pos]; pos += 1
    conv_refs = [(refs[pos + 2 * i], refs[pos + 2 * i + 1]) for i in range(n_conv)]
    pos += 2 * n_conv
    fc_refs = [(refs[pos + 2 * i], refs[pos + 2 * i + 1]) for i in range(n_fc)]
    pos += 2 * n_fc
    o_ref = refs[pos]; pos += 1
    bufs = [refs[pos], refs[pos + 1]]
    flat_ref = refs[pos + 2]

    lanes = x_ref.shape[1]
    core = batch * l_slab

    # Zero the scratch buffers once.  head/tail guard rows stay zero for every
    # layer; guard rows inside the core are kept zero by the per-layer mask.
    bufs[0][...] = jnp.zeros_like(bufs[0])
    bufs[1][...] = jnp.zeros_like(bufs[1])
    flat_ref[...] = jnp.zeros_like(flat_ref)

    # ---------------- conv stack: one whole-slab matmul per tap --------------
    src = x_ref
    for li, ksz in enumerate(conv_ks):
        w_ref, b_ref = conv_refs[li]
        bias = b_ref[...]                                    # (1, LANE)
        # Two independent accumulation chains (even / odd taps) so MXU
        # push/pop overlap on the v5e/v6e sequential result FIFO.
        acc0 = jnp.zeros((core, lanes), jnp.float32)
        acc1 = jnp.zeros((core, lanes), jnp.float32)
        for k in range(ksz):
            start = head - pad + k                           # >= 0 since head >= pad
            prod = jnp.dot(src[start:start + core, :], w_ref[k],
                           preferred_element_type=jnp.float32)
            if k % 2 == 0:
                acc0 = acc0 + prod
            else:
                acc1 = acc1 + prod
        res = jnp.maximum(acc0 + acc1 + bias, 0.0)           # bias + ReLU epilogue

        if li < n_conv - 1:
            # Dense, unmasked full-core store; the mask zeroes guard rows so
            # the next layer's "same" padding stays valid.
            dst = bufs[li % 2]
            dst[head:head + core, :] = res * masks_ref[li]
            src = dst
        else:
            # Last conv layer: scatter the valid rows straight into the
            # flattened fc1 activation (one 128-lane block per position).
            for b in range(batch):
                base = b * l_slab + off
                for l in range(l_final):
                    flat_ref[b:b + 1, l * lanes:(l + 1) * lanes] = (
                        res[base + l:base + l + 1, :])

    # ---------------- fully connected head, batched over B_pad rows ----------
    w1_ref, b1_ref = fc_refs[0]
    h = jnp.dot(flat_ref[...], w1_ref[...],
                preferred_element_type=jnp.float32) + b1_ref[...]
    h = jnp.maximum(h, 0.0)
    for i in range(1, n_fc):
        w_ref, b_ref = fc_refs[i]
        h = jnp.dot(h, w_ref[...], preferred_element_type=jnp.float32) + b_ref[...]
        if i < n_fc - 1:
            h = jnp.maximum(h, 0.0)
    o_ref[...] = h.astype(o_ref.dtype)                       # one dense store


# --------------------------- one-time weight packing -------------------------

def pack_params(params, padding, seq_len):
    """Re-layout all weights ONCE for the fused channels-last kernel."""
    conv_ks = tuple(int(w.shape[2]) for (w, _) in params["conv"])
    n_fc = len(params["fc"])
    output_dim = int(params["fc"][-1][0].shape[1])

    packed = []
    # Conv1d: torch (C_out, C_in, K) -> per-tap (K, C_pad, C_pad); bias (1, C_pad)
    for (w, b) in params["conv"]:
        c_out, c_in, _ = w.shape
        assert max(c_out, c_in) <= LANE, "TODO(synk): tile channel dims > 128"
        wk = jnp.transpose(w, (2, 1, 0))
        wk = jnp.pad(wk, ((0, 0), (0, LANE - c_in), (0, LANE - c_out)))
        packed += [wk, jnp.pad(b, (0, LANE - c_out)).reshape(1, LANE)]

    # final conv output length (stride 1, matches the torch formula)
    l_final = seq_len
    for ks in conv_ks:
        l_final = l_final - ks + 2 * padding + 1
    c_last = params["conv"][-1][0].shape[0]

    # fc1: torch NCL flatten (row c*L+l) -> flattened channels-last (row l*128+c)
    w1, b1 = params["fc"][0]
    h1 = w1.shape[1]
    h1p = _round_up(h1, LANE)
    w1k = jnp.transpose(w1.reshape(c_last, l_final, h1), (1, 0, 2))
    w1k = jnp.pad(w1k, ((0, 0), (0, LANE - c_last), (0, h1p - h1)))
    packed += [w1k.reshape(l_final * LANE, h1p),
               jnp.pad(b1, (0, h1p - h1)).reshape(1, h1p)]

    # fc2..fcN: pad K to previous layer's padded width, N to a multiple of 128
    prev_p = h1p
    for (w, b) in params["fc"][1:]:
        din, dout = w.shape
        doutp = _round_up(dout, LANE)
        packed += [jnp.pad(w, ((0, prev_p - din), (0, doutp - dout))),
                   jnp.pad(b, (0, doutp - dout)).reshape(1, doutp)]
        prev_p = doutp

    meta = (int(padding), conv_ks, int(n_fc), int(output_dim))
    return tuple(packed), meta


# ------------------------------ forward wrapper ------------------------------

def dqn_forward(x, packed, meta):
    """Fused Pallas forward; numerically equivalent to the PyTorch DQN.forward."""
    padding, conv_ks, n_fc, output_dim = meta
    batch, c_in, seq_len = x.shape
    n_conv = len(conv_ks)

    lengths = [seq_len]
    for ks in conv_ks:
        lengths.append(lengths[-1] - ks + 2 * padding + 1)
    l_final = lengths[-1]

    # per-batch slab: [off zeros | data | >=pad zeros], off/l_slab 8-aligned;
    # head/tail rows keep the whole-slab tap slices in bounds.
    off = _round_up(padding, SUB)
    l_slab = _round_up(off + max(lengths) + padding, SUB)
    head = _round_up(padding, SUB)
    tail = _round_up(max(max(conv_ks) - 1 - padding, 0), SUB)
    core = batch * l_slab
    b_pad = _round_up(batch, SUB)
    out_pad = _round_up(output_dim, LANE)

    # per-layer validity masks (compile-time constants under jit)
    n_masks = max(n_conv - 1, 1)
    masks_np = np.zeros((n_masks, core, LANE), np.float32)
    for li in range(n_conv - 1):
        for b in range(batch):
            lo = b * l_slab + off
            masks_np[li, lo:lo + lengths[li + 1], :] = 1.0
    masks = jnp.asarray(masks_np)

    # input: NCL -> channels-last (B, L, C), zero-pad into the slab layout
    x_nlc = jnp.transpose(x, (0, 2, 1))
    x_pad = jnp.pad(x_nlc, ((0, 0), (off, l_slab - off - seq_len),
                            (0, LANE - c_in)))
    x_flat = jnp.pad(x_pad.reshape(core, LANE), ((head, tail), (0, 0)))

    kernel = functools.partial(
        _dqn_fused_kernel, batch=batch, pad=padding, off=off, head=head,
        l_slab=l_slab, conv_ks=tuple(conv_ks), n_fc=n_fc, l_final=l_final)

    vmem = pl.BlockSpec(memory_space=pltpu.MemorySpace.VMEM)
    out = pl.pallas_call(
        kernel,
        out_shape=jax.ShapeDtypeStruct((b_pad, out_pad), jnp.float32),
        in_specs=[vmem] * (2 + len(packed)),
        out_specs=vmem,
        scratch_shapes=[
            pltpu.VMEM((head + core + tail, LANE), jnp.float32),
            pltpu.VMEM((head + core + tail, LANE), jnp.float32),
            pltpu.VMEM((b_pad, l_final * LANE), jnp.float32),
        ],
    )(masks, x_flat, *packed)
    return out[:batch, :output_dim]


# ----------------------------- parameter init --------------------------------

def init_params(key, input_channels, seq_len, output_dim, hidden_dim,
                conv_channels, kernel_sizes, padding):
    params = {"conv": [], "fc": []}
    in_c = input_channels
    for cc, ks in zip(conv_channels, kernel_sizes):
        key, k1, k2 = jax.random.split(key, 3)
        bound = 1.0 / np.sqrt(in_c * ks)
        w = jax.random.uniform(k1, (cc, in_c, ks), jnp.float32, -bound, bound)
        b = jax.random.uniform(k2, (cc,), jnp.float32, -bound, bound)
        params["conv"].append((w, b))
        in_c = cc
    conv_out = seq_len
    for ks in kernel_sizes:
        conv_out = (conv_out - ks + 2 * padding) + 1
    dims = [conv_channels[-1] * conv_out, hidden_dim * 2, hidden_dim * 4,
            hidden_dim * 8, output_dim]
    for din, dout in zip(dims[:-1], dims[1:]):
        key, k1, k2 = jax.random.split(key, 3)
        bound = 1.0 / np.sqrt(din)
        w = jax.random.uniform(k1, (din, dout), jnp.float32, -bound, bound)
        b = jax.random.uniform(k2, (dout,), jnp.float32, -bound, bound)
        params["fc"].append((w, b))
    return params


# ------------------------------ pure-JAX reference ---------------------------

def ref_forward(x, params, padding):
    for (w, b) in params["conv"]:
        x = jax.lax.conv_general_dilated(
            x, w, window_strides=(1,), padding=[(padding, padding)],
            dimension_numbers=("NCH", "OIH", "NCH"))
        x = jax.nn.relu(x + b[None, :, None])
    x = x.reshape(x.shape[0], -1)
    n_fc = len(params["fc"])
    for i, (w, b) in enumerate(params["fc"]):
        x = x @ w + b
        if i < n_fc - 1:
            x = jax.nn.relu(x)
    return x


# ------------------------------------ main -----------------------------------

if __name__ == "__main__":
    # Scaled-down config consistent with the module's forward.
    batch = 2
    input_channels = 4
    sequence_length = 16
    output_dim = 8
    hidden_dim = 32
    conv_channels = [8, 8, 8, 16, 32, 16]
    kernel_sizes = [5, 5, 7, 7, 7, 9]
    padding = 2

    key = jax.random.PRNGKey(0)
    key, xkey = jax.random.split(key)
    x = jax.random.normal(xkey, (batch, input_channels, sequence_length), jnp.float32)

    params = init_params(key, input_channels, sequence_length, output_dim,
                         hidden_dim, conv_channels, kernel_sizes, padding)

    # one-time weight re-layout, kept out of the per-call jit path
    packed, meta = pack_params(params, padding, sequence_length)

    fwd = jax.jit(dqn_forward, static_argnums=(2,))
    out = jax.block_until_ready(fwd(x, packed, meta))

    ref = jax.block_until_ready(ref_forward(x, params, padding))
    np.testing.assert_allclose(np.asarray(out), np.asarray(ref),
                               rtol=2e-2, atol=2e-3)

    assert out.shape == (batch, output_dim)
    print("KERNEL_OK")
</pallas_src>

<mosaic_0001>
module attributes {stable_mosaic.version = 11 : i64} {
  func.func @_dqn_fused_kernel(%arg0: memref<5x64x128xf32, #tpu.memory_space<vmem>>, %arg1: memref<80x128xf32, #tpu.memory_space<vmem>>, %arg2: memref<5x128x128xf32, #tpu.memory_space<vmem>>, %arg3: memref<1x128xf32, #tpu.memory_space<vmem>>, %arg4: memref<5x128x128xf32, #tpu.memory_space<vmem>>, %arg5: memref<1x128xf32, #tpu.memory_space<vmem>>, %arg6: memref<7x128x128xf32, #tpu.memory_space<vmem>>, %arg7: memref<1x128xf32, #tpu.memory_space<vmem>>, %arg8: memref<7x128x128xf32, #tpu.memory_space<vmem>>, %arg9: memref<1x128xf32, #tpu.memory_space<vmem>>, %arg10: memref<7x128x128xf32, #tpu.memory_space<vmem>>, %arg11: memref<1x128xf32, #tpu.memory_space<vmem>>, %arg12: memref<9x128x128xf32, #tpu.memory_space<vmem>>, %arg13: memref<1x128xf32, #tpu.memory_space<vmem>>, %arg14: memref<768x128xf32, #tpu.memory_space<vmem>>, %arg15: memref<1x128xf32, #tpu.memory_space<vmem>>, %arg16: memref<128x128xf32, #tpu.memory_space<vmem>>, %arg17: memref<1x128xf32, #tpu.memory_space<vmem>>, %arg18: memref<128x256xf32, #tpu.memory_space<vmem>>, %arg19: memref<1x256xf32, #tpu.memory_space<vmem>>, %arg20: memref<256x128xf32, #tpu.memory_space<vmem>>, %arg21: memref<1x128xf32, #tpu.memory_space<vmem>>, %arg22: memref<8x128xf32, #tpu.memory_space<vmem>>, %arg23: memref<80x128xf32, #tpu.memory_space<vmem>>, %arg24: memref<80x128xf32, #tpu.memory_space<vmem>>, %arg25: memref<8x768xf32, #tpu.memory_space<vmem>>) attributes {dimension_semantics = [], scalar_prefetch = 0 : i64, scratch_operands = 3 : i64, tpu.core_type = #tpu.core_type<tc>} {
    %cst = arith.constant 0.000000e+00 : f32
    %0 = vector.broadcast %cst : f32 to vector<80x128xf32>
    %c0 = arith.constant 0 : index
    %c0_0 = arith.constant 0 : index
    %1 = vector.load %arg23[%c0, %c0_0] : memref<80x128xf32, #tpu.memory_space<vmem>>, vector<80x128xf32>
    tpu.vector_store %arg23[%c0, %c0_0], %0 {strides = array<i32>} : memref<80x128xf32, #tpu.memory_space<vmem>>, vector<80x128xf32>,
    %cst_1 = arith.constant 0.000000e+00 : f32
    %2 = vector.broadcast %cst_1 : f32 to vector<80x128xf32>
    %c0_2 = arith.constant 0 : index
    %c0_3 = arith.constant 0 : index
    %3 = vector.load %arg24[%c0_2, %c0_3] : memref<80x128xf32, #tpu.memory_space<vmem>>, vector<80x128xf32>
    tpu.vector_store %arg24[%c0_2, %c0_3], %2 {strides = array<i32>} : memref<80x128xf32, #tpu.memory_space<vmem>>, vector<80x128xf32>,
    %cst_4 = arith.constant 0.000000e+00 : f32
    %4 = vector.broadcast %cst_4 : f32 to vector<8x768xf32>
    %c0_5 = arith.constant 0 : index
    %c0_6 = arith.constant 0 : index
    %5 = vector.load %arg25[%c0_5, %c0_6] : memref<8x768xf32, #tpu.memory_space<vmem>>, vector<8x768xf32>
    tpu.vector_store %arg25[%c0_5, %c0_6], %4 {strides = array<i32>} : memref<8x768xf32, #tpu.memory_space<vmem>>, vector<8x768xf32>,
    %c0_7 = arith.constant 0 : index
    %c0_8 = arith.constant 0 : index
    %6 = vector.load %arg3[%c0_7, %c0_8] : memref<1x128xf32, #tpu.memory_space<vmem>>, vector<1x128xf32>
    %cst_9 = arith.constant 0.000000e+00 : f32
    %7 = vector.broadcast %cst_9 : f32 to vector<64x128xf32>
    %cst_10 = arith.constant 0.000000e+00 : f32
    %8 = vector.broadcast %cst_10 : f32 to vector<64x128xf32>
    %c6 = arith.constant 6 : index
    %c0_11 = arith.constant 0 : index
    %9 = vector.load %arg1[%c6, %c0_11] : memref<80x128xf32, #tpu.memory_space<vmem>>, vector<64x128xf32>
    %c0_12 = arith.constant 0 : index
    %c0_13 = arith.constant 0 : index
    %c0_14 = arith.constant 0 : index
    %10 = vector.load %arg2[%c0_12, %c0_13, %c0_14] : memref<5x128x128xf32, #tpu.memory_space<vmem>>, vector<1x128x128xf32>
    %11 = vector.shape_cast %10 : vector<1x128x128xf32> to vector<128x128xf32>
    %cst_15 = arith.constant dense<0.000000e+00> : vector<64x128xf32>
    %12 = tpu.matmul %9, %11, %cst_15 {dimension_numbers = #tpu.dot_dimension_numbers<[1], [0], [0], [1], [0, 0, 1, 1], [], []>} : vector<64x128xf32>, vector<128x128xf32>, vector<64x128xf32> -> vector<64x128xf32>
    %13 = arith.addf %7, %12 : vector<64x128xf32>
    %c7 = arith.constant 7 : index
    %c0_16 = arith.constant 0 : index
    %14 = vector.load %arg1[%c7, %c0_16] : memref<80x128xf32, #tpu.memory_space<vmem>>, vector<64x128xf32>
    %c1 = arith.constant 1 : index
    %c0_17 = arith.constant 0 : index
    %c0_18 = arith.constant 0 : index
    %15 = vector.load %arg2[%c1, %c0_17, %c0_18] : memref<5x128x128xf32, #tpu.memory_space<vmem>>, vector<1x128x128xf32>
    %16 = vector.shape_cast %15 : vector<1x128x128xf32> to vector<128x128xf32>
    %cst_19 = arith.constant dense<0.000000e+00> : vector<64x128xf32>
    %17 = tpu.matmul %14, %16, %cst_19 {dimension_numbers = #tpu.dot_dimension_numbers<[1], [0], [0], [1], [0, 0, 1, 1], [], []>} : vector<64x128xf32>, vector<128x128xf32>, vector<64x128xf32> -> vector<64x128xf32>
    %18 = arith.addf %8, %17 : vector<64x128xf32>
    %c8 = arith.constant 8 : index
    %c0_20 = arith.constant 0 : index
    %19 = vector.load %arg1[%c8, %c0_20] : memref<80x128xf32, #tpu.memory_space<vmem>>, vector<64x128xf32>
    %c2 = arith.constant 2 : index
    %c0_21 = arith.constant 0 : index
    %c0_22 = arith.constant 0 : index
    %20 = vector.load %arg2[%c2, %c0_21, %c0_22] : memref<5x128x128xf32, #tpu.memory_space<vmem>>, vector<1x128x128xf32>
    %21 = vector.shape_cast %20 : vector<1x128x128xf32> to vector<128x128xf32>
    %cst_23 = arith.constant dense<0.000000e+00> : vector<64x128xf32>
    %22 = tpu.matmul %19, %21, %cst_23 {dimension_numbers = #tpu.dot_dimension_numbers<[1], [0], [0], [1], [0, 0, 1, 1], [], []>} : vector<64x128xf32>, vector<128x128xf32>, vector<64x128xf32> -> vector<64x128xf32>
    %23 = arith.addf %13, %22 : vector<64x128xf32>
    %c9 = arith.constant 9 : index
    %c0_24 = arith.constant 0 : index
    %24 = vector.load %arg1[%c9, %c0_24] : memref<80x128xf32, #tpu.memory_space<vmem>>, vector<64x128xf32>
    %c3 = arith.constant 3 : index
    %c0_25 = arith.constant 0 : index
    %c0_26 = arith.constant 0 : index
    %25 = vector.load %arg2[%c3, %c0_25, %c0_26] : memref<5x128x128xf32, #tpu.memory_space<vmem>>, vector<1x128x128xf32>
    %26 = vector.shape_cast %25 : vector<1x128x128xf32> to vector<128x128xf32>
    %cst_27 = arith.constant dense<0.000000e+00> : vector<64x128xf32>
    %27 = tpu.matmul %24, %26, %cst_27 {dimension_numbers = #tpu.dot_dimension_numbers<[1], [0], [0], [1], [0, 0, 1, 1], [], []>} : vector<64x128xf32>, vector<128x128xf32>, vector<64x128xf32> -> vector<64x128xf32>
    %28 = arith.addf %18, %27 : vector<64x128xf32>
    %c10 = arith.constant 10 : index
    %c0_28 = arith.constant 0 : index
    %29 = vector.load %arg1[%c10, %c0_28] : memref<80x128xf32, #tpu.memory_space<vmem>>, vector<64x128xf32>
    %c4 = arith.constant 4 : index
    %c0_29 = arith.constant 0 : index
    %c0_30 = arith.constant 0 : index
    %30 = vector.load %arg2[%c4, %c0_29, %c0_30] : memref<5x128x128xf32, #tpu.memory_space<vmem>>, vector<1x128x128xf32>
    %31 = vector.shape_cast %30 : vector<1x128x128xf32> to vector<128x128xf32>
    %cst_31 = arith.constant dense<0.000000e+00> : vector<64x128xf32>
    %32 = tpu.matmul %29, %31, %cst_31 {dimension_numbers = #tpu.dot_dimension_numbers<[1], [0], [0], [1], [0, 0, 1, 1], [], []>} : vector<64x128xf32>, vector<128x128xf32>, vector<64x128xf32> -> vector<64x128xf32>
    %33 = arith.addf %23, %32 : vector<64x128xf32>
    %34 = arith.addf %33, %28 : vector<64x128xf32>
    %35 = vector.broadcast %6 : vector<1x128xf32> to vector<64x128xf32>
    %36 = arith.addf %34, %35 : vector<64x128xf32>
    %cst_32 = arith.constant 0.000000e+00 : f32
    %37 = vector.broadcast %cst_32 : f32 to vector<64x128xf32>
    %38 = arith.maximumf %36, %37 : vector<64x128xf32>
    %c0_33 = arith.constant 0 : index
    %c0_34 = arith.constant 0 : index
    %c0_35 = arith.constant 0 : index
    %39 = vector.load %arg0[%c0_33, %c0_34, %c0_35] : memref<5x64x128xf32, #tpu.memory_space<vmem>>, vector<1x64x128xf32>
    %40 = vector.shape_cast %39 : vector<1x64x128xf32> to vector<64x128xf32>
    %41 = arith.mulf %38, %40 : vector<64x128xf32>
    %c8_36 = arith.constant 8 : index
    %c0_37 = arith.constant 0 : index
    %42 = vector.load %arg23[%c8_36, %c0_37] : memref<80x128xf32, #tpu.memory_space<vmem>>, vector<64x128xf32>
    tpu.vector_store %arg23[%c8_36, %c0_37], %41 {strides = array<i32>} : memref<80x128xf32, #tpu.memory_space<vmem>>, vector<64x128xf32>,
    %c0_38 = arith.constant 0 : index
    %c0_39 = arith.constant 0 : index
    %43 = vector.load %arg5[%c0_38, %c0_39] : memref<1x128xf32, #tpu.memory_space<vmem>>, vector<1x128xf32>
    %cst_40 = arith.constant 0.000000e+00 : f32
    %44 = vector.broadcast %cst_40 : f32 to vector<64x128xf32>
    %cst_41 = arith.constant 0.000000e+00 : f32
    %45 = vector.broadcast %cst_41 : f32 to vector<64x128xf32>
    %c6_42 = arith.constant 6 : index
    %c0_43 = arith.constant 0 : index
    %46 = vector.load %arg23[%c6_42, %c0_43] : memref<80x128xf32, #tpu.memory_space<vmem>>, vector<64x128xf32>
    %c0_44 = arith.constant 0 : index
    %c0_45 = arith.constant 0 : index
    %c0_46 = arith.constant 0 : index
    %47 = vector.load %arg4[%c0_44, %c0_45, %c0_46] : memref<5x128x128xf32, #tpu.memory_space<vmem>>, vector<1x128x128xf32>
    %48 = vector.shape_cast %47 : vector<1x128x128xf32> to vector<128x128xf32>
    %cst_47 = arith.constant dense<0.000000e+00> : vector<64x128xf32>
    %49 = tpu.matmul %46, %48, %cst_47 {dimension_numbers = #tpu.dot_dimension_numbers<[1], [0], [0], [1], [0, 0, 1, 1], [], []>} : vector<64x128xf32>, vector<128x128xf32>, vector<64x128xf32> -> vector<64x128xf32>
    %50 = arith.addf %44, %49 : vector<64x128xf32>
    %c7_48 = arith.constant 7 : index
    %c0_49 = arith.constant 0 : index
    %51 = vector.load %arg23[%c7_48, %c0_49] : memref<80x128xf32, #tpu.memory_space<vmem>>, vector<64x128xf32>
    %c1_50 = arith.constant 1 : index
    %c0_51 = arith.constant 0 : index
    %c0_52 = arith.constant 0 : index
    %52 = vector.load %arg4[%c1_50, %c0_51, %c0_52] : memref<5x128x128xf32, #tpu.memory_space<vmem>>, vector<1x128x128xf32>
    %53 = vector.shape_cast %52 : vector<1x128x128xf32> to vector<128x128xf32>
    %cst_53 = arith.constant dense<0.000000e+00> : vector<64x128xf32>
    %54 = tpu.matmul %51, %53, %cst_53 {dimension_numbers = #tpu.dot_dimension_numbers<[1], [0], [0], [1], [0, 0, 1, 1], [], []>} : vector<64x128xf32>, vector<128x128xf32>, vector<64x128xf32> -> vector<64x128xf32>
    %55 = arith.addf %45, %54 : vector<64x128xf32>
    %c8_54 = arith.constant 8 : index
    %c0_55 = arith.constant 0 : index
    %56 = vector.load %arg23[%c8_54, %c0_55] : memref<80x128xf32, #tpu.memory_space<vmem>>, vector<64x128xf32>
    %c2_56 = arith.constant 2 : index
    %c0_57 = arith.constant 0 : index
    %c0_58 = arith.constant 0 : index
    %57 = vector.load %arg4[%c2_56, %c0_57, %c0_58] : memref<5x128x128xf32, #tpu.memory_space<vmem>>, vector<1x128x128xf32>
    %58 = vector.shape_cast %57 : vector<1x128x128xf32> to vector<128x128xf32>
    %cst_59 = arith.constant dense<0.000000e+00> : vector<64x128xf32>
    %59 = tpu.matmul %56, %58, %cst_59 {dimension_numbers = #tpu.dot_dimension_numbers<[1], [0], [0], [1], [0, 0, 1, 1], [], []>} : vector<64x128xf32>, vector<128x128xf32>, vector<64x128xf32> -> vector<64x128xf32>
    %60 = arith.addf %50, %59 : vector<64x128xf32>
    %c9_60 = arith.constant 9 : index
    %c0_61 = arith.constant 0 : index
    %61 = vector.load %arg23[%c9_60, %c0_61] : memref<80x128xf32, #tpu.memory_space<vmem>>, vector<64x128xf32>
    %c3_62 = arith.constant 3 : index
    %c0_63 = arith.constant 0 : index
    %c0_64 = arith.constant 0 : index
    %62 = vector.load %arg4[%c3_62, %c0_63, %c0_64] : memref<5x128x128xf32, #tpu.memory_space<vmem>>, vector<1x128x128xf32>
    %63 = vector.shape_cast %62 : vector<1x128x128xf32> to vector<128x128xf32>
    %cst_65 = arith.constant dense<0.000000e+00> : vector<64x128xf32>
    %64 = tpu.matmul %61, %63, %cst_65 {dimension_numbers = #tpu.dot_dimension_numbers<[1], [0], [0], [1], [0, 0, 1, 1], [], []>} : vector<64x128xf32>, vector<128x128xf32>, vector<64x128xf32> -> vector<64x128xf32>
    %65 = arith.addf %55, %64 : vector<64x128xf32>
    %c10_66 = arith.constant 10 : index
    %c0_67 = arith.constant 0 : index
    %66 = vector.load %arg23[%c10_66, %c0_67] : memref<80x128xf32, #tpu.memory_space<vmem>>, vector<64x128xf32>
    %c4_68 = arith.constant 4 : index
    %c0_69 = arith.constant 0 : index
    %c0_70 = arith.constant 0 : index
    %67 = vector.load %arg4[%c4_68, %c0_69, %c0_70] : memref<5x128x128xf32, #tpu.memory_space<vmem>>, vector<1x128x128xf32>
    %68 = vector.shape_cast %67 : vector<1x128x128xf32> to vector<128x128xf32>
    %cst_71 = arith.constant dense<0.000000e+00> : vector<64x128xf32>
    %69 = tpu.matmul %66, %68, %cst_71 {dimension_numbers = #tpu.dot_dimension_numbers<[1], [0], [0], [1], [0, 0, 1, 1], [], []>} : vector<64x128xf32>, vector<128x128xf32>, vector<64x128xf32> -> vector<64x128xf32>
    %70 = arith.addf %60, %69 : vector<64x128xf32>
    %71 = arith.addf %70, %65 : vector<64x128xf32>
    %72 = vector.broadcast %43 : vector<1x128xf32> to vector<64x128xf32>
    %73 = arith.addf %71, %72 : vector<64x128xf32>
    %cst_72 = arith.constant 0.000000e+00 : f32
    %74 = vector.broadcast %cst_72 : f32 to vector<64x128xf32>
    %75 = arith.maximumf %73, %74 : vector<64x128xf32>
    %c1_73 = arith.constant 1 : index
    %c0_74 = arith.constant 0 : index
    %c0_75 = arith.constant 0 : index
    %76 = vector.load %arg0[%c1_73, %c0_74, %c0_75] : memref<5x64x128xf32, #tpu.memory_space<vmem>>, vector<1x64x128xf32>
    %77 = vector.shape_cast %76 : vector<1x64x128xf32> to vector<64x128xf32>
    %78 = arith.mulf %75, %77 : vector<64x128xf32>
    %c8_76 = arith.constant 8 : index
    %c0_77 = arith.constant 0 : index
    %79 = vector.load %arg24[%c8_76, %c0_77] : memref<80x128xf32, #tpu.memory_space<vmem>>, vector<64x128xf32>
    tpu.vector_store %arg24[%c8_76, %c0_77], %78 {strides = array<i32>} : memref<80x128xf32, #tpu.memory_space<vmem>>, vector<64x128xf32>,
    %c0_78 = arith.constant 0 : index
    %c0_79 = arith.constant 0 : index
    %80 = vector.load %arg7[%c0_78, %c0_79] : memref<1x128xf32, #tpu.memory_space<vmem>>, vector<1x128xf32>
    %cst_80 = arith.constant 0.000000e+00 : f32
    %81 = vector.broadcast %cst_80 : f32 to vector<64x128xf32>
    %cst_81 = arith.constant 0.000000e+00 : f32
    %82 = vector.broadcast %cst_81 : f32 to vector<64x128xf32>
    %c6_82 = arith.constant 6 : index
    %c0_83 = arith.constant 0 : index
    %83 = vector.load %arg24[%c6_82, %c0_83] : memref<80x128xf32, #tpu.memory_space<vmem>>, vector<64x128xf32>
    %c0_84 = arith.constant 0 : index
    %c0_85 = arith.constant 0 : index
    %c0_86 = arith.constant 0 : index
    %84 = vector.load %arg6[%c0_84, %c0_85, %c0_86] : memref<7x128x128xf32, #tpu.memory_space<vmem>>, vector<1x128x128xf32>
    %85 = vector.shape_cast %84 : vector<1x128x128xf32> to vector<128x128xf32>
    %cst_87 = arith.constant dense<0.000000e+00> : vector<64x128xf32>
    %86 = tpu.matmul %83, %85, %cst_87 {dimension_numbers = #tpu.dot_dimension_numbers<[1], [0], [0], [1], [0, 0, 1, 1], [], []>} : vector<64x128xf32>, vector<128x128xf32>, vector<64x128xf32> -> vector<64x128xf32>
    %87 = arith.addf %81, %86 : vector<64x128xf32>
    %c7_88 = arith.constant 7 : index
    %c0_89 = arith.constant 0 : index
    %88 = vector.load %arg24[%c7_88, %c0_89] : memref<80x128xf32, #tpu.memory_space<vmem>>, vector<64x128xf32>
    %c1_90 = arith.constant 1 : index
    %c0_91 = arith.constant 0 : index
    %c0_92 = arith.constant 0 : index
    %89 = vector.load %arg6[%c1_90, %c0_91, %c0_92] : memref<7x128x128xf32, #tpu.memory_space<vmem>>, vector<1x128x128xf32>
    %90 = vector.shape_cast %89 : vector<1x128x128xf32> to vector<128x128xf32>
    %cst_93 = arith.constant dense<0.000000e+00> : vector<64x128xf32>
    %91 = tpu.matmul %88, %90, %cst_93 {dimension_numbers = #tpu.dot_dimension_numbers<[1], [0], [0], [1], [0, 0, 1, 1], [], []>} : vector<64x128xf32>, vector<128x128xf32>, vector<64x128xf32> -> vector<64x128xf32>
    %92 = arith.addf %82, %91 : vector<64x128xf32>
    %c8_94 = arith.constant 8 : index
    %c0_95 = arith.constant 0 : index
    %93 = vector.load %arg24[%c8_94, %c0_95] : memref<80x128xf32, #tpu.memory_space<vmem>>, vector<64x128xf32>
    %c2_96 = arith.constant 2 : index
    %c0_97 = arith.constant 0 : index
    %c0_98 = arith.constant 0 : index
    %94 = vector.load %arg6[%c2_96, %c0_97, %c0_98] : memref<7x128x128xf32, #tpu.memory_space<vmem>>, vector<1x128x128xf32>
    %95 = vector.shape_cast %94 : vector<1x128x128xf32> to vector<128x128xf32>
    %cst_99 = arith.constant dense<0.000000e+00> : vector<64x128xf32>
    %96 = tpu.matmul %93, %95, %cst_99 {dimension_numbers = #tpu.dot_dimension_numbers<[1], [0], [0], [1], [0, 0, 1, 1], [], []>} : vector<64x128xf32>, vector<128x128xf32>, vector<64x128xf32> -> vector<64x128xf32>
    %97 = arith.addf %87, %96 : vector<64x128xf32>
    %c9_100 = arith.constant 9 : index
    %c0_101 = arith.constant 0 : index
    %98 = vector.load %arg24[%c9_100, %c0_101] : memref<80x128xf32, #tpu.memory_space<vmem>>, vector<64x128xf32>
    %c3_102 = arith.constant 3 : index
    %c0_103 = arith.constant 0 : index
    %c0_104 = arith.constant 0 : index
    %99 = vector.load %arg6[%c3_102, %c0_103, %c0_104] : memref<7x128x128xf32, #tpu.memory_space<vmem>>, vector<1x128x128xf32>
    %100 = vector.shape_cast %99 : vector<1x128x128xf32> to vector<128x128xf32>
    %cst_105 = arith.constant dense<0.000000e+00> : vector<64x128xf32>
    %101 = tpu.matmul %98, %100, %cst_105 {dimension_numbers = #tpu.dot_dimension_numbers<[1], [0], [0], [1], [0, 0, 1, 1], [], []>} : vector<64x128xf32>, vector<128x128xf32>, vector<64x128xf32> -> vector<64x128xf32>
    %102 = arith.addf %92, %101 : vector<64x128xf32>
    %c10_106 = arith.constant 10 : index
    %c0_107 = arith.constant 0 : index
    %103 = vector.load %arg24[%c10_106, %c0_107] : memref<80x128xf32, #tpu.memory_space<vmem>>, vector<64x128xf32>
    %c4_108 = arith.constant 4 : index
    %c0_109 = arith.constant 0 : index
    %c0_110 = arith.constant 0 : index
    %104 = vector.load %arg6[%c4_108, %c0_109, %c0_110] : memref<7x128x128xf32, #tpu.memory_space<vmem>>, vector<1x128x128xf32>
    %105 = vector.shape_cast %104 : vector<1x128x128xf32> to vector<128x128xf32>
    %cst_111 = arith.constant dense<0.000000e+00> : vector<64x128xf32>
    %106 = tpu.matmul %103, %105, %cst_111 {dimension_numbers = #tpu.dot_dimension_numbers<[1], [0], [0], [1], [0, 0, 1, 1], [], []>} : vector<64x128xf32>, vector<128x128xf32>, vector<64x128xf32> -> vector<64x128xf32>
    %107 = arith.addf %97, %106 : vector<64x128xf32>
    %c11 = arith.constant 11 : index
    %c0_112 = arith.constant 0 : index
    %108 = vector.load %arg24[%c11, %c0_112] : memref<80x128xf32, #tpu.memory_space<vmem>>, vector<64x128xf32>
    %c5 = arith.constant 5 : index
    %c0_113 = arith.constant 0 : index
    %c0_114 = arith.constant 0 : index
    %109 = vector.load %arg6[%c5, %c0_113, %c0_114] : memref<7x128x128xf32, #tpu.memory_space<vmem>>, vector<1x128x128xf32>
    %110 = vector.shape_cast %109 : vector<1x128x128xf32> to vector<128x128xf32>
    %cst_115 = arith.constant dense<0.000000e+00> : vector<64x128xf32>
    %111 = tpu.matmul %108, %110, %cst_115 {dimension_numbers = #tpu.dot_dimension_numbers<[1], [0], [0], [1], [0, 0, 1, 1], [], []>} : vector<64x128xf32>, vector<128x128xf32>, vector<64x128xf32> -> vector<64x128xf32>
    %112 = arith.addf %102, %111 : vector<64x128xf32>
    %c12 = arith.constant 12 : index
    %c0_116 = arith.constant 0 : index
    %113 = vector.load %arg24[%c12, %c0_116] : memref<80x128xf32, #tpu.memory_space<vmem>>, vector<64x128xf32>
    %c6_117 = arith.constant 6 : index
    %c0_118 = arith.constant 0 : index
    %c0_119 = arith.constant 0 : index
    %114 = vector.load %arg6[%c6_117, %c0_118, %c0_119] : memref<7x128x128xf32, #tpu.memory_space<vmem>>, vector<1x128x128xf32>
    %115 = vector.shape_cast %114 : vector<1x128x128xf32> to vector<128x128xf32>
    %cst_120 = arith.constant dense<0.000000e+00> : vector<64x128xf32>
    %116 = tpu.matmul %113, %115, %cst_120 {dimension_numbers = #tpu.dot_dimension_numbers<[1], [0], [0], [1], [0, 0, 1, 1], [], []>} : vector<64x128xf32>, vector<128x128xf32>, vector<64x128xf32> -> vector<64x128xf32>
    %117 = arith.addf %107, %116 : vector<64x128xf32>
    %118 = arith.addf %117, %112 : vector<64x128xf32>
    %119 = vector.broadcast %80 : vector<1x128xf32> to vector<64x128xf32>
    %120 = arith.addf %118, %119 : vector<64x128xf32>
    %cst_121 = arith.constant 0.000000e+00 : f32
    %121 = vector.broadcast %cst_121 : f32 to vector<64x128xf32>
    %122 = arith.maximumf %120, %121 : vector<64x128xf32>
    %c2_122 = arith.constant 2 : index
    %c0_123 = arith.constant 0 : index
    %c0_124 = arith.constant 0 : index
    %123 = vector.load %arg0[%c2_122, %c0_123, %c0_124] : memref<5x64x128xf32, #tpu.memory_space<vmem>>, vector<1x64x128xf32>
    %124 = vector.shape_cast %123 : vector<1x64x128xf32> to vector<64x128xf32>
    %125 = arith.mulf %122, %124 : vector<64x128xf32>
    %c8_125 = arith.constant 8 : index
    %c0_126 = arith.constant 0 : index
    %126 = vector.load %arg23[%c8_125, %c0_126] : memref<80x128xf32, #tpu.memory_space<vmem>>, vector<64x128xf32>
    tpu.vector_store %arg23[%c8_125, %c0_126], %125 {strides = array<i32>} : memref<80x128xf32, #tpu.memory_space<vmem>>, vector<64x128xf32>,
    %c0_127 = arith.constant 0 : index
    %c0_128 = arith.constant 0 : index
    %127 = vector.load %arg9[%c0_127, %c0_128] : memref<1x128xf32, #tpu.memory_space<vmem>>, vector<1x128xf32>
    %cst_129 = arith.constant 0.000000e+00 : f32
    %128 = vector.broadcast %cst_129 : f32 to vector<64x128xf32>
    %cst_130 = arith.constant 0.000000e+00 : f32
    %129 = vector.broadcast %cst_130 : f32 to vector<64x128xf32>
    %c6_131 = arith.constant 6 : index
    %c0_132 = arith.constant 0 : index
    %130 = vector.load %arg23[%c6_131, %c0_132] : memref<80x128xf32, #tpu.memory_space<vmem>>, vector<64x128xf32>
    %c0_133 = arith.constant 0 : index
    %c0_134 = arith.constant 0 : index
    %c0_135 = arith.constant 0 : index
    %131 = vector.load %arg8[%c0_133, %c0_134, %c0_135] : memref<7x128x128xf32, #tpu.memory_space<vmem>>, vector<1x128x128xf32>
    %132 = vector.shape_cast %131 : vector<1x128x128xf32> to vector<128x128xf32>
    %cst_136 = arith.constant dense<0.000000e+00> : vector<64x128xf32>
    %133 = tpu.matmul %130, %132, %cst_136 {dimension_numbers = #tpu.dot_dimension_numbers<[1], [0], [0], [1], [0, 0, 1, 1], [], []>} : vector<64x128xf32>, vector<128x128xf32>, vector<64x128xf32> -> vector<64x128xf32>
    %134 = arith.addf %128, %133 : vector<64x128xf32>
    %c7_137 = arith.constant 7 : index
    %c0_138 = arith.constant 0 : index
    %135 = vector.load %arg23[%c7_137, %c0_138] : memref<80x128xf32, #tpu.memory_space<vmem>>, vector<64x128xf32>
    %c1_139 = arith.constant 1 : index
    %c0_140 = arith.constant 0 : index
    %c0_141 = arith.constant 0 : index
    %136 = vector.load %arg8[%c1_139, %c0_140, %c0_141] : memref<7x128x128xf32, #tpu.memory_space<vmem>>, vector<1x128x128xf32>
    %137 = vector.shape_cast %136 : vector<1x128x128xf32> to vector<128x128xf32>
    %cst_142 = arith.constant dense<0.000000e+00> : vector<64x128xf32>
    %138 = tpu.matmul %135, %137, %cst_142 {dimension_numbers = #tpu.dot_dimension_numbers<[1], [0], [0], [1], [0, 0, 1, 1], [], []>} : vector<64x128xf32>, vector<128x128xf32>, vector<64x128xf32> -> vector<64x128xf32>
    %139 = arith.addf %129, %138 : vector<64x128xf32>
    %c8_143 = arith.constant 8 : index
    %c0_144 = arith.constant 0 : index
    %140 = vector.load %arg23[%c8_143, %c0_144] : memref<80x128xf32, #tpu.memory_space<vmem>>, vector<64x128xf32>
    %c2_145 = arith.constant 2 : index
    %c0_146 = arith.constant 0 : index
    %c0_147 = arith.constant 0 : index
    %141 = vector.load %arg8[%c2_145, %c0_146, %c0_147] : memref<7x128x128xf32, #tpu.memory_space<vmem>>, vector<1x128x128xf32>
    %142 = vector.shape_cast %141 : vector<1x128x128xf32> to vector<128x128xf32>
    %cst_148 = arith.constant dense<0.000000e+00> : vector<64x128xf32>
    %143 = tpu.matmul %140, %142, %cst_148 {dimension_numbers = #tpu.dot_dimension_numbers<[1], [0], [0], [1], [0, 0, 1, 1], [], []>} : vector<64x128xf32>, vector<128x128xf32>, vector<64x128xf32> -> vector<64x128xf32>
    %144 = arith.addf %134, %143 : vector<64x128xf32>
    %c9_149 = arith.constant 9 : index
    %c0_150 = arith.constant 0 : index
    %145 = vector.load %arg23[%c9_149, %c0_150] : memref<80x128xf32, #tpu.memory_space<vmem>>, vector<64x128xf32>
    %c3_151 = arith.constant 3 : index
    %c0_152 = arith.constant 0 : index
    %c0_153 = arith.constant 0 : index
    %146 = vector.load %arg8[%c3_151, %c0_152, %c0_153] : memref<7x128x128xf32, #tpu.memory_space<vmem>>, vector<1x128x128xf32>
    %147 = vector.shape_cast %146 : vector<1x128x128xf32> to vector<128x128xf32>
    %cst_154 = arith.constant dense<0.000000e+00> : vector<64x128xf32>
    %148 = tpu.matmul %145, %147, %cst_154 {dimension_numbers = #tpu.dot_dimension_numbers<[1], [0], [0], [1], [0, 0, 1, 1], [], []>} : vector<64x128xf32>, vector<128x128xf32>, vector<64x128xf32> -> vector<64x128xf32>
    %149 = arith.addf %139, %148 : vector<64x128xf32>
    %c10_155 = arith.constant 10 : index
    %c0_156 = arith.constant 0 : index
    %150 = vector.load %arg23[%c10_155, %c0_156] : memref<80x128xf32, #tpu.memory_space<vmem>>, vector<64x128xf32>
    %c4_157 = arith.constant 4 : index
    %c0_158 = arith.constant 0 : index
    %c0_159 = arith.constant 0 : index
    %151 = vector.load %arg8[%c4_157, %c0_158, %c0_159] : memref<7x128x128xf32, #tpu.memory_space<vmem>>, vector<1x128x128xf32>
    %152 = vector.shape_cast %151 : vector<1x128x128xf32> to vector<128x128xf32>
    %cst_160 = arith.constant dense<0.000000e+00> : vector<64x128xf32>
    %153 = tpu.matmul %150, %152, %cst_160 {dimension_numbers = #tpu.dot_dimension_numbers<[1], [0], [0], [1], [0, 0, 1, 1], [], []>} : vector<64x128xf32>, vector<128x128xf32>, vector<64x128xf32> -> vector<64x128xf32>
    %154 = arith.addf %144, %153 : vector<64x128xf32>
    %c11_161 = arith.constant 11 : index
    %c0_162 = arith.constant 0 : index
    %155 = vector.load %arg23[%c11_161, %c0_162] : memref<80x128xf32, #tpu.memory_space<vmem>>, vector<64x128xf32>
    %c5_163 = arith.constant 5 : index
    %c0_164 = arith.constant 0 : index
    %c0_165 = arith.constant 0 : index
    %156 = vector.load %arg8[%c5_163, %c0_164, %c0_165] : memref<7x128x128xf32, #tpu.memory_space<vmem>>, vector<1x128x128xf32>
    %157 = vector.shape_cast %156 : vector<1x128x128xf32> to vector<128x128xf32>
    %cst_166 = arith.constant dense<0.000000e+00> : vector<64x128xf32>
    %158 = tpu.matmul %155, %157, %cst_166 {dimension_numbers = #tpu.dot_dimension_numbers<[1], [0], [0], [1], [0, 0, 1, 1], [], []>} : vector<64x128xf32>, vector<128x128xf32>, vector<64x128xf32> -> vector<64x128xf32>
    %159 = arith.addf %149, %158 : vector<64x128xf32>
    %c12_167 = arith.constant 12 : index
    %c0_168 = arith.constant 0 : index
    %160 = vector.load %arg23[%c12_167, %c0_168] : memref<80x128xf32, #tpu.memory_space<vmem>>, vector<64x128xf32>
    %c6_169 = arith.constant 6 : index
    %c0_170 = arith.constant 0 : index
    %c0_171 = arith.constant 0 : index
    %161 = vector.load %arg8[%c6_169, %c0_170, %c0_171] : memref<7x128x128xf32, #tpu.memory_space<vmem>>, vector<1x128x128xf32>
    %162 = vector.shape_cast %161 : vector<1x128x128xf32> to vector<128x128xf32>
    %cst_172 = arith.constant dense<0.000000e+00> : vector<64x128xf32>
    %163 = tpu.matmul %160, %162, %cst_172 {dimension_numbers = #tpu.dot_dimension_numbers<[1], [0], [0], [1], [0, 0, 1, 1], [], []>} : vector<64x128xf32>, vector<128x128xf32>, vector<64x128xf32> -> vector<64x128xf32>
    %164 = arith.addf %154, %163 : vector<64x128xf32>
    %165 = arith.addf %164, %159 : vector<64x128xf32>
    %166 = vector.broadcast %127 : vector<1x128xf32> to vector<64x128xf32>
    %167 = arith.addf %165, %166 : vector<64x128xf32>
    %cst_173 = arith.constant 0.000000e+00 : f32
    %168 = vector.broadcast %cst_173 : f32 to vector<64x128xf32>
    %169 = arith.maximumf %167, %168 : vector<64x128xf32>
    %c3_174 = arith.constant 3 : index
    %c0_175 = arith.constant 0 : index
    %c0_176 = arith.constant 0 : index
    %170 = vector.load %arg0[%c3_174, %c0_175, %c0_176] : memref<5x64x128xf32, #tpu.memory_space<vmem>>, vector<1x64x128xf32>
    %171 = vector.shape_cast %170 : vector<1x64x128xf32> to vector<64x128xf32>
    %172 = arith.mulf %169, %171 : vector<64x128xf32>
    %c8_177 = arith.constant 8 : index
    %c0_178 = arith.constant 0 : index
    %173 = vector.load %arg24[%c8_177, %c0_178] : memref<80x128xf32, #tpu.memory_space<vmem>>, vector<64x128xf32>
    tpu.vector_store %arg24[%c8_177, %c0_178], %172 {strides = array<i32>} : memref<80x128xf32, #tpu.memory_space<vmem>>, vector<64x128xf32>,
    %c0_179 = arith.constant 0 : index
    %c0_180 = arith.constant 0 : index
    %174 = vector.load %arg11[%c0_179, %c0_180] : memref<1x128xf32, #tpu.memory_space<vmem>>, vector<1x128xf32>
    %cst_181 = arith.constant 0.000000e+00 : f32
    %175 = vector.broadcast %cst_181 : f32 to vector<64x128xf32>
    %cst_182 = arith.constant 0.000000e+00 : f32
    %176 = vector.broadcast %cst_182 : f32 to vector<64x128xf32>
    %c6_183 = arith.constant 6 : index
    %c0_184 = arith.constant 0 : index
    %177 = vector.load %arg24[%c6_183, %c0_184] : memref<80x128xf32, #tpu.memory_space<vmem>>, vector<64x128xf32>
    %c0_185 = arith.constant 0 : index
    %c0_186 = arith.constant 0 : index
    %c0_187 = arith.constant 0 : index
    %178 = vector.load %arg10[%c0_185, %c0_186, %c0_187] : memref<7x128x128xf32, #tpu.memory_space<vmem>>, vector<1x128x128xf32>
    %179 = vector.shape_cast %178 : vector<1x128x128xf32> to vector<128x128xf32>
    %cst_188 = arith.constant dense<0.000000e+00> : vector<64x128xf32>
    %180 = tpu.matmul %177, %179, %cst_188 {dimension_numbers = #tpu.dot_dimension_numbers<[1], [0], [0], [1], [0, 0, 1, 1], [], []>} : vector<64x128xf32>, vector<128x128xf32>, vector<64x128xf32> -> vector<64x128xf32>
    %181 = arith.addf %175, %180 : vector<64x128xf32>
    %c7_189 = arith.constant 7 : index
    %c0_190 = arith.constant 0 : index
    %182 = vector.load %arg24[%c7_189, %c0_190] : memref<80x128xf32, #tpu.memory_space<vmem>>, vector<64x128xf32>
    %c1_191 = arith.constant 1 : index
    %c0_192 = arith.constant 0 : index
    %c0_193 = arith.constant 0 : index
    %183 = vector.load %arg10[%c1_191, %c0_192, %c0_193] : memref<7x128x128xf32, #tpu.memory_space<vmem>>, vector<1x128x128xf32>
    %184 = vector.shape_cast %183 : vector<1x128x128xf32> to vector<128x128xf32>
    %cst_194 = arith.constant dense<0.000000e+00> : vector<64x128xf32>
    %185 = tpu.matmul %182, %184, %cst_194 {dimension_numbers = #tpu.dot_dimension_numbers<[1], [0], [0], [1], [0, 0, 1, 1], [], []>} : vector<64x128xf32>, vector<128x128xf32>, vector<64x128xf32> -> vector<64x128xf32>
    %186 = arith.addf %176, %185 : vector<64x128xf32>
    %c8_195 = arith.constant 8 : index
    %c0_196 = arith.constant 0 : index
    %187 = vector.load %arg24[%c8_195, %c0_196] : memref<80x128xf32, #tpu.memory_space<vmem>>, vector<64x128xf32>
    %c2_197 = arith.constant 2 : index
    %c0_198 = arith.constant 0 : index
    %c0_199 = arith.constant 0 : index
    %188 = vector.load %arg10[%c2_197, %c0_198, %c0_199] : memref<7x128x128xf32, #tpu.memory_space<vmem>>, vector<1x128x128xf32>
    %189 = vector.shape_cast %188 : vector<1x128x128xf32> to vector<128x128xf32>
    %cst_200 = arith.constant dense<0.000000e+00> : vector<64x128xf32>
    %190 = tpu.matmul %187, %189, %cst_200 {dimension_numbers = #tpu.dot_dimension_numbers<[1], [0], [0], [1], [0, 0, 1, 1], [], []>} : vector<64x128xf32>, vector<128x128xf32>, vector<64x128xf32> -> vector<64x128xf32>
    %191 = arith.addf %181, %190 : vector<64x128xf32>
    %c9_201 = arith.constant 9 : index
    %c0_202 = arith.constant 0 : index
    %192 = vector.load %arg24[%c9_201, %c0_202] : memref<80x128xf32, #tpu.memory_space<vmem>>, vector<64x128xf32>
    %c3_203 = arith.constant 3 : index
    %c0_204 = arith.constant 0 : index
    %c0_205 = arith.constant 0 : index
    %193 = vector.load %arg10[%c3_203, %c0_204, %c0_205] : memref<7x128x128xf32, #tpu.memory_space<vmem>>, vector<1x128x128xf32>
    %194 = vector.shape_cast %193 : vector<1x128x128xf32> to vector<128x128xf32>
    %cst_206 = arith.constant dense<0.000000e+00> : vector<64x128xf32>
    %195 = tpu.matmul %192, %194, %cst_206 {dimension_numbers = #tpu.dot_dimension_numbers<[1], [0], [0], [1], [0, 0, 1, 1], [], []>} : vector<64x128xf32>, vector<128x128xf32>, vector<64x128xf32> -> vector<64x128xf32>
    %196 = arith.addf %186, %195 : vector<64x128xf32>
    %c10_207 = arith.constant 10 : index
    %c0_208 = arith.constant 0 : index
    %197 = vector.load %arg24[%c10_207, %c0_208] : memref<80x128xf32, #tpu.memory_space<vmem>>, vector<64x128xf32>
    %c4_209 = arith.constant 4 : index
    %c0_210 = arith.constant 0 : index
    %c0_211 = arith.constant 0 : index
    %198 = vector.load %arg10[%c4_209, %c0_210, %c0_211] : memref<7x128x128xf32, #tpu.memory_space<vmem>>, vector<1x128x128xf32>
    %199 = vector.shape_cast %198 : vector<1x128x128xf32> to vector<128x128xf32>
    %cst_212 = arith.constant dense<0.000000e+00> : vector<64x128xf32>
    %200 = tpu.matmul %197, %199, %cst_212 {dimension_numbers = #tpu.dot_dimension_numbers<[1], [0], [0], [1], [0, 0, 1, 1], [], []>} : vector<64x128xf32>, vector<128x128xf32>, vector<64x128xf32> -> vector<64x128xf32>
    %201 = arith.addf %191, %200 : vector<64x128xf32>
    %c11_213 = arith.constant 11 : index
    %c0_214 = arith.constant 0 : index
    %202 = vector.load %arg24[%c11_213, %c0_214] : memref<80x128xf32, #tpu.memory_space<vmem>>, vector<64x128xf32>
    %c5_215 = arith.constant 5 : index
    %c0_216 = arith.constant 0 : index
    %c0_217 = arith.constant 0 : index
    %203 = vector.load %arg10[%c5_215, %c0_216, %c0_217] : memref<7x128x128xf32, #tpu.memory_space<vmem>>, vector<1x128x128xf32>
    %204 = vector.shape_cast %203 : vector<1x128x128xf32> to vector<128x128xf32>
    %cst_218 = arith.constant dense<0.000000e+00> : vector<64x128xf32>
    %205 = tpu.matmul %202, %204, %cst_218 {dimension_numbers = #tpu.dot_dimension_numbers<[1], [0], [0], [1], [0, 0, 1, 1], [], []>} : vector<64x128xf32>, vector<128x128xf32>, vector<64x128xf32> -> vector<64x128xf32>
    %206 = arith.addf %196, %205 : vector<64x128xf32>
    %c12_219 = arith.constant 12 : index
    %c0_220 = arith.constant 0 : index
    %207 = vector.load %arg24[%c12_219, %c0_220] : memref<80x128xf32, #tpu.memory_space<vmem>>, vector<64x128xf32>
    %c6_221 = arith.constant 6 : index
    %c0_222 = arith.constant 0 : index
    %c0_223 = arith.constant 0 : index
    %208 = vector.load %arg10[%c6_221, %c0_222, %c0_223] : memref<7x128x128xf32, #tpu.memory_space<vmem>>, vector<1x128x128xf32>
    %209 = vector.shape_cast %208 : vector<1x128x128xf32> to vector<128x128xf32>
    %cst_224 = arith.constant dense<0.000000e+00> : vector<64x128xf32>
    %210 = tpu.matmul %207, %209, %cst_224 {dimension_numbers = #tpu.dot_dimension_numbers<[1], [0], [0], [1], [0, 0, 1, 1], [], []>} : vector<64x128xf32>, vector<128x128xf32>, vector<64x128xf32> -> vector<64x128xf32>
    %211 = arith.addf %201, %210 : vector<64x128xf32>
    %212 = arith.addf %211, %206 : vector<64x128xf32>
    %213 = vector.broadcast %174 : vector<1x128xf32> to vector<64x128xf32>
    %214 = arith.addf %212, %213 : vector<64x128xf32>
    %cst_225 = arith.constant 0.000000e+00 : f32
    %215 = vector.broadcast %cst_225 : f32 to vector<64x128xf32>
    %216 = arith.maximumf %214, %215 : vector<64x128xf32>
    %c4_226 = arith.constant 4 : index
    %c0_227 = arith.constant 0 : index
    %c0_228 = arith.constant 0 : index
    %217 = vector.load %arg0[%c4_226, %c0_227, %c0_228] : memref<5x64x128xf32, #tpu.memory_space<vmem>>, vector<1x64x128xf32>
    %218 = vector.shape_cast %217 : vector<1x64x128xf32> to vector<64x128xf32>
    %219 = arith.mulf %216, %218 : vector<64x128xf32>
    %c8_229 = arith.constant 8 : index
    %c0_230 = arith.constant 0 : index
    %220 = vector.load %arg23[%c8_229, %c0_230] : memref<80x128xf32, #tpu.memory_space<vmem>>, vector<64x128xf32>
    tpu.vector_store %arg23[%c8_229, %c0_230], %219 {strides = array<i32>} : memref<80x128xf32, #tpu.memory_space<vmem>>, vector<64x128xf32>,
    %c0_231 = arith.constant 0 : index
    %c0_232 = arith.constant 0 : index
    %221 = vector.load %arg13[%c0_231, %c0_232] : memref<1x128xf32, #tpu.memory_space<vmem>>, vector<1x128xf32>
    %cst_233 = arith.constant 0.000000e+00 : f32
    %222 = vector.broadcast %cst_233 : f32 to vector<64x128xf32>
    %cst_234 = arith.constant 0.000000e+00 : f32
    %223 = vector.broadcast %cst_234 : f32 to vector<64x128xf32>
    %c6_235 = arith.constant 6 : index
    %c0_236 = arith.constant 0 : index
    %224 = vector.load %arg23[%c6_235, %c0_236] : memref<80x128xf32, #tpu.memory_space<vmem>>, vector<64x128xf32>
    %c0_237 = arith.constant 0 : index
    %c0_238 = arith.constant 0 : index
    %c0_239 = arith.constant 0 : index
    %225 = vector.load %arg12[%c0_237, %c0_238, %c0_239] : memref<9x128x128xf32, #tpu.memory_space<vmem>>, vector<1x128x128xf32>
    %226 = vector.shape_cast %225 : vector<1x128x128xf32> to vector<128x128xf32>
    %cst_240 = arith.constant dense<0.000000e+00> : vector<64x128xf32>
    %227 = tpu.matmul %224, %226, %cst_240 {dimension_numbers = #tpu.dot_dimension_numbers<[1], [0], [0], [1], [0, 0, 1, 1], [], []>} : vector<64x128xf32>, vector<128x128xf32>, vector<64x128xf32> -> vector<64x128xf32>
    %228 = arith.addf %222, %227 : vector<64x128xf32>
    %c7_241 = arith.constant 7 : index
    %c0_242 = arith.constant 0 : index
    %229 = vector.load %arg23[%c7_241, %c0_242] : memref<80x128xf32, #tpu.memory_space<vmem>>, vector<64x128xf32>
    %c1_243 = arith.constant 1 : index
    %c0_244 = arith.constant 0 : index
    %c0_245 = arith.constant 0 : index
    %230 = vector.load %arg12[%c1_243, %c0_244, %c0_245] : memref<9x128x128xf32, #tpu.memory_space<vmem>>, vector<1x128x128xf32>
    %231 = vector.shape_cast %230 : vector<1x128x128xf32> to vector<128x128xf32>
    %cst_246 = arith.constant dense<0.000000e+00> : vector<64x128xf32>
    %232 = tpu.matmul %229, %231, %cst_246 {dimension_numbers = #tpu.dot_dimension_numbers<[1], [0], [0], [1], [0, 0, 1, 1], [], []>} : vector<64x128xf32>, vector<128x128xf32>, vector<64x128xf32> -> vector<64x128xf32>
    %233 = arith.addf %223, %232 : vector<64x128xf32>
    %c8_247 = arith.constant 8 : index
    %c0_248 = arith.constant 0 : index
    %234 = vector.load %arg23[%c8_247, %c0_248] : memref<80x128xf32, #tpu.memory_space<vmem>>, vector<64x128xf32>
    %c2_249 = arith.constant 2 : index
    %c0_250 = arith.constant 0 : index
    %c0_251 = arith.constant 0 : index
    %235 = vector.load %arg12[%c2_249, %c0_250, %c0_251] : memref<9x128x128xf32, #tpu.memory_space<vmem>>, vector<1x128x128xf32>
    %236 = vector.shape_cast %235 : vector<1x128x128xf32> to vector<128x128xf32>
    %cst_252 = arith.constant dense<0.000000e+00> : vector<64x128xf32>
    %237 = tpu.matmul %234, %236, %cst_252 {dimension_numbers = #tpu.dot_dimension_numbers<[1], [0], [0], [1], [0, 0, 1, 1], [], []>} : vector<64x128xf32>, vector<128x128xf32>, vector<64x128xf32> -> vector<64x128xf32>
    %238 = arith.addf %228, %237 : vector<64x128xf32>
    %c9_253 = arith.constant 9 : index
    %c0_254 = arith.constant 0 : index
    %239 = vector.load %arg23[%c9_253, %c0_254] : memref<80x128xf32, #tpu.memory_space<vmem>>, vector<64x128xf32>
    %c3_255 = arith.constant 3 : index
    %c0_256 = arith.constant 0 : index
    %c0_257 = arith.constant 0 : index
    %240 = vector.load %arg12[%c3_255, %c0_256, %c0_257] : memref<9x128x128xf32, #tpu.memory_space<vmem>>, vector<1x128x128xf32>
    %241 = vector.shape_cast %240 : vector<1x128x128xf32> to vector<128x128xf32>
    %cst_258 = arith.constant dense<0.000000e+00> : vector<64x128xf32>
    %242 = tpu.matmul %239, %241, %cst_258 {dimension_numbers = #tpu.dot_dimension_numbers<[1], [0], [0], [1], [0, 0, 1, 1], [], []>} : vector<64x128xf32>, vector<128x128xf32>, vector<64x128xf32> -> vector<64x128xf32>
    %243 = arith.addf %233, %242 : vector<64x128xf32>
    %c10_259 = arith.constant 10 : index
    %c0_260 = arith.constant 0 : index
    %244 = vector.load %arg23[%c10_259, %c0_260] : memref<80x128xf32, #tpu.memory_space<vmem>>, vector<64x128xf32>
    %c4_261 = arith.constant 4 : index
    %c0_262 = arith.constant 0 : index
    %c0_263 = arith.constant 0 : index
    %245 = vector.load %arg12[%c4_261, %c0_262, %c0_263] : memref<9x128x128xf32, #tpu.memory_space<vmem>>, vector<1x128x128xf32>
    %246 = vector.shape_cast %245 : vector<1x128x128xf32> to vector<128x128xf32>
    %cst_264 = arith.constant dense<0.000000e+00> : vector<64x128xf32>
    %247 = tpu.matmul %244, %246, %cst_264 {dimension_numbers = #tpu.dot_dimension_numbers<[1], [0], [0], [1], [0, 0, 1, 1], [], []>} : vector<64x128xf32>, vector<128x128xf32>, vector<64x128xf32> -> vector<64x128xf32>
    %248 = arith.addf %238, %247 : vector<64x128xf32>
    %c11_265 = arith.constant 11 : index
    %c0_266 = arith.constant 0 : index
    %249 = vector.load %arg23[%c11_265, %c0_266] : memref<80x128xf32, #tpu.memory_space<vmem>>, vector<64x128xf32>
    %c5_267 = arith.constant 5 : index
    %c0_268 = arith.constant 0 : index
    %c0_269 = arith.constant 0 : index
    %250 = vector.load %arg12[%c5_267, %c0_268, %c0_269] : memref<9x128x128xf32, #tpu.memory_space<vmem>>, vector<1x128x128xf32>
    %251 = vector.shape_cast %250 : vector<1x128x128xf32> to vector<128x128xf32>
    %cst_270 = arith.constant dense<0.000000e+00> : vector<64x128xf32>
    %252 = tpu.matmul %249, %251, %cst_270 {dimension_numbers = #tpu.dot_dimension_numbers<[1], [0], [0], [1], [0, 0, 1, 1], [], []>} : vector<64x128xf32>, vector<128x128xf32>, vector<64x128xf32> -> vector<64x128xf32>
    %253 = arith.addf %243, %252 : vector<64x128xf32>
    %c12_271 = arith.constant 12 : index
    %c0_272 = arith.constant 0 : index
    %254 = vector.load %arg23[%c12_271, %c0_272] : memref<80x128xf32, #tpu.memory_space<vmem>>, vector<64x128xf32>
    %c6_273 = arith.constant 6 : index
    %c0_274 = arith.constant 0 : index
    %c0_275 = arith.constant 0 : index
    %255 = vector.load %arg12[%c6_273, %c0_274, %c0_275] : memref<9x128x128xf32, #tpu.memory_space<vmem>>, vector<1x128x128xf32>
    %256 = vector.shape_cast %255 : vector<1x128x128xf32> to vector<128x128xf32>
    %cst_276 = arith.constant dense<0.000000e+00> : vector<64x128xf32>
    %257 = tpu.matmul %254, %256, %cst_276 {dimension_numbers = #tpu.dot_dimension_numbers<[1], [0], [0], [1], [0, 0, 1, 1], [], []>} : vector<64x128xf32>, vector<128x128xf32>, vector<64x128xf32> -> vector<64x128xf32>
    %258 = arith.addf %248, %257 : vector<64x128xf32>
    %c13 = arith.constant 13 : index
    %c0_277 = arith.constant 0 : index
    %259 = vector.load %arg23[%c13, %c0_277] : memref<80x128xf32, #tpu.memory_space<vmem>>, vector<64x128xf32>
    %c7_278 = arith.constant 7 : index
    %c0_279 = arith.constant 0 : index
    %c0_280 = arith.constant 0 : index
    %260 = vector.load %arg12[%c7_278, %c0_279, %c0_280] : memref<9x128x128xf32, #tpu.memory_space<vmem>>, vector<1x128x128xf32>
    %261 = vector.shape_cast %260 : vector<1x128x128xf32> to vector<128x128xf32>
    %cst_281 = arith.constant dense<0.000000e+00> : vector<64x128xf32>
    %262 = tpu.matmul %259, %261, %cst_281 {dimension_numbers = #tpu.dot_dimension_numbers<[1], [0], [0], [1], [0, 0, 1, 1], [], []>} : vector<64x128xf32>, vector<128x128xf32>, vector<64x128xf32> -> vector<64x128xf32>
    %263 = arith.addf %253, %262 : vector<64x128xf32>
    %c14 = arith.constant 14 : index
    %c0_282 = arith.constant 0 : index
    %264 = vector.load %arg23[%c14, %c0_282] : memref<80x128xf32, #tpu.memory_space<vmem>>, vector<64x128xf32>
    %c8_283 = arith.constant 8 : index
    %c0_284 = arith.constant 0 : index
    %c0_285 = arith.constant 0 : index
    %265 = vector.load %arg12[%c8_283, %c0_284, %c0_285] : memref<9x128x128xf32, #tpu.memory_space<vmem>>, vector<1x128x128xf32>
    %266 = vector.shape_cast %265 : vector<1x128x128xf32> to vector<128x128xf32>
    %cst_286 = arith.constant dense<0.000000e+00> : vector<64x128xf32>
    %267 = tpu.matmul %264, %266, %cst_286 {dimension_numbers = #tpu.dot_dimension_numbers<[1], [0], [0], [1], [0, 0, 1, 1], [], []>} : vector<64x128xf32>, vector<128x128xf32>, vector<64x128xf32> -> vector<64x128xf32>
    %268 = arith.addf %258, %267 : vector<64x128xf32>
    %269 = arith.addf %268, %263 : vector<64x128xf32>
    %270 = vector.broadcast %221 : vector<1x128xf32> to vector<64x128xf32>
    %271 = arith.addf %269, %270 : vector<64x128xf32>
    %cst_287 = arith.constant 0.000000e+00 : f32
    %272 = vector.broadcast %cst_287 : f32 to vector<64x128xf32>
    %273 = arith.maximumf %271, %272 : vector<64x128xf32>
    %274 = vector.extract_strided_slice %273 {offsets = [8, 0], sizes = [1, 128], strides = [1, 1]} : vector<64x128xf32> to vector<1x128xf32>
    %c0_288 = arith.constant 0 : index
    %c0_289 = arith.constant 0 : index
    %275 = vector.load %arg25[%c0_288, %c0_289] : memref<8x768xf32, #tpu.memory_space<vmem>>, vector<1x128xf32>
    tpu.vector_store %arg25[%c0_288, %c0_289], %274 {strides = array<i32>} : memref<8x768xf32, #tpu.memory_space<vmem>>, vector<1x128xf32>,
    %276 = vector.extract_strided_slice %273 {offsets = [9, 0], sizes = [1, 128], strides = [1, 1]} : vector<64x128xf32> to vector<1x128xf32>
    %c0_290 = arith.constant 0 : index
    %c128 = arith.constant 128 : index
    %277 = vector.load %arg25[%c0_290, %c128] : memref<8x768xf32, #tpu.memory_space<vmem>>, vector<1x128xf32>
    tpu.vector_store %arg25[%c0_290, %c128], %276 {strides = array<i32>} : memref<8x768xf32, #tpu.memory_space<vmem>>, vector<1x128xf32>,
    %278 = vector.extract_strided_slice %273 {offsets = [10, 0], sizes = [1, 128], strides = [1, 1]} : vector<64x128xf32> to vector<1x128xf32>
    %c0_291 = arith.constant 0 : index
    %c256 = arith.constant 256 : index
    %279 = vector.load %arg25[%c0_291, %c256] : memref<8x768xf32, #tpu.memory_space<vmem>>, vector<1x128xf32>
    tpu.vector_store %arg25[%c0_291, %c256], %278 {strides = array<i32>} : memref<8x768xf32, #tpu.memory_space<vmem>>, vector<1x128xf32>,
    %280 = vector.extract_strided_slice %273 {offsets = [11, 0], sizes = [1, 128], strides = [1, 1]} : vector<64x128xf32> to vector<1x128xf32>
    %c0_292 = arith.constant 0 : index
    %c384 = arith.constant 384 : index
    %281 = vector.load %arg25[%c0_292, %c384] : memref<8x768xf32, #tpu.memory_space<vmem>>, vector<1x128xf32>
    tpu.vector_store %arg25[%c0_292, %c384], %280 {strides = array<i32>} : memref<8x768xf32, #tpu.memory_space<vmem>>, vector<1x128xf32>,
    %282 = vector.extract_strided_slice %273 {offsets = [12, 0], sizes = [1, 128], strides = [1, 1]} : vector<64x128xf32> to vector<1x128xf32>
    %c0_293 = arith.constant 0 : index
    %c512 = arith.constant 512 : index
    %283 = vector.load %arg25[%c0_293, %c512] : memref<8x768xf32, #tpu.memory_space<vmem>>, vector<1x128xf32>
    tpu.vector_store %arg25[%c0_293, %c512], %282 {strides = array<i32>} : memref<8x768xf32, #tpu.memory_space<vmem>>, vector<1x128xf32>,
    %284 = vector.extract_strided_slice %273 {offsets = [13, 0], sizes = [1, 128], strides = [1, 1]} : vector<64x128xf32> to vector<1x128xf32>
    %c0_294 = arith.constant 0 : index
    %c640 = arith.constant 640 : index
    %285 = vector.load %arg25[%c0_294, %c640] : memref<8x768xf32, #tpu.memory_space<vmem>>, vector<1x128xf32>
    tpu.vector_store %arg25[%c0_294, %c640], %284 {strides = array<i32>} : memref<8x768xf32, #tpu.memory_space<vmem>>, vector<1x128xf32>,
    %286 = vector.extract_strided_slice %273 {offsets = [40, 0], sizes = [1, 128], strides = [1, 1]} : vector<64x128xf32> to vector<1x128xf32>
    %c1_295 = arith.constant 1 : index
    %c0_296 = arith.constant 0 : index
    %287 = vector.load %arg25[%c1_295, %c0_296] : memref<8x768xf32, #tpu.memory_space<vmem>>, vector<1x128xf32>
    tpu.vector_store %arg25[%c1_295, %c0_296], %286 {strides = array<i32>} : memref<8x768xf32, #tpu.memory_space<vmem>>, vector<1x128xf32>,
    %288 = vector.extract_strided_slice %273 {offsets = [41, 0], sizes = [1, 128], strides = [1, 1]} : vector<64x128xf32> to vector<1x128xf32>
    %c1_297 = arith.constant 1 : index
    %c128_298 = arith.constant 128 : index
    %289 = vector.load %arg25[%c1_297, %c128_298] : memref<8x768xf32, #tpu.memory_space<vmem>>, vector<1x128xf32>
    tpu.vector_store %arg25[%c1_297, %c128_298], %288 {strides = array<i32>} : memref<8x768xf32, #tpu.memory_space<vmem>>, vector<1x128xf32>,
    %290 = vector.extract_strided_slice %273 {offsets = [42, 0], sizes = [1, 128], strides = [1, 1]} : vector<64x128xf32> to vector<1x128xf32>
    %c1_299 = arith.constant 1 : index
    %c256_300 = arith.constant 256 : index
    %291 = vector.load %arg25[%c1_299, %c256_300] : memref<8x768xf32, #tpu.memory_space<vmem>>, vector<1x128xf32>
    tpu.vector_store %arg25[%c1_299, %c256_300], %290 {strides = array<i32>} : memref<8x768xf32, #tpu.memory_space<vmem>>, vector<1x128xf32>,
    %292 = vector.extract_strided_slice %273 {offsets = [43, 0], sizes = [1, 128], strides = [1, 1]} : vector<64x128xf32> to vector<1x128xf32>
    %c1_301 = arith.constant 1 : index
    %c384_302 = arith.constant 384 : index
    %293 = vector.load %arg25[%c1_301, %c384_302] : memref<8x768xf32, #tpu.memory_space<vmem>>, vector<1x128xf32>
    tpu.vector_store %arg25[%c1_301, %c384_302], %292 {strides = array<i32>} : memref<8x768xf32, #tpu.memory_space<vmem>>, vector<1x128xf32>,
    %294 = vector.extract_strided_slice %273 {offsets = [44, 0], sizes = [1, 128], strides = [1, 1]} : vector<64x128xf32> to vector<1x128xf32>
    %c1_303 = arith.constant 1 : index
    %c512_304 = arith.constant 512 : index
    %295 = vector.load %arg25[%c1_303, %c512_304] : memref<8x768xf32, #tpu.memory_space<vmem>>, vector<1x128xf32>
    tpu.vector_store %arg25[%c1_303, %c512_304], %294 {strides = array<i32>} : memref<8x768xf32, #tpu.memory_space<vmem>>, vector<1x128xf32>,
    %296 = vector.extract_strided_slice %273 {offsets = [45, 0], sizes = [1, 128], strides = [1, 1]} : vector<64x128xf32> to vector<1x128xf32>
    %c1_305 = arith.constant 1 : index
    %c640_306 = arith.constant 640 : index
    %297 = vector.load %arg25[%c1_305, %c640_306] : memref<8x768xf32, #tpu.memory_space<vmem>>, vector<1x128xf32>
    tpu.vector_store %arg25[%c1_305, %c640_306], %296 {strides = array<i32>} : memref<8x768xf32, #tpu.memory_space<vmem>>, vector<1x128xf32>,
    %c0_307 = arith.constant 0 : index
    %c0_308 = arith.constant 0 : index
    %298 = vector.load %arg25[%c0_307, %c0_308] : memref<8x768xf32, #tpu.memory_space<vmem>>, vector<8x768xf32>
    %c0_309 = arith.constant 0 : index
    %c0_310 = arith.constant 0 : index
    %299 = vector.load %arg14[%c0_309, %c0_310] : memref<768x128xf32, #tpu.memory_space<vmem>>, vector<768x128xf32>
    %cst_311 = arith.constant dense<0.000000e+00> : vector<8x128xf32>
    %300 = tpu.matmul %298, %299, %cst_311 {dimension_numbers = #tpu.dot_dimension_numbers<[1], [0], [0], [1], [0, 0, 1, 1], [], []>} : vector<8x768xf32>, vector<768x128xf32>, vector<8x128xf32> -> vector<8x128xf32>
    %c0_312 = arith.constant 0 : index
    %c0_313 = arith.constant 0 : index
    %301 = vector.load %arg15[%c0_312, %c0_313] : memref<1x128xf32, #tpu.memory_space<vmem>>, vector<1x128xf32>
    %302 = vector.broadcast %301 : vector<1x128xf32> to vector<8x128xf32>
    %303 = arith.addf %300, %302 : vector<8x128xf32>
    %cst_314 = arith.constant 0.000000e+00 : f32
    %304 = vector.broadcast %cst_314 : f32 to vector<8x128xf32>
    %305 = arith.maximumf %303, %304 : vector<8x128xf32>
    %c0_315 = arith.constant 0 : index
    %c0_316 = arith.constant 0 : index
    %306 = vector.load %arg16[%c0_315, %c0_316] : memref<128x128xf32, #tpu.memory_space<vmem>>, vector<128x128xf32>
    %cst_317 = arith.constant dense<0.000000e+00> : vector<8x128xf32>
    %307 = tpu.matmul %305, %306, %cst_317 {dimension_numbers = #tpu.dot_dimension_numbers<[1], [0], [0], [1], [0, 0, 1, 1], [], []>} : vector<8x128xf32>, vector<128x128xf32>, vector<8x128xf32> -> vector<8x128xf32>
    %c0_318 = arith.constant 0 : index
    %c0_319 = arith.constant 0 : index
    %308 = vector.load %arg17[%c0_318, %c0_319] : memref<1x128xf32, #tpu.memory_space<vmem>>, vector<1x128xf32>
    %309 = vector.broadcast %308 : vector<1x128xf32> to vector<8x128xf32>
    %310 = arith.addf %307, %309 : vector<8x128xf32>
    %cst_320 = arith.constant 0.000000e+00 : f32
    %311 = vector.broadcast %cst_320 : f32 to vector<8x128xf32>
    %312 = arith.maximumf %310, %311 : vector<8x128xf32>
    %c0_321 = arith.constant 0 : index
    %c0_322 = arith.constant 0 : index
    %313 = vector.load %arg18[%c0_321, %c0_322] : memref<128x256xf32, #tpu.memory_space<vmem>>, vector<128x256xf32>
    %cst_323 = arith.constant dense<0.000000e+00> : vector<8x256xf32>
    %314 = tpu.matmul %312, %313, %cst_323 {dimension_numbers = #tpu.dot_dimension_numbers<[1], [0], [0], [1], [0, 0, 1, 1], [], []>} : vector<8x128xf32>, vector<128x256xf32>, vector<8x256xf32> -> vector<8x256xf32>
    %c0_324 = arith.constant 0 : index
    %c0_325 = arith.constant 0 : index
    %315 = vector.load %arg19[%c0_324, %c0_325] : memref<1x256xf32, #tpu.memory_space<vmem>>, vector<1x256xf32>
    %316 = vector.broadcast %315 : vector<1x256xf32> to vector<8x256xf32>
    %317 = arith.addf %314, %316 : vector<8x256xf32>
    %cst_326 = arith.constant 0.000000e+00 : f32
    %318 = vector.broadcast %cst_326 : f32 to vector<8x256xf32>
    %319 = arith.maximumf %317, %318 : vector<8x256xf32>
    %c0_327 = arith.constant 0 : index
    %c0_328 = arith.constant 0 : index
    %320 = vector.load %arg20[%c0_327, %c0_328] : memref<256x128xf32, #tpu.memory_space<vmem>>, vector<256x128xf32>
    %cst_329 = arith.constant dense<0.000000e+00> : vector<8x128xf32>
    %321 = tpu.matmul %319, %320, %cst_329 {dimension_numbers = #tpu.dot_dimension_numbers<[1], [0], [0], [1], [0, 0, 1, 1], [], []>} : vector<8x256xf32>, vector<256x128xf32>, vector<8x128xf32> -> vector<8x128xf32>
    %c0_330 = arith.constant 0 : index
    %c0_331 = arith.constant 0 : index
    %322 = vector.load %arg21[%c0_330, %c0_331] : memref<1x128xf32, #tpu.memory_space<vmem>>, vector<1x128xf32>
    %323 = vector.broadcast %322 : vector<1x128xf32> to vector<8x128xf32>
    %324 = arith.addf %321, %323 : vector<8x128xf32>
    %c0_332 = arith.constant 0 : index
    %c0_333 = arith.constant 0 : index
    %325 = vector.load %arg22[%c0_332, %c0_333] : memref<8x128xf32, #tpu.memory_space<vmem>>, vector<8x128xf32>
    tpu.vector_store %arg22[%c0_332, %c0_333], %324 {strides = array<i32>} : memref<8x128xf32, #tpu.memory_space<vmem>>, vector<8x128xf32>,
    return
  }
}

</mosaic_0001>

<llo_original>
// kernel: dqn_forward.1
$region0: #{dqn_forward.1}
  #allocation0 [shape = 'u32[]', space=smem, size = 0x4, offset = 0x4, fixed_abs, tag = 'smem constant byte address 0x4 - core index']
  #allocation1 [shape = 'u32[72,128]{1,0:T(1,128)}', space=vmem, size = 0x9000, scoped, tag = 'internal scratch']
  #allocation2 [shape = 'f32[80,128]{1,0:T(8,128)}', space=vmem, size = 0xa000, scoped, tag = 'scratch operand']
  #allocation3 [shape = 'f32[80,128]{1,0:T(8,128)}', space=vmem, size = 0xa000, scoped, tag = 'scratch operand']
  #allocation4 [shape = 'f32[8,768]{1,0:T(8,128)}', space=vmem, size = 0x6000, scoped, tag = 'scratch operand']
  %s0 = inlined_call_operand.hbm [shape: f32[5,64,128], index: 0, kind: input, shape index: {}]
  %s1 = inlined_call_operand.vmem [shape: f32[80,128], index: 1, kind: input, shape index: {}]
  %s2 = inlined_call_operand.hbm [shape: f32[5,128,128], index: 2, kind: input, shape index: {}]
  %s3 = inlined_call_operand.vmem [shape: f32[1,128], index: 3, kind: input, shape index: {}]
  %s4 = inlined_call_operand.hbm [shape: f32[5,128,128], index: 4, kind: input, shape index: {}]
  %s5 = inlined_call_operand.vmem [shape: f32[1,128], index: 5, kind: input, shape index: {}]
  %s6 = inlined_call_operand.hbm [shape: f32[7,128,128], index: 6, kind: input, shape index: {}]
  %s7 = inlined_call_operand.vmem [shape: f32[1,128], index: 7, kind: input, shape index: {}]
  %s8 = inlined_call_operand.hbm [shape: f32[7,128,128], index: 8, kind: input, shape index: {}]
  %s9 = inlined_call_operand.vmem [shape: f32[1,128], index: 9, kind: input, shape index: {}]
  %s10 = inlined_call_operand.hbm [shape: f32[7,128,128], index: 10, kind: input, shape index: {}]
  %s11 = inlined_call_operand.vmem [shape: f32[1,128], index: 11, kind: input, shape index: {}]
  %s12 = inlined_call_operand.hbm [shape: f32[9,128,128], index: 12, kind: input, shape index: {}]
  %s13 = inlined_call_operand.vmem [shape: f32[1,128], index: 13, kind: input, shape index: {}]
  %s14 = inlined_call_operand.hbm [shape: f32[768,128], index: 14, kind: input, shape index: {}]
  %s15 = inlined_call_operand.vmem [shape: f32[1,128], index: 15, kind: input, shape index: {}]
  %s16 = inlined_call_operand.hbm [shape: f32[128,128], index: 16, kind: input, shape index: {}]
  %s17 = inlined_call_operand.vmem [shape: f32[1,128], index: 17, kind: input, shape index: {}]
  %s18 = inlined_call_operand.vmem [shape: f32[128,256], index: 18, kind: input, shape index: {}]
  %s19 = inlined_call_operand.vmem [shape: f32[1,256], index: 19, kind: input, shape index: {}]
  %s20 = inlined_call_operand.hbm [shape: f32[256,128], index: 20, kind: input, shape index: {}]
  %s21 = inlined_call_operand.vmem [shape: f32[1,128], index: 21, kind: input, shape index: {}]
  %s22 = inlined_call_operand.vmem [shape: f32[8,128], index: 22, kind: output, shape index: {}]
  %s23 = sld [smem:[#allocation0]]
  $region138: #{dqn_forward.1} parent=0
    _
  %s25 = ssub.s32 1, %s23
  %s26 = scalar_select 0, %s25, %s23
  $region1: #{dqn_forward.1} parent=0
    #allocation5 [shape = 'u8[163840]{0}', space=vmem, size = 0x28000, scoped, tag = 'input window, operand 0, single buffered']
    #allocation6 [shape = 's32[1]{0}', space=sflag, size = 0x4, scoped, tag = 'scoped memory for dqn_forward.1']
    #allocation7 [shape = 'u8[327680]{0}', space=vmem, size = 0x50000, scoped, tag = 'input window, operand 2, single buffered']
    #allocation8 [shape = 's32[1]{0}', space=sflag, size = 0x4, scoped, tag = 'scoped memory for dqn_forward.1']
    #allocation9 [shape = 'u8[327680]{0}', space=vmem, size = 0x50000, scoped, tag = 'input window, operand 4, single buffered']
    #allocation10 [shape = 'u8[458752]{0}', space=vmem, size = 0x70000, scoped, tag = 'input window, operand 6, single buffered']
    #allocation11 [shape = 's32[1]{0}', space=sflag, size = 0x4, scoped, tag = 'scoped memory for dqn_forward.1']
    #allocation12 [shape = 'u8[458752]{0}', space=vmem, size = 0x70000, scoped, tag = 'input window, operand 8, single buffered']
    #allocation13 [shape = 'u8[458752]{0}', space=vmem, size = 0x70000, scoped, tag = 'input window, operand 10, single buffered']
    #allocation14 [shape = 's32[1]{0}', space=sflag, size = 0x4, scoped, tag = 'scoped memory for dqn_forward.1']
    #allocation15 [shape = 'u8[589824]{0}', space=vmem, size = 0x90000, scoped, tag = 'input window, operand 12, single buffered']
    #allocation16 [shape = 'u8[393216]{0}', space=vmem, size = 0x60000, scoped, tag = 'input window, operand 14, single buffered']
    #allocation17 [shape = 's32[1]{0}', space=sflag, size = 0x4, scoped, tag = 'scoped memory for dqn_forward.1']
    #allocation18 [shape = 'u8[65536]{0}', space=vmem, size = 0x10000, scoped, tag = 'input window, operand 16, single buffered']
    #allocation19 [shape = 'u8[131072]{0}', space=vmem, size = 0x20000, scoped, tag = 'input window, operand 20, single buffered']
    #allocation20 [shape = 's32[1]{0}', space=sflag, size = 0x4, scoped, tag = 'scoped memory for dqn_forward.1']
    %27 = vsyncpa [#allocation6], 0
    %28 = vsyncpa [#allocation8], 0
    %29 = vsyncpa [#allocation11], 0
    %30 = vsyncpa [#allocation14], 0
    %31 = vsyncpa [#allocation17], 0
    %32 = vsyncpa [#allocation20], 0
    // Predicated region
    $region2: #{dqn_forward.1} parent=1 // pred_check
      _
    $region3: #{dqn_forward.1} parent=1 // pred_check_branch
      %34 = sbr.rel (0) target = $region5
    $region4: #{dqn_forward.1} parent=1 // pred_region
      %36 = vsyncadd [#allocation6], 0
      %s37 = sshll.u32 %s0, 4
      %s38 = int_to_ptr.hbm [resolvable:$true] %s37
      %s39 = sshll.u32 [#allocation5], 4
      %s40 = int_to_ptr.vmem [resolvable:$true] %s39
      %45 = dma.hbm_to_vmem [thread:$0]  %s38, 5120, %s40, [#allocation6], 128, 128, 8
    $region5: #{dqn_forward.1} parent=1 // pred_fallthru
      _
    // Predicated region
    $region6: #{dqn_forward.1} parent=1 // pred_check
      _
    $region7: #{dqn_forward.1} parent=1 // pred_check_branch
      %47 = sbr.rel (0) target = $region9
    $region8: #{dqn_forward.1} parent=1 // pred_region
      _
    $region9: #{dqn_forward.1} parent=1 // pred_fallthru
      _
    // Predicated region
    $region10: #{dqn_forward.1} parent=1 // pred_check
      _
    $region11: #{dqn_forward.1} parent=1 // pred_check_branch
      %49 = sbr.rel (0) target = $region13
    $region12: #{dqn_forward.1} parent=1 // pred_region
      %51 = vsyncadd [#allocation8], 0
      %s52 = sshll.u32 %s2, 4
      %s53 = int_to_ptr.hbm [resolvable:$true] %s52
      %s54 = sshll.u32 [#allocation7], 4
      %s55 = int_to_ptr.vmem [resolvable:$true] %s54
      %60 = dma.hbm_to_vmem [thread:$0]  %s53, 10240, %s55, [#allocation8], 128, 128, 8
    $region13: #{dqn_forward.1} parent=1 // pred_fallthru
      _
    // Predicated region
    $region14: #{dqn_forward.1} parent=1 // pred_check
      _
    $region15: #{dqn_forward.1} parent=1 // pred_check_branch
      %62 = sbr.rel (0) target = $region17
    $region16: #{dqn_forward.1} parent=1 // pred_region
      _
    $region17: #{dqn_forward.1} parent=1 // pred_fallthru
      _
    // Predicated region
    $region18: #{dqn_forward.1} parent=1 // pred_check
      _
    $region19: #{dqn_forward.1} parent=1 // pred_check_branch
      %64 = sbr.rel (0) target = $region21
    $region20: #{dqn_forward.1} parent=1 // pred_region
      %66 = vsyncadd [#allocation8], 0
      %s67 = sshll.u32 %s4, 4
      %s68 = int_to_ptr.hbm [resolvable:$true] %s67
      %s69 = sshll.u32 [#allocation9], 4
      %s70 = int_to_ptr.vmem [resolvable:$true] %s69
      %75 = dma.hbm_to_vmem [thread:$0]  %s68, 10240, %s70, [#allocation8], 128, 128, 8
    $region21: #{dqn_forward.1} parent=1 // pred_fallthru
      _
    // Predicated region
    $region22: #{dqn_forward.1} parent=1 // pred_check
      _
    $region23: #{dqn_forward.1} parent=1 // pred_check_branch
      %77 = sbr.rel (0) target = $region25
    $region24: #{dqn_forward.1} parent=1 // pred_region
      _
    $region25: #{dqn_forward.1} parent=1 // pred_fallthru
      _
    // Predicated region
    $region26: #{dqn_forward.1} parent=1 // pred_check
      _
    $region27: #{dqn_forward.1} parent=1 // pred_check_branch
      %79 = sbr.rel (0) target = $region29
    $region28: #{dqn_forward.1} parent=1 // pred_region
      %81 = vsyncadd [#allocation11], 0
      %s82 = sshll.u32 %s6, 4
      %s83 = int_to_ptr.hbm [resolvable:$true] %s82
      %s84 = sshll.u32 [#allocation10], 4
      %s85 = int_to_ptr.vmem [resolvable:$true] %s84
      %90 = dma.hbm_to_vmem [thread:$0]  %s83, 14336, %s85, [#allocation11], 128, 128, 8
    $region29: #{dqn_forward.1} parent=1 // pred_fallthru
      _
    // Predicated region
    $region30: #{dqn_forward.1} parent=1 // pred_check
      _
    $region31: #{dqn_forward.1} parent=1 // pred_check_branch
      %92 = sbr.rel (0) target = $region33
    $region32: #{dqn_forward.1} parent=1 // pred_region
      _
    $region33: #{dqn_forward.1} parent=1 // pred_fallthru
      _
    // Predicated region
    $region34: #{dqn_forward.1} parent=1 // pred_check
      _
    $region35: #{dqn_forward.1} parent=1 // pred_check_branch
      %94 = sbr.rel (0) target = $region37
    $region36: #{dqn_forward.1} parent=1 // pred_region
      %96 = vsyncadd [#allocation11], 0
      %s97 = sshll.u32 %s8, 4
      %s98 = int_to_ptr.hbm [resolvable:$true] %s97
      %s99 = sshll.u32 [#allocation12], 4
      %s100 = int_to_ptr.vmem [resolvable:$true] %s99
      %105 = dma.hbm_to_vmem [thread:$0]  %s98, 14336, %s100, [#allocation11], 128, 128, 8
    $region37: #{dqn_forward.1} parent=1 // pred_fallthru
      _
    // Predicated region
    $region38: #{dqn_forward.1} parent=1 // pred_check
      _
    $region39: #{dqn_forward.1} parent=1 // pred_check_branch
      %107 = sbr.rel (0) target = $region41
    $region40: #{dqn_forward.1} parent=1 // pred_region
      _
    $region41: #{dqn_forward.1} parent=1 // pred_fallthru
      _
    // Predicated region
    $region42: #{dqn_forward.1} parent=1 // pred_check
      _
    $region43: #{dqn_forward.1} parent=1 // pred_check_branch
      %109 = sbr.rel (0) target = $region45
    $region44: #{dqn_forward.1} parent=1 // pred_region
      %111 = vsyncadd [#allocation14], 0
      %s112 = sshll.u32 %s10, 4
      %s113 = int_to_ptr.hbm [resolvable:$true] %s112
      %s114 = sshll.u32 [#allocation13], 4
      %s115 = int_to_ptr.vmem [resolvable:$true] %s114
      %120 = dma.hbm_to_vmem [thread:$0]  %s113, 14336, %s115, [#allocation14], 128, 128, 8
    $region45: #{dqn_forward.1} parent=1 // pred_fallthru
      _
    // Predicated region
    $region46: #{dqn_forward.1} parent=1 // pred_check
      _
    $region47: #{dqn_forward.1} parent=1 // pred_check_branch
      %122 = sbr.rel (0) target = $region49
    $region48: #{dqn_forward.1} parent=1 // pred_region
      _
    $region49: #{dqn_forward.1} parent=1 // pred_fallthru
      _
    // Predicated region
    $region50: #{dqn_forward.1} parent=1 // pred_check
      _
    $region51: #{dqn_forward.1} parent=1 // pred_check_branch
      %124 = sbr.rel (0) target = $region53
    $region52: #{dqn_forward.1} parent=1 // pred_region
      %126 = vsyncadd [#allocation14], 0
      %s127 = sshll.u32 %s12, 4
      %s128 = int_to_ptr.hbm [resolvable:$true] %s127
      %s129 = sshll.u32 [#allocation15], 4
      %s130 = int_to_ptr.vmem [resolvable:$true] %s129
      %135 = dma.hbm_to_vmem [thread:$0]  %s128, 18432, %s130, [#allocation14], 128, 128, 8
    $region53: #{dqn_forward.1} parent=1 // pred_fallthru
      _
    // Predicated region
    $region54: #{dqn_forward.1} parent=1 // pred_check
      _
    $region55: #{dqn_forward.1} parent=1 // pred_check_branch
      %137 = sbr.rel (0) target = $region57
    $region56: #{dqn_forward.1} parent=1 // pred_region
      _
    $region57: #{dqn_forward.1} parent=1 // pred_fallthru
      _
    // Predicated region
    $region58: #{dqn_forward.1} parent=1 // pred_check
      _
    $region59: #{dqn_forward.1} parent=1 // pred_check_branch
      %139 = sbr.rel (0) target = $region61
    $region60: #{dqn_forward.1} parent=1 // pred_region
      %141 = vsyncadd [#allocation17], 0
      %s142 = sshll.u32 %s14, 4
      %s143 = int_to_ptr.hbm [resolvable:$true] %s142
      %s144 = sshll.u32 [#allocation16], 4
      %s145 = int_to_ptr.vmem [resolvable:$true] %s144
      %150 = dma.hbm_to_vmem [thread:$0]  %s143, 12288, %s145, [#allocation17], 128, 128, 8
    $region61: #{dqn_forward.1} parent=1 // pred_fallthru
      _
    // Predicated region
    $region62: #{dqn_forward.1} parent=1 // pred_check
      _
    $region63: #{dqn_forward.1} parent=1 // pred_check_branch
      %152 = sbr.rel (0) target = $region65
    $region64: #{dqn_forward.1} parent=1 // pred_region
      _
    $region65: #{dqn_forward.1} parent=1 // pred_fallthru
      _
    // Predicated region
    $region66: #{dqn_forward.1} parent=1 // pred_check
      _
    $region67: #{dqn_forward.1} parent=1 // pred_check_branch
      %154 = sbr.rel (0) target = $region69
    $region68: #{dqn_forward.1} parent=1 // pred_region
      %156 = vsyncadd [#allocation17], 0
      %s157 = sshll.u32 %s16, 4
      %s158 = int_to_ptr.hbm [resolvable:$true] %s157
      %s159 = sshll.u32 [#allocation18], 4
      %s160 = int_to_ptr.vmem [resolvable:$true] %s159
      %165 = dma.hbm_to_vmem [thread:$0]  %s158, 2048, %s160, [#allocation17], 128, 128, 8
    $region69: #{dqn_forward.1} parent=1 // pred_fallthru
      _
    // Predicated region
    $region70: #{dqn_forward.1} parent=1 // pred_check
      _
    $region71: #{dqn_forward.1} parent=1 // pred_check_branch
      %167 = sbr.rel (0) target = $region73
    $region72: #{dqn_forward.1} parent=1 // pred_region
      _
    $region73: #{dqn_forward.1} parent=1 // pred_fallthru
      _
    // Predicated region
    $region74: #{dqn_forward.1} parent=1 // pred_check
      _
    $region75: #{dqn_forward.1} parent=1 // pred_check_branch
      %169 = sbr.rel (0) target = $region77
    $region76: #{dqn_forward.1} parent=1 // pred_region
      _
    $region77: #{dqn_forward.1} parent=1 // pred_fallthru
      _
    // Predicated region
    $region78: #{dqn_forward.1} parent=1 // pred_check
      _
    $region79: #{dqn_forward.1} parent=1 // pred_check_branch
      %171 = sbr.rel (0) target = $region81
    $region80: #{dqn_forward.1} parent=1 // pred_region
      _
    $region81: #{dqn_forward.1} parent=1 // pred_fallthru
      _
    // Predicated region
    $region82: #{dqn_forward.1} parent=1 // pred_check
      _
    $region83: #{dqn_forward.1} parent=1 // pred_check_branch
      %173 = sbr.rel (0) target = $region85
    $region84: #{dqn_forward.1} parent=1 // pred_region
      %175 = vsyncadd [#allocation20], 0
      %s176 = sshll.u32 %s20, 4
      %s177 = int_to_ptr.hbm [resolvable:$true] %s176
      %s178 = sshll.u32 [#allocation19], 4
      %s179 = int_to_ptr.vmem [resolvable:$true] %s178
      %184 = dma.hbm_to_vmem [thread:$0]  %s177, 4096, %s179, [#allocation20], 128, 128, 8
    $region85: #{dqn_forward.1} parent=1 // pred_fallthru
      _
    // Predicated region
    $region86: #{dqn_forward.1} parent=1 // pred_check
      _
    $region87: #{dqn_forward.1} parent=1 // pred_check_branch
      %186 = sbr.rel (0) target = $region89
    $region88: #{dqn_forward.1} parent=1 // pred_region
      _
    $region89: #{dqn_forward.1} parent=1 // pred_fallthru
      _
    // Predicated region
    $region90: #{dqn_forward.1} parent=1 // pred_check
      _
    $region91: #{dqn_forward.1} parent=1 // pred_check_branch
      %188 = sbr.rel (0) target = $region93
    $region92: #{dqn_forward.1} parent=1 // pred_region
      %190 = dma.done [#allocation6], 5120
    $region93: #{dqn_forward.1} parent=1 // pred_fallthru
      _
    // Predicated region
    $region94: #{dqn_forward.1} parent=1 // pred_check
      _
    $region95: #{dqn_forward.1} parent=1 // pred_check_branch
      %192 = sbr.rel (0) target = $region97
    $region96: #{dqn_forward.1} parent=1 // pred_region
      %194 = dma.done [#allocation8], 10240
    $region97: #{dqn_forward.1} parent=1 // pred_fallthru
      _
    // Predicated region
    $region98: #{dqn_forward.1} parent=1 // pred_check
      _
    $region99: #{dqn_forward.1} parent=1 // pred_check_branch
      %196 = sbr.rel (0) target = $region101
    $region100: #{dqn_forward.1} parent=1 // pred_region
      %198 = dma.done [#allocation8], 10240
    $region101: #{dqn_forward.1} parent=1 // pred_fallthru
      _
    // Predicated region
    $region102: #{dqn_forward.1} parent=1 // pred_check
      _
    $region103: #{dqn_forward.1} parent=1 // pred_check_branch
      %200 = sbr.rel (0) target = $region105
    $region104: #{dqn_forward.1} parent=1 // pred_region
      %202 = dma.done [#allocation11], 14336
    $region105: #{dqn_forward.1} parent=1 // pred_fallthru
      _
    // Predicated region
    $region106: #{dqn_forward.1} parent=1 // pred_check
      _
    $region107: #{dqn_forward.1} parent=1 // pred_check_branch
      %204 = sbr.rel (0) target = $region109
    $region108: #{dqn_forward.1} parent=1 // pred_region
      %206 = dma.done [#allocation11], 14336
    $region109: #{dqn_forward.1} parent=1 // pred_fallthru
      _
    // Predicated region
    $region110: #{dqn_forward.1} parent=1 // pred_check
      _
    $region111: #{dqn_forward.1} parent=1 // pred_check_branch
      %208 = sbr.rel (0) target = $region113
    $region112: #{dqn_forward.1} parent=1 // pred_region
      %210 = dma.done [#allocation14], 14336
    $region113: #{dqn_forward.1} parent=1 // pred_fallthru
      _
    // Predicated region
    $region114: #{dqn_forward.1} parent=1 // pred_check
      _
    $region115: #{dqn_forward.1} parent=1 // pred_check_branch
      %212 = sbr.rel (0) target = $region117
    $region116: #{dqn_forward.1} parent=1 // pred_region
      %214 = dma.done [#allocation14], 18432
    $region117: #{dqn_forward.1} parent=1 // pred_fallthru
      _
    // Predicated region
    $region118: #{dqn_forward.1} parent=1 // pred_check
      _
    $region119: #{dqn_forward.1} parent=1 // pred_check_branch
      %216 = sbr.rel (0) target = $region121
    $region120: #{dqn_forward.1} parent=1 // pred_region
      %218 = dma.done [#allocation17], 12288
    $region121: #{dqn_forward.1} parent=1 // pred_fallthru
      _
    // Predicated region
    $region122: #{dqn_forward.1} parent=1 // pred_check
      _
    $region123: #{dqn_forward.1} parent=1 // pred_check_branch
      %220 = sbr.rel (0) target = $region125
    $region124: #{dqn_forward.1} parent=1 // pred_region
      %222 = dma.done [#allocation17], 2048
    $region125: #{dqn_forward.1} parent=1 // pred_fallthru
      _
    // Predicated region
    $region126: #{dqn_forward.1} parent=1 // pred_check
      _
    $region127: #{dqn_forward.1} parent=1 // pred_check_branch
      %224 = sbr.rel (0) target = $region129
    $region128: #{dqn_forward.1} parent=1 // pred_region
      %226 = dma.done [#allocation20], 4096
    $region129: #{dqn_forward.1} parent=1 // pred_fallthru
      _
    %227 = vst [vmem:[#allocation2] sm:$0xff] 0.0
    %228 = vst [vmem:[#allocation2 + $0x8] sm:$0xff] 0.0
    %229 = vst [vmem:[#allocation2 + $0x10] sm:$0xff] 0.0
    %230 = vst [vmem:[#allocation2 + $0x18] sm:$0xff] 0.0
    %231 = vst [vmem:[#allocation2 + $0x20] sm:$0xff] 0.0
    %232 = vst [vmem:[#allocation2 + $0x28] sm:$0xff] 0.0
    %233 = vst [vmem:[#allocation2 + $0x30] sm:$0xff] 0.0
    %234 = vst [vmem:[#allocation2 + $0x38] sm:$0xff] 0.0
    %235 = vst [vmem:[#allocation2 + $0x40] sm:$0xff] 0.0
    %236 = vst [vmem:[#allocation2 + $0x48] sm:$0xff] 0.0
    %237 = vst [vmem:[#allocation3] sm:$0xff] 0.0
    %238 = vst [vmem:[#allocation3 + $0x8] sm:$0xff] 0.0
    %239 = vst [vmem:[#allocation3 + $0x10] sm:$0xff] 0.0
    %240 = vst [vmem:[#allocation3 + $0x18] sm:$0xff] 0.0
    %241 = vst [vmem:[#allocation3 + $0x20] sm:$0xff] 0.0
    %242 = vst [vmem:[#allocation3 + $0x28] sm:$0xff] 0.0
    %243 = vst [vmem:[#allocation3 + $0x30] sm:$0xff] 0.0
    %244 = vst [vmem:[#allocation3 + $0x38] sm:$0xff] 0.0
    %245 = vst [vmem:[#allocation3 + $0x40] sm:$0xff] 0.0
    %246 = vst [vmem:[#allocation3 + $0x48] sm:$0xff] 0.0
    %247 = vst [vmem:[#allocation4] sm:$0xff] 0.0
    %248 = vst [vmem:[#allocation4 + $0x8] sm:$0xff] 0.0
    %249 = vst [vmem:[#allocation4 + $0x10] sm:$0xff] 0.0
    %250 = vst [vmem:[#allocation4 + $0x18] sm:$0xff] 0.0
    %251 = vst [vmem:[#allocation4 + $0x20] sm:$0xff] 0.0
    %252 = vst [vmem:[#allocation4 + $0x28] sm:$0xff] 0.0
    %v253 = vld [vmem:[%s3] sm:$0x1]
    %v254 = vld [vmem:[%s1 + $0x6] sm:$0xff]
    %v255 = vld [vmem:[%s1 + $0xe] sm:$0xff]
    %v256 = vld [vmem:[%s1 + $0x16] sm:$0xff]
    %v257 = vld [vmem:[%s1 + $0x1e] sm:$0xff]
    %v258 = vld [vmem:[%s1 + $0x26] sm:$0xff]
    %v259 = vld [vmem:[%s1 + $0x2e] sm:$0xff]
    %v260 = vld [vmem:[%s1 + $0x36] sm:$0xff]
    %v261 = vld [vmem:[%s1 + $0x3e] sm:$0xff]
    %v262 = vld [vmem:[#allocation7] sm:$0xff]
    %v263 = vld [vmem:[#allocation7 + $0x8] sm:$0xff]
    %v264 = vld [vmem:[#allocation7 + $0x10] sm:$0xff]
    %v265 = vld [vmem:[#allocation7 + $0x18] sm:$0xff]
    %v266 = vld [vmem:[#allocation7 + $0x20] sm:$0xff]
    %v267 = vld [vmem:[#allocation7 + $0x28] sm:$0xff]
    %v268 = vld [vmem:[#allocation7 + $0x30] sm:$0xff]
    %v269 = vld [vmem:[#allocation7 + $0x38] sm:$0xff]
    %v270 = vld [vmem:[#allocation7 + $0x40] sm:$0xff]
    %v271 = vld [vmem:[#allocation7 + $0x48] sm:$0xff]
    %v272 = vld [vmem:[#allocation7 + $0x50] sm:$0xff]
    %v273 = vld [vmem:[#allocation7 + $0x58] sm:$0xff]
    %v274 = vld [vmem:[#allocation7 + $0x60] sm:$0xff]
    %v275 = vld [vmem:[#allocation7 + $0x68] sm:$0xff]
    %v276 = vld [vmem:[#allocation7 + $0x70] sm:$0xff]
    %v277 = vld [vmem:[#allocation7 + $0x78] sm:$0xff]
    %v278 = vld [vmem:[%s1 + $0x7] sm:$0xff]
    %v279 = vld [vmem:[%s1 + $0xf] sm:$0xff]
    %v280 = vld [vmem:[%s1 + $0x17] sm:$0xff]
    %v281 = vld [vmem:[%s1 + $0x1f] sm:$0xff]
    %v282 = vld [vmem:[%s1 + $0x27] sm:$0xff]
    %v283 = vld [vmem:[%s1 + $0x2f] sm:$0xff]
    %v284 = vld [vmem:[%s1 + $0x37] sm:$0xff]
    %v285 = vld [vmem:[%s1 + $0x3f] sm:$0xff]
    %s286 = scalar_lea.vmem [#allocation7], 128
    %v287 = vld [vmem:[%s286] sm:$0xff]
    %v288 = vld [vmem:[%s286 + $0x8] sm:$0xff]
    %v289 = vld [vmem:[%s286 + $0x10] sm:$0xff]
    %v290 = vld [vmem:[%s286 + $0x18] sm:$0xff]
    %v291 = vld [vmem:[%s286 + $0x20] sm:$0xff]
    %v292 = vld [vmem:[%s286 + $0x28] sm:$0xff]
    %v293 = vld [vmem:[%s286 + $0x30] sm:$0xff]
    %v294 = vld [vmem:[%s286 + $0x38] sm:$0xff]
    %v295 = vld [vmem:[%s286 + $0x40] sm:$0xff]
    %v296 = vld [vmem:[%s286 + $0x48] sm:$0xff]
    %v297 = vld [vmem:[%s286 + $0x50] sm:$0xff]
    %v298 = vld [vmem:[%s286 + $0x58] sm:$0xff]
    %v299 = vld [vmem:[%s286 + $0x60] sm:$0xff]
    %v300 = vld [vmem:[%s286 + $0x68] sm:$0xff]
    %v301 = vld [vmem:[%s286 + $0x70] sm:$0xff]
    %v302 = vld [vmem:[%s286 + $0x78] sm:$0xff]
    %v303 = vld [vmem:[%s1 + $0x8] sm:$0xff]
    %v304 = vld [vmem:[%s1 + $0x10] sm:$0xff]
    %v305 = vld [vmem:[%s1 + $0x18] sm:$0xff]
    %v306 = vld [vmem:[%s1 + $0x20] sm:$0xff]
    %v307 = vld [vmem:[%s1 + $0x28] sm:$0xff]
    %v308 = vld [vmem:[%s1 + $0x30] sm:$0xff]
    %v309 = vld [vmem:[%s1 + $0x38] sm:$0xff]
    %v310 = vld [vmem:[%s1 + $0x40] sm:$0xff]
    %s311 = scalar_lea.vmem [#allocation7], 256
    %v312 = vld [vmem:[%s311] sm:$0xff]
    %v313 = vld [vmem:[%s311 + $0x8] sm:$0xff]
    %v314 = vld [vmem:[%s311 + $0x10] sm:$0xff]
    %v315 = vld [vmem:[%s311 + $0x18] sm:$0xff]
    %v316 = vld [vmem:[%s311 + $0x20] sm:$0xff]
    %v317 = vld [vmem:[%s311 + $0x28] sm:$0xff]
    %v318 = vld [vmem:[%s311 + $0x30] sm:$0xff]
    %v319 = vld [vmem:[%s311 + $0x38] sm:$0xff]
    %v320 = vld [vmem:[%s311 + $0x40] sm:$0xff]
    %v321 = vld [vmem:[%s311 + $0x48] sm:$0xff]
    %v322 = vld [vmem:[%s311 + $0x50] sm:$0xff]
    %v323 = vld [vmem:[%s311 + $0x58] sm:$0xff]
    %v324 = vld [vmem:[%s311 + $0x60] sm:$0xff]
    %v325 = vld [vmem:[%s311 + $0x68] sm:$0xff]
    %v326 = vld [vmem:[%s311 + $0x70] sm:$0xff]
    %v327 = vld [vmem:[%s311 + $0x78] sm:$0xff]
    %328 = vmatpush.msra.mxu0 %v327
    %329 = vmatpush.msra.mxu0 %v326
    %330 = vmatpush.msra.mxu0 %v325
    %331 = vmatpush.msra.mxu0 %v324
    %332 = vmatpush.msra.mxu0 %v323
    %333 = vmatpush.msra.mxu0 %v322
    %334 = vmatpush.msra.mxu0 %v321
    %335 = vmatpush.msra.mxu0 %v320
    %336 = vmatpush.msra.mxu0 %v319
    %337 = vmatpush.msra.mxu0 %v318
    %338 = vmatpush.msra.mxu0 %v317
    %339 = vmatpush.msra.mxu0 %v316
    %340 = vmatpush.msra.mxu0 %v315
    %341 = vmatpush.msra.mxu0 %v314
    %342 = vmatpush.msra.mxu0 %v313
    %343 = vmatpush.msra.mxu0 %v312
    %344 = vmatmul.f32.gmra.mxu0 %v303
    %v345 = vpop.f32.mrf.mxu0
    %v346 = vadd.f32 0.0, %v345
    %347 = vmatmul.f32.gmra.mxu0 %v304
    %v348 = vpop.f32.mrf.mxu0
    %v349 = vadd.f32 0.0, %v348
    %350 = vmatmul.f32.gmra.mxu0 %v305
    %v351 = vpop.f32.mrf.mxu0
    %v352 = vadd.f32 0.0, %v351
    %353 = vmatmul.f32.gmra.mxu0 %v306
    %v354 = vpop.f32.mrf.mxu0
    %v355 = vadd.f32 0.0, %v354
    %356 = vmatmul.f32.gmra.mxu0 %v307
    %v357 = vpop.f32.mrf.mxu0
    %v358 = vadd.f32 0.0, %v357
    %359 = vmatmul.f32.gmra.mxu0 %v308
    %v360 = vpop.f32.mrf.mxu0
    %v361 = vadd.f32 0.0, %v360
    %362 = vmatmul.f32.gmra.mxu0 %v309
    %v363 = vpop.f32.mrf.mxu0
    %v364 = vadd.f32 0.0, %v363
    %365 = vmatmul.f32.gmra.mxu0 %v310
    %v366 = vpop.f32.mrf.mxu0
    %v367 = vadd.f32 0.0, %v366
    %368 = vdwg.mxu0
    %369 = vmatpush.msra.mxu0 %v277
    %370 = vmatpush.msra.mxu0 %v276
    %371 = vmatpush.msra.mxu0 %v275
    %372 = vmatpush.msra.mxu0 %v274
    %373 = vmatpush.msra.mxu0 %v273
    %374 = vmatpush.msra.mxu0 %v272
    %375 = vmatpush.msra.mxu0 %v271
    %376 = vmatpush.msra.mxu0 %v270
    %377 = vmatpush.msra.mxu0 %v269
    %378 = vmatpush.msra.mxu0 %v268
    %379 = vmatpush.msra.mxu0 %v267
    %380 = vmatpush.msra.mxu0 %v266
    %381 = vmatpush.msra.mxu0 %v265
    %382 = vmatpush.msra.mxu0 %v264
    %383 = vmatpush.msra.mxu0 %v263
    %384 = vmatpush.msra.mxu0 %v262
    %385 = vmatmul.f32.gmra.mxu0 %v254
    %v386 = vpop.f32.mrf.mxu0
    %v387 = vadd.f32 %v346, %v386
    %388 = vmatmul.f32.gmra.mxu0 %v255
    %v389 = vpop.f32.mrf.mxu0
    %v390 = vadd.f32 %v349, %v389
    %391 = vmatmul.f32.gmra.mxu0 %v256
    %v392 = vpop.f32.mrf.mxu0
    %v393 = vadd.f32 %v352, %v392
    %394 = vmatmul.f32.gmra.mxu0 %v257
    %v395 = vpop.f32.mrf.mxu0
    %v396 = vadd.f32 %v355, %v395
    %397 = vmatmul.f32.gmra.mxu0 %v258
    %v398 = vpop.f32.mrf.mxu0
    %v399 = vadd.f32 %v358, %v398
    %400 = vmatmul.f32.gmra.mxu0 %v259
    %v401 = vpop.f32.mrf.mxu0
    %v402 = vadd.f32 %v361, %v401
    %403 = vmatmul.f32.gmra.mxu0 %v260
    %v404 = vpop.f32.mrf.mxu0
    %v405 = vadd.f32 %v364, %v404
    %406 = vmatmul.f32.gmra.mxu0 %v261
    %v407 = vpop.f32.mrf.mxu0
    %v408 = vadd.f32 %v367, %v407
    %409 = vdwg.mxu0
    %v410 = vld [vmem:[%s1 + $0x9] sm:$0xff]
    %v411 = vld [vmem:[%s1 + $0x11] sm:$0xff]
    %v412 = vld [vmem:[%s1 + $0x19] sm:$0xff]
    %v413 = vld [vmem:[%s1 + $0x21] sm:$0xff]
    %v414 = vld [vmem:[%s1 + $0x29] sm:$0xff]
    %v415 = vld [vmem:[%s1 + $0x31] sm:$0xff]
    %v416 = vld [vmem:[%s1 + $0x39] sm:$0xff]
    %v417 = vld [vmem:[%s1 + $0x41] sm:$0xff]
    %s418 = scalar_lea.vmem [#allocation7], 384
    %v419 = vld [vmem:[%s418] sm:$0xff]
    %v420 = vld [vmem:[%s418 + $0x8] sm:$0xff]
    %v421 = vld [vmem:[%s418 + $0x10] sm:$0xff]
    %v422 = vld [vmem:[%s418 + $0x18] sm:$0xff]
    %v423 = vld [vmem:[%s418 + $0x20] sm:$0xff]
    %v424 = vld [vmem:[%s418 + $0x28] sm:$0xff]
    %v425 = vld [vmem:[%s418 + $0x30] sm:$0xff]
    %v426 = vld [vmem:[%s418 + $0x38] sm:$0xff]
    %v427 = vld [vmem:[%s418 + $0x40] sm:$0xff]
    %v428 = vld [vmem:[%s418 + $0x48] sm:$0xff]
    %v429 = vld [vmem:[%s418 + $0x50] sm:$0xff]
    %v430 = vld [vmem:[%s418 + $0x58] sm:$0xff]
    %v431 = vld [vmem:[%s418 + $0x60] sm:$0xff]
    %v432 = vld [vmem:[%s418 + $0x68] sm:$0xff]
    %v433 = vld [vmem:[%s418 + $0x70] sm:$0xff]
    %v434 = vld [vmem:[%s418 + $0x78] sm:$0xff]
    %435 = vmatpush.msra.mxu0 %v434
    %436 = vmatpush.msra.mxu0 %v433
    %437 = vmatpush.msra.mxu0 %v432
    %438 = vmatpush.msra.mxu0 %v431
    %439 = vmatpush.msra.mxu0 %v430
    %440 = vmatpush.msra.mxu0 %v429
    %441 = vmatpush.msra.mxu0 %v428
    %442 = vmatpush.msra.mxu0 %v427
    %443 = vmatpush.msra.mxu0 %v426
    %444 = vmatpush.msra.mxu0 %v425
    %445 = vmatpush.msra.mxu0 %v424
    %446 = vmatpush.msra.mxu0 %v423
    %447 = vmatpush.msra.mxu0 %v422
    %448 = vmatpush.msra.mxu0 %v421
    %449 = vmatpush.msra.mxu0 %v420
    %450 = vmatpush.msra.mxu0 %v419
    %451 = vmatmul.f32.gmra.mxu0 %v410
    %v452 = vpop.f32.mrf.mxu0
    %v453 = vadd.f32 0.0, %v452
    %454 = vmatmul.f32.gmra.mxu0 %v411
    %v455 = vpop.f32.mrf.mxu0
    %v456 = vadd.f32 0.0, %v455
    %457 = vmatmul.f32.gmra.mxu0 %v412
    %v458 = vpop.f32.mrf.mxu0
    %v459 = vadd.f32 0.0, %v458
    %460 = vmatmul.f32.gmra.mxu0 %v413
    %v461 = vpop.f32.mrf.mxu0
    %v462 = vadd.f32 0.0, %v461
    %463 = vmatmul.f32.gmra.mxu0 %v414
    %v464 = vpop.f32.mrf.mxu0
    %v465 = vadd.f32 0.0, %v464
    %466 = vmatmul.f32.gmra.mxu0 %v415
    %v467 = vpop.f32.mrf.mxu0
    %v468 = vadd.f32 0.0, %v467
    %469 = vmatmul.f32.gmra.mxu0 %v416
    %v470 = vpop.f32.mrf.mxu0
    %v471 = vadd.f32 0.0, %v470
    %472 = vmatmul.f32.gmra.mxu0 %v417
    %v473 = vpop.f32.mrf.mxu0
    %v474 = vadd.f32 0.0, %v473
    %475 = vdwg.mxu0
    %476 = vmatpush.msra.mxu0 %v302
    %477 = vmatpush.msra.mxu0 %v301
    %478 = vmatpush.msra.mxu0 %v300
    %479 = vmatpush.msra.mxu0 %v299
    %480 = vmatpush.msra.mxu0 %v298
    %481 = vmatpush.msra.mxu0 %v297
    %482 = vmatpush.msra.mxu0 %v296
    %483 = vmatpush.msra.mxu0 %v295
    %484 = vmatpush.msra.mxu0 %v294
    %485 = vmatpush.msra.mxu0 %v293
    %486 = vmatpush.msra.mxu0 %v292
    %487 = vmatpush.msra.mxu0 %v291
    %488 = vmatpush.msra.mxu0 %v290
    %489 = vmatpush.msra.mxu0 %v289
    %490 = vmatpush.msra.mxu0 %v288
    %491 = vmatpush.msra.mxu0 %v287
    %492 = vmatmul.f32.gmra.mxu0 %v278
    %v493 = vpop.f32.mrf.mxu0
    %v494 = vadd.f32 %v453, %v493
    %495 = vmatmul.f32.gmra.mxu0 %v279
    %v496 = vpop.f32.mrf.mxu0
    %v497 = vadd.f32 %v456, %v496
    %498 = vmatmul.f32.gmra.mxu0 %v280
    %v499 = vpop.f32.mrf.mxu0
    %v500 = vadd.f32 %v459, %v499
    %501 = vmatmul.f32.gmra.mxu0 %v281
    %v502 = vpop.f32.mrf.mxu0
    %v503 = vadd.f32 %v462, %v502
    %504 = vmatmul.f32.gmra.mxu0 %v282
    %v505 = vpop.f32.mrf.mxu0
    %v506 = vadd.f32 %v465, %v505
    %507 = vmatmul.f32.gmra.mxu0 %v283
    %v508 = vpop.f32.mrf.mxu0
    %v509 = vadd.f32 %v468, %v508
    %510 = vmatmul.f32.gmra.mxu0 %v284
    %v511 = vpop.f32.mrf.mxu0
    %v512 = vadd.f32 %v471, %v511
    %513 = vmatmul.f32.gmra.mxu0 %v285
    %v514 = vpop.f32.mrf.mxu0
    %v515 = vadd.f32 %v474, %v514
    %516 = vdwg.mxu0
    %v517 = vld [vmem:[%s1 + $0xa] sm:$0xff]
    %v518 = vld [vmem:[%s1 + $0x12] sm:$0xff]
    %v519 = vld [vmem:[%s1 + $0x1a] sm:$0xff]
    %v520 = vld [vmem:[%s1 + $0x22] sm:$0xff]
    %v521 = vld [vmem:[%s1 + $0x2a] sm:$0xff]
    %v522 = vld [vmem:[%s1 + $0x32] sm:$0xff]
    %v523 = vld [vmem:[%s1 + $0x3a] sm:$0xff]
    %v524 = vld [vmem:[%s1 + $0x42] sm:$0xff]
    %s525 = scalar_lea.vmem [#allocation7], 512
    %v526 = vld [vmem:[%s525] sm:$0xff]
    %v527 = vld [vmem:[%s525 + $0x8] sm:$0xff]
    %v528 = vld [vmem:[%s525 + $0x10] sm:$0xff]
    %v529 = vld [vmem:[%s525 + $0x18] sm:$0xff]
    %v530 = vld [vmem:[%s525 + $0x20] sm:$0xff]
    %v531 = vld [vmem:[%s525 + $0x28] sm:$0xff]
    %v532 = vld [vmem:[%s525 + $0x30] sm:$0xff]
    %v533 = vld [vmem:[%s525 + $0x38] sm:$0xff]
    %v534 = vld [vmem:[%s525 + $0x40] sm:$0xff]
    %v535 = vld [vmem:[%s525 + $0x48] sm:$0xff]
    %v536 = vld [vmem:[%s525 + $0x50] sm:$0xff]
    %v537 = vld [vmem:[%s525 + $0x58] sm:$0xff]
    %v538 = vld [vmem:[%s525 + $0x60] sm:$0xff]
    %v539 = vld [vmem:[%s525 + $0x68] sm:$0xff]
    %v540 = vld [vmem:[%s525 + $0x70] sm:$0xff]
    %v541 = vld [vmem:[%s525 + $0x78] sm:$0xff]
    %542 = vmatpush.msra.mxu0 %v541
    %543 = vmatpush.msra.mxu0 %v540
    %544 = vmatpush.msra.mxu0 %v539
    %545 = vmatpush.msra.mxu0 %v538
    %546 = vmatpush.msra.mxu0 %v537
    %547 = vmatpush.msra.mxu0 %v536
    %548 = vmatpush.msra.mxu0 %v535
    %549 = vmatpush.msra.mxu0 %v534
    %550 = vmatpush.msra.mxu0 %v533
    %551 = vmatpush.msra.mxu0 %v532
    %552 = vmatpush.msra.mxu0 %v531
    %553 = vmatpush.msra.mxu0 %v530
    %554 = vmatpush.msra.mxu0 %v529
    %555 = vmatpush.msra.mxu0 %v528
    %556 = vmatpush.msra.mxu0 %v527
    %557 = vmatpush.msra.mxu0 %v526
    %558 = vmatmul.f32.gmra.mxu0 %v517
    %v559 = vpop.f32.mrf.mxu0
    %v560 = vadd.f32 0.0, %v559
    %561 = vmatmul.f32.gmra.mxu0 %v518
    %v562 = vpop.f32.mrf.mxu0
    %v563 = vadd.f32 0.0, %v562
    %564 = vmatmul.f32.gmra.mxu0 %v519
    %v565 = vpop.f32.mrf.mxu0
    %v566 = vadd.f32 0.0, %v565
    %567 = vmatmul.f32.gmra.mxu0 %v520
    %v568 = vpop.f32.mrf.mxu0
    %v569 = vadd.f32 0.0, %v568
    %570 = vmatmul.f32.gmra.mxu0 %v521
    %v571 = vpop.f32.mrf.mxu0
    %v572 = vadd.f32 0.0, %v571
    %573 = vmatmul.f32.gmra.mxu0 %v522
    %v574 = vpop.f32.mrf.mxu0
    %v575 = vadd.f32 0.0, %v574
    %576 = vmatmul.f32.gmra.mxu0 %v523
    %v577 = vpop.f32.mrf.mxu0
    %v578 = vadd.f32 0.0, %v577
    %579 = vmatmul.f32.gmra.mxu0 %v524
    %v580 = vpop.f32.mrf.mxu0
    %v581 = vadd.f32 0.0, %v580
    %582 = vdwg.mxu0
    %v583 = vadd.f32 %v387, %v560
    %v584 = vadd.f32 %v390, %v563
    %v585 = vadd.f32 %v393, %v566
    %v586 = vadd.f32 %v396, %v569
    %v587 = vadd.f32 %v399, %v572
    %v588 = vadd.f32 %v402, %v575
    %v589 = vadd.f32 %v405, %v578
    %v590 = vadd.f32 %v408, %v581
    %v591 = vadd.f32 %v583, %v494
    %v592 = vadd.f32 %v584, %v497
    %v593 = vadd.f32 %v585, %v500
    %v594 = vadd.f32 %v586, %v503
    %v595 = vadd.f32 %v587, %v506
    %v596 = vadd.f32 %v588, %v509
    %v597 = vadd.f32 %v589, %v512
    %v598 = vadd.f32 %v590, %v515
    %v600 = vperm.slane %v253, 0
    %v602 = vadd.f32 %v591, %v600
    %v603 = vadd.f32 %v592, %v600
    %v604 = vadd.f32 %v593, %v600
    %v605 = vadd.f32 %v594, %v600
    %v606 = vadd.f32 %v595, %v600
    %v607 = vadd.f32 %v596, %v600
    %v608 = vadd.f32 %v597, %v600
    %v609 = vadd.f32 %v598, %v600
    %v610 = vmax.f32 %v602, 0.0
    %v611 = vmax.f32 %v603, 0.0
    %v612 = vmax.f32 %v604, 0.0
    %v613 = vmax.f32 %v605, 0.0
    %v614 = vmax.f32 %v606, 0.0
    %v615 = vmax.f32 %v607, 0.0
    %v616 = vmax.f32 %v608, 0.0
    %v617 = vmax.f32 %v609, 0.0
    %v618 = vld [vmem:[#allocation5] sm:$0xff]
    %v619 = vld [vmem:[#allocation5 + $0x8] sm:$0xff]
    %v620 = vld [vmem:[#allocation5 + $0x10] sm:$0xff]
    %v621 = vld [vmem:[#allocation5 + $0x18] sm:$0xff]
    %v622 = vld [vmem:[#allocation5 + $0x20] sm:$0xff]
    %v623 = vld [vmem:[#allocation5 + $0x28] sm:$0xff]
    %v624 = vld [vmem:[#allocation5 + $0x30] sm:$0xff]
    %v625 = vld [vmem:[#allocation5 + $0x38] sm:$0xff]
    %v626 = vmul.f32 %v610, %v618
    %v627 = vmul.f32 %v611, %v619
    %v628 = vmul.f32 %v612, %v620
    %v629 = vmul.f32 %v613, %v621
    %v630 = vmul.f32 %v614, %v622
    %v631 = vmul.f32 %v615, %v623
    %v632 = vmul.f32 %v616, %v624
    %v633 = vmul.f32 %v617, %v625
    %634 = vst [vmem:[#allocation2 + $0x8] sm:$0xff] %v626
    %635 = vst [vmem:[#allocation2 + $0x10] sm:$0xff] %v627
    %636 = vst [vmem:[#allocation2 + $0x18] sm:$0xff] %v628
    %637 = vst [vmem:[#allocation2 + $0x20] sm:$0xff] %v629
    %638 = vst [vmem:[#allocation2 + $0x28] sm:$0xff] %v630
    %639 = vst [vmem:[#allocation2 + $0x30] sm:$0xff] %v631
    %640 = vst [vmem:[#allocation2 + $0x38] sm:$0xff] %v632
    %641 = vst [vmem:[#allocation2 + $0x40] sm:$0xff] %v633
    %v642 = vld [vmem:[%s5] sm:$0x1]
    %v643 = vld [vmem:[#allocation2 + $0x6] sm:$0xff]
    %v644 = vld [vmem:[#allocation2 + $0xe] sm:$0xff]
    %v645 = vld [vmem:[#allocation2 + $0x16] sm:$0xff]
    %v646 = vld [vmem:[#allocation2 + $0x1e] sm:$0xff]
    %v647 = vld [vmem:[#allocation2 + $0x26] sm:$0xff]
    %v648 = vld [vmem:[#allocation2 + $0x2e] sm:$0xff]
    %v649 = vld [vmem:[#allocation2 + $0x36] sm:$0xff]
    %v650 = vld [vmem:[#allocation2 + $0x3e] sm:$0xff]
    %v651 = vld [vmem:[#allocation9] sm:$0xff]
    %v652 = vld [vmem:[#allocation9 + $0x8] sm:$0xff]
    %v653 = vld [vmem:[#allocation9 + $0x10] sm:$0xff]
    %v654 = vld [vmem:[#allocation9 + $0x18] sm:$0xff]
    %v655 = vld [vmem:[#allocation9 + $0x20] sm:$0xff]
    %v656 = vld [vmem:[#allocation9 + $0x28] sm:$0xff]
    %v657 = vld [vmem:[#allocation9 + $0x30] sm:$0xff]
    %v658 = vld [vmem:[#allocation9 + $0x38] sm:$0xff]
    %v659 = vld [vmem:[#allocation9 + $0x40] sm:$0xff]
    %v660 = vld [vmem:[#allocation9 + $0x48] sm:$0xff]
    %v661 = vld [vmem:[#allocation9 + $0x50] sm:$0xff]
    %v662 = vld [vmem:[#allocation9 + $0x58] sm:$0xff]
    %v663 = vld [vmem:[#allocation9 + $0x60] sm:$0xff]
    %v664 = vld [vmem:[#allocation9 + $0x68] sm:$0xff]
    %v665 = vld [vmem:[#allocation9 + $0x70] sm:$0xff]
    %v666 = vld [vmem:[#allocation9 + $0x78] sm:$0xff]
    %v667 = vld [vmem:[#allocation2 + $0x7] sm:$0xff]
    %v668 = vld [vmem:[#allocation2 + $0xf] sm:$0xff]
    %v669 = vld [vmem:[#allocation2 + $0x17] sm:$0xff]
    %v670 = vld [vmem:[#allocation2 + $0x1f] sm:$0xff]
    %v671 = vld [vmem:[#allocation2 + $0x27] sm:$0xff]
    %v672 = vld [vmem:[#allocation2 + $0x2f] sm:$0xff]
    %v673 = vld [vmem:[#allocation2 + $0x37] sm:$0xff]
    %v674 = vld [vmem:[#allocation2 + $0x3f] sm:$0xff]
    %s675 = scalar_lea.vmem [#allocation9], 128
    %v676 = vld [vmem:[%s675] sm:$0xff]
    %v677 = vld [vmem:[%s675 + $0x8] sm:$0xff]
    %v678 = vld [vmem:[%s675 + $0x10] sm:$0xff]
    %v679 = vld [vmem:[%s675 + $0x18] sm:$0xff]
    %v680 = vld [vmem:[%s675 + $0x20] sm:$0xff]
    %v681 = vld [vmem:[%s675 + $0x28] sm:$0xff]
    %v682 = vld [vmem:[%s675 + $0x30] sm:$0xff]
    %v683 = vld [vmem:[%s675 + $0x38] sm:$0xff]
    %v684 = vld [vmem:[%s675 + $0x40] sm:$0xff]
    %v685 = vld [vmem:[%s675 + $0x48] sm:$0xff]
    %v686 = vld [vmem:[%s675 + $0x50] sm:$0xff]
    %v687 = vld [vmem:[%s675 + $0x58] sm:$0xff]
    %v688 = vld [vmem:[%s675 + $0x60] sm:$0xff]
    %v689 = vld [vmem:[%s675 + $0x68] sm:$0xff]
    %v690 = vld [vmem:[%s675 + $0x70] sm:$0xff]
    %v691 = vld [vmem:[%s675 + $0x78] sm:$0xff]
    %v692 = vld [vmem:[#allocation2 + $0x8] sm:$0xff]
    %v693 = vld [vmem:[#allocation2 + $0x10] sm:$0xff]
    %v694 = vld [vmem:[#allocation2 + $0x18] sm:$0xff]
    %v695 = vld [vmem:[#allocation2 + $0x20] sm:$0xff]
    %v696 = vld [vmem:[#allocation2 + $0x28] sm:$0xff]
    %v697 = vld [vmem:[#allocation2 + $0x30] sm:$0xff]
    %v698 = vld [vmem:[#allocation2 + $0x38] sm:$0xff]
    %v699 = vld [vmem:[#allocation2 + $0x40] sm:$0xff]
    %s700 = scalar_lea.vmem [#allocation9], 256
    %v701 = vld [vmem:[%s700] sm:$0xff]
    %v702 = vld [vmem:[%s700 + $0x8] sm:$0xff]
    %v703 = vld [vmem:[%s700 + $0x10] sm:$0xff]
    %v704 = vld [vmem:[%s700 + $0x18] sm:$0xff]
    %v705 = vld [vmem:[%s700 + $0x20] sm:$0xff]
    %v706 = vld [vmem:[%s700 + $0x28] sm:$0xff]
    %v707 = vld [vmem:[%s700 + $0x30] sm:$0xff]
    %v708 = vld [vmem:[%s700 + $0x38] sm:$0xff]
    %v709 = vld [vmem:[%s700 + $0x40] sm:$0xff]
    %v710 = vld [vmem:[%s700 + $0x48] sm:$0xff]
    %v711 = vld [vmem:[%s700 + $0x50] sm:$0xff]
    %v712 = vld [vmem:[%s700 + $0x58] sm:$0xff]
    %v713 = vld [vmem:[%s700 + $0x60] sm:$0xff]
    %v714 = vld [vmem:[%s700 + $0x68] sm:$0xff]
    %v715 = vld [vmem:[%s700 + $0x70] sm:$0xff]
    %v716 = vld [vmem:[%s700 + $0x78] sm:$0xff]
    %717 = vmatpush.msra.mxu0 %v716
    %718 = vmatpush.msra.mxu0 %v715
    %719 = vmatpush.msra.mxu0 %v714
    %720 = vmatpush.msra.mxu0 %v713
    %721 = vmatpush.msra.mxu0 %v712
    %722 = vmatpush.msra.mxu0 %v711
    %723 = vmatpush.msra.mxu0 %v710
    %724 = vmatpush.msra.mxu0 %v709
    %725 = vmatpush.msra.mxu0 %v708
    %726 = vmatpush.msra.mxu0 %v707
    %727 = vmatpush.msra.mxu0 %v706
    %728 = vmatpush.msra.mxu0 %v705
    %729 = vmatpush.msra.mxu0 %v704
    %730 = vmatpush.msra.mxu0 %v703
    %731 = vmatpush.msra.mxu0 %v702
    %732 = vmatpush.msra.mxu0 %v701
    %733 = vmatmul.f32.gmra.mxu0 %v692
    %v734 = vpop.f32.mrf.mxu0
    %v735 = vadd.f32 0.0, %v734
    %736 = vmatmul.f32.gmra.mxu0 %v693
    %v737 = vpop.f32.mrf.mxu0
    %v738 = vadd.f32 0.0, %v737
    %739 = vmatmul.f32.gmra.mxu0 %v694
    %v740 = vpop.f32.mrf.mxu0
    %v741 = vadd.f32 0.0, %v740
    %742 = vmatmul.f32.gmra.mxu0 %v695
    %v743 = vpop.f32.mrf.mxu0
    %v744 = vadd.f32 0.0, %v743
    %745 = vmatmul.f32.gmra.mxu0 %v696
    %v746 = vpop.f32.mrf.mxu0
    %v747 = vadd.f32 0.0, %v746
    %748 = vmatmul.f32.gmra.mxu0 %v697
    %v749 = vpop.f32.mrf.mxu0
    %v750 = vadd.f32 0.0, %v749
    %751 = vmatmul.f32.gmra.mxu0 %v698
    %v752 = vpop.f32.mrf.mxu0
    %v753 = vadd.f32 0.0, %v752
    %754 = vmatmul.f32.gmra.mxu0 %v699
    %v755 = vpop.f32.mrf.mxu0
    %v756 = vadd.f32 0.0, %v755
    %757 = vdwg.mxu0
    %758 = vmatpush.msra.mxu0 %v666
    %759 = vmatpush.msra.mxu0 %v665
    %760 = vmatpush.msra.mxu0 %v664
    %761 = vmatpush.msra.mxu0 %v663
    %762 = vmatpush.msra.mxu0 %v662
    %763 = vmatpush.msra.mxu0 %v661
    %764 = vmatpush.msra.mxu0 %v660
    %765 = vmatpush.msra.mxu0 %v659
    %766 = vmatpush.msra.mxu0 %v658
    %767 = vmatpush.msra.mxu0 %v657
    %768 = vmatpush.msra.mxu0 %v656
    %769 = vmatpush.msra.mxu0 %v655
    %770 = vmatpush.msra.mxu0 %v654
    %771 = vmatpush.msra.mxu0 %v653
    %772 = vmatpush.msra.mxu0 %v652
    %773 = vmatpush.msra.mxu0 %v651
    %774 = vmatmul.f32.gmra.mxu0 %v643
    %v775 = vpop.f32.mrf.mxu0
    %v776 = vadd.f32 %v735, %v775
    %777 = vmatmul.f32.gmra.mxu0 %v644
    %v778 = vpop.f32.mrf.mxu0
    %v779 = vadd.f32 %v738, %v778
    %780 = vmatmul.f32.gmra.mxu0 %v645
    %v781 = vpop.f32.mrf.mxu0
    %v782 = vadd.f32 %v741, %v781
    %783 = vmatmul.f32.gmra.mxu0 %v646
    %v784 = vpop.f32.mrf.mxu0
    %v785 = vadd.f32 %v744, %v784
    %786 = vmatmul.f32.gmra.mxu0 %v647
    %v787 = vpop.f32.mrf.mxu0
    %v788 = vadd.f32 %v747, %v787
    %789 = vmatmul.f32.gmra.mxu0 %v648
    %v790 = vpop.f32.mrf.mxu0
    %v791 = vadd.f32 %v750, %v790
    %792 = vmatmul.f32.gmra.mxu0 %v649
    %v793 = vpop.f32.mrf.mxu0
    %v794 = vadd.f32 %v753, %v793
    %795 = vmatmul.f32.gmra.mxu0 %v650
    %v796 = vpop.f32.mrf.mxu0
    %v797 = vadd.f32 %v756, %v796
    %798 = vdwg.mxu0
    %v799 = vld [vmem:[#allocation2 + $0x9] sm:$0xff]
    %v800 = vld [vmem:[#allocation2 + $0x11] sm:$0xff]
    %v801 = vld [vmem:[#allocation2 + $0x19] sm:$0xff]
    %v802 = vld [vmem:[#allocation2 + $0x21] sm:$0xff]
    %v803 = vld [vmem:[#allocation2 + $0x29] sm:$0xff]
    %v804 = vld [vmem:[#allocation2 + $0x31] sm:$0xff]
    %v805 = vld [vmem:[#allocation2 + $0x39] sm:$0xff]
    %v806 = vld [vmem:[#allocation2 + $0x41] sm:$0xff]
    %s807 = scalar_lea.vmem [#allocation9], 384
    %v808 = vld [vmem:[%s807] sm:$0xff]
    %v809 = vld [vmem:[%s807 + $0x8] sm:$0xff]
    %v810 = vld [vmem:[%s807 + $0x10] sm:$0xff]
    %v811 = vld [vmem:[%s807 + $0x18] sm:$0xff]
    %v812 = vld [vmem:[%s807 + $0x20] sm:$0xff]
    %v813 = vld [vmem:[%s807 + $0x28] sm:$0xff]
    %v814 = vld [vmem:[%s807 + $0x30] sm:$0xff]
    %v815 = vld [vmem:[%s807 + $0x38] sm:$0xff]
    %v816 = vld [vmem:[%s807 + $0x40] sm:$0xff]
    %v817 = vld [vmem:[%s807 + $0x48] sm:$0xff]
    %v818 = vld [vmem:[%s807 + $0x50] sm:$0xff]
    %v819 = vld [vmem:[%s807 + $0x58] sm:$0xff]
    %v820 = vld [vmem:[%s807 + $0x60] sm:$0xff]
    %v821 = vld [vmem:[%s807 + $0x68] sm:$0xff]
    %v822 = vld [vmem:[%s807 + $0x70] sm:$0xff]
    %v823 = vld [vmem:[%s807 + $0x78] sm:$0xff]
    %824 = vmatpush.msra.mxu0 %v823
    %825 = vmatpush.msra.mxu0 %v822
    %826 = vmatpush.msra.mxu0 %v821
    %827 = vmatpush.msra.mxu0 %v820
    %828 = vmatpush.msra.mxu0 %v819
    %829 = vmatpush.msra.mxu0 %v818
    %830 = vmatpush.msra.mxu0 %v817
    %831 = vmatpush.msra.mxu0 %v816
    %832 = vmatpush.msra.mxu0 %v815
    %833 = vmatpush.msra.mxu0 %v814
    %834 = vmatpush.msra.mxu0 %v813
    %835 = vmatpush.msra.mxu0 %v812
    %836 = vmatpush.msra.mxu0 %v811
    %837 = vmatpush.msra.mxu0 %v810
    %838 = vmatpush.msra.mxu0 %v809
    %839 = vmatpush.msra.mxu0 %v808
    %840 = vmatmul.f32.gmra.mxu0 %v799
    %v841 = vpop.f32.mrf.mxu0
    %v842 = vadd.f32 0.0, %v841
    %843 = vmatmul.f32.gmra.mxu0 %v800
    %v844 = vpop.f32.mrf.mxu0
    %v845 = vadd.f32 0.0, %v844
    %846 = vmatmul.f32.gmra.mxu0 %v801
    %v847 = vpop.f32.mrf.mxu0
    %v848 = vadd.f32 0.0, %v847
    %849 = vmatmul.f32.gmra.mxu0 %v802
    %v850 = vpop.f32.mrf.mxu0
    %v851 = vadd.f32 0.0, %v850
    %852 = vmatmul.f32.gmra.mxu0 %v803
    %v853 = vpop.f32.mrf.mxu0
    %v854 = vadd.f32 0.0, %v853
    %855 = vmatmul.f32.gmra.mxu0 %v804
    %v856 = vpop.f32.mrf.mxu0
    %v857 = vadd.f32 0.0, %v856
    %858 = vmatmul.f32.gmra.mxu0 %v805
    %v859 = vpop.f32.mrf.mxu0
    %v860 = vadd.f32 0.0, %v859
    %861 = vmatmul.f32.gmra.mxu0 %v806
    %v862 = vpop.f32.mrf.mxu0
    %v863 = vadd.f32 0.0, %v862
    %864 = vdwg.mxu0
    %865 = vmatpush.msra.mxu0 %v691
    %866 = vmatpush.msra.mxu0 %v690
    %867 = vmatpush.msra.mxu0 %v689
    %868 = vmatpush.msra.mxu0 %v688
    %869 = vmatpush.msra.mxu0 %v687
    %870 = vmatpush.msra.mxu0 %v686
    %871 = vmatpush.msra.mxu0 %v685
    %872 = vmatpush.msra.mxu0 %v684
    %873 = vmatpush.msra.mxu0 %v683
    %874 = vmatpush.msra.mxu0 %v682
    %875 = vmatpush.msra.mxu0 %v681
    %876 = vmatpush.msra.mxu0 %v680
    %877 = vmatpush.msra.mxu0 %v679
    %878 = vmatpush.msra.mxu0 %v678
    %879 = vmatpush.msra.mxu0 %v677
    %880 = vmatpush.msra.mxu0 %v676
    %881 = vmatmul.f32.gmra.mxu0 %v667
    %v882 = vpop.f32.mrf.mxu0
    %v883 = vadd.f32 %v842, %v882
    %884 = vmatmul.f32.gmra.mxu0 %v668
    %v885 = vpop.f32.mrf.mxu0
    %v886 = vadd.f32 %v845, %v885
    %887 = vmatmul.f32.gmra.mxu0 %v669
    %v888 = vpop.f32.mrf.mxu0
    %v889 = vadd.f32 %v848, %v888
    %890 = vmatmul.f32.gmra.mxu0 %v670
    %v891 = vpop.f32.mrf.mxu0
    %v892 = vadd.f32 %v851, %v891
    %893 = vmatmul.f32.gmra.mxu0 %v671
    %v894 = vpop.f32.mrf.mxu0
    %v895 = vadd.f32 %v854, %v894
    %896 = vmatmul.f32.gmra.mxu0 %v672
    %v897 = vpop.f32.mrf.mxu0
    %v898 = vadd.f32 %v857, %v897
    %899 = vmatmul.f32.gmra.mxu0 %v673
    %v900 = vpop.f32.mrf.mxu0
    %v901 = vadd.f32 %v860, %v900
    %902 = vmatmul.f32.gmra.mxu0 %v674
    %v903 = vpop.f32.mrf.mxu0
    %v904 = vadd.f32 %v863, %v903
    %905 = vdwg.mxu0
    %v906 = vld [vmem:[#allocation2 + $0xa] sm:$0xff]
    %v907 = vld [vmem:[#allocation2 + $0x12] sm:$0xff]
    %v908 = vld [vmem:[#allocation2 + $0x1a] sm:$0xff]
    %v909 = vld [vmem:[#allocation2 + $0x22] sm:$0xff]
    %v910 = vld [vmem:[#allocation2 + $0x2a] sm:$0xff]
    %v911 = vld [vmem:[#allocation2 + $0x32] sm:$0xff]
    %v912 = vld [vmem:[#allocation2 + $0x3a] sm:$0xff]
    %v913 = vld [vmem:[#allocation2 + $0x42] sm:$0xff]
    %s914 = scalar_lea.vmem [#allocation9], 512
    %v915 = vld [vmem:[%s914] sm:$0xff]
    %v916 = vld [vmem:[%s914 + $0x8] sm:$0xff]
    %v917 = vld [vmem:[%s914 + $0x10] sm:$0xff]
    %v918 = vld [vmem:[%s914 + $0x18] sm:$0xff]
    %v919 = vld [vmem:[%s914 + $0x20] sm:$0xff]
    %v920 = vld [vmem:[%s914 + $0x28] sm:$0xff]
    %v921 = vld [vmem:[%s914 + $0x30] sm:$0xff]
    %v922 = vld [vmem:[%s914 + $0x38] sm:$0xff]
    %v923 = vld [vmem:[%s914 + $0x40] sm:$0xff]
    %v924 = vld [vmem:[%s914 + $0x48] sm:$0xff]
    %v925 = vld [vmem:[%s914 + $0x50] sm:$0xff]
    %v926 = vld [vmem:[%s914 + $0x58] sm:$0xff]
    %v927 = vld [vmem:[%s914 + $0x60] sm:$0xff]
    %v928 = vld [vmem:[%s914 + $0x68] sm:$0xff]
    %v929 = vld [vmem:[%s914 + $0x70] sm:$0xff]
    %v930 = vld [vmem:[%s914 + $0x78] sm:$0xff]
    %931 = vmatpush.msra.mxu0 %v930
    %932 = vmatpush.msra.mxu0 %v929
    %933 = vmatpush.msra.mxu0 %v928
    %934 = vmatpush.msra.mxu0 %v927
    %935 = vmatpush.msra.mxu0 %v926
    %936 = vmatpush.msra.mxu0 %v925
    %937 = vmatpush.msra.mxu0 %v924
    %938 = vmatpush.msra.mxu0 %v923
    %939 = vmatpush.msra.mxu0 %v922
    %940 = vmatpush.msra.mxu0 %v921
    %941 = vmatpush.msra.mxu0 %v920
    %942 = vmatpush.msra.mxu0 %v919
    %943 = vmatpush.msra.mxu0 %v918
    %944 = vmatpush.msra.mxu0 %v917
    %945 = vmatpush.msra.mxu0 %v916
    %946 = vmatpush.msra.mxu0 %v915
    %947 = vmatmul.f32.gmra.mxu0 %v906
    %v948 = vpop.f32.mrf.mxu0
    %v949 = vadd.f32 0.0, %v948
    %950 = vmatmul.f32.gmra.mxu0 %v907
    %v951 = vpop.f32.mrf.mxu0
    %v952 = vadd.f32 0.0, %v951
    %953 = vmatmul.f32.gmra.mxu0 %v908
    %v954 = vpop.f32.mrf.mxu0
    %v955 = vadd.f32 0.0, %v954
    %956 = vmatmul.f32.gmra.mxu0 %v909
    %v957 = vpop.f32.mrf.mxu0
    %v958 = vadd.f32 0.0, %v957
    %959 = vmatmul.f32.gmra.mxu0 %v910
    %v960 = vpop.f32.mrf.mxu0
    %v961 = vadd.f32 0.0, %v960
    %962 = vmatmul.f32.gmra.mxu0 %v911
    %v963 = vpop.f32.mrf.mxu0
    %v964 = vadd.f32 0.0, %v963
    %965 = vmatmul.f32.gmra.mxu0 %v912
    %v966 = vpop.f32.mrf.mxu0
    %v967 = vadd.f32 0.0, %v966
    %968 = vmatmul.f32.gmra.mxu0 %v913
    %v969 = vpop.f32.mrf.mxu0
    %v970 = vadd.f32 0.0, %v969
    %971 = vdwg.mxu0
    %v972 = vadd.f32 %v776, %v949
    %v973 = vadd.f32 %v779, %v952
    %v974 = vadd.f32 %v782, %v955
    %v975 = vadd.f32 %v785, %v958
    %v976 = vadd.f32 %v788, %v961
    %v977 = vadd.f32 %v791, %v964
    %v978 = vadd.f32 %v794, %v967
    %v979 = vadd.f32 %v797, %v970
    %v980 = vadd.f32 %v972, %v883
    %v981 = vadd.f32 %v973, %v886
    %v982 = vadd.f32 %v974, %v889
    %v983 = vadd.f32 %v975, %v892
    %v984 = vadd.f32 %v976, %v895
    %v985 = vadd.f32 %v977, %v898
    %v986 = vadd.f32 %v978, %v901
    %v987 = vadd.f32 %v979, %v904
    %v989 = vperm.slane %v642, 0
    %v991 = vadd.f32 %v980, %v989
    %v992 = vadd.f32 %v981, %v989
    %v993 = vadd.f32 %v982, %v989
    %v994 = vadd.f32 %v983, %v989
    %v995 = vadd.f32 %v984, %v989
    %v996 = vadd.f32 %v985, %v989
    %v997 = vadd.f32 %v986, %v989
    %v998 = vadd.f32 %v987, %v989
    %v999 = vmax.f32 %v991, 0.0
    %v1000 = vmax.f32 %v992, 0.0
    %v1001 = vmax.f32 %v993, 0.0
    %v1002 = vmax.f32 %v994, 0.0
    %v1003 = vmax.f32 %v995, 0.0
    %v1004 = vmax.f32 %v996, 0.0
    %v1005 = vmax.f32 %v997, 0.0
    %v1006 = vmax.f32 %v998, 0.0
    %s1007 = scalar_lea.vmem [#allocation5], 64
    %v1008 = vld [vmem:[%s1007] sm:$0xff]
    %v1009 = vld [vmem:[%s1007 + $0x8] sm:$0xff]
    %v1010 = vld [vmem:[%s1007 + $0x10] sm:$0xff]
    %v1011 = vld [vmem:[%s1007 + $0x18] sm:$0xff]
    %v1012 = vld [vmem:[%s1007 + $0x20] sm:$0xff]
    %v1013 = vld [vmem:[%s1007 + $0x28] sm:$0xff]
    %v1014 = vld [vmem:[%s1007 + $0x30] sm:$0xff]
    %v1015 = vld [vmem:[%s1007 + $0x38] sm:$0xff]
    %v1016 = vmul.f32 %v999, %v1008
    %v1017 = vmul.f32 %v1000, %v1009
    %v1018 = vmul.f32 %v1001, %v1010
    %v1019 = vmul.f32 %v1002, %v1011
    %v1020 = vmul.f32 %v1003, %v1012
    %v1021 = vmul.f32 %v1004, %v1013
    %v1022 = vmul.f32 %v1005, %v1014
    %v1023 = vmul.f32 %v1006, %v1015
    %1024 = vst [vmem:[#allocation3 + $0x8] sm:$0xff] %v1016
    %1025 = vst [vmem:[#allocation3 + $0x10] sm:$0xff] %v1017
    %1026 = vst [vmem:[#allocation3 + $0x18] sm:$0xff] %v1018
    %1027 = vst [vmem:[#allocation3 + $0x20] sm:$0xff] %v1019
    %1028 = vst [vmem:[#allocation3 + $0x28] sm:$0xff] %v1020
    %1029 = vst [vmem:[#allocation3 + $0x30] sm:$0xff] %v1021
    %1030 = vst [vmem:[#allocation3 + $0x38] sm:$0xff] %v1022
    %1031 = vst [vmem:[#allocation3 + $0x40] sm:$0xff] %v1023
    %v1032 = vld [vmem:[%s7] sm:$0x1]
    %v1033 = vld [vmem:[#allocation3 + $0x6] sm:$0xff]
    %v1034 = vld [vmem:[#allocation3 + $0xe] sm:$0xff]
    %v1035 = vld [vmem:[#allocation3 + $0x16] sm:$0xff]
    %v1036 = vld [vmem:[#allocation3 + $0x1e] sm:$0xff]
    %v1037 = vld [vmem:[#allocation3 + $0x26] sm:$0xff]
    %v1038 = vld [vmem:[#allocation3 + $0x2e] sm:$0xff]
    %v1039 = vld [vmem:[#allocation3 + $0x36] sm:$0xff]
    %v1040 = vld [vmem:[#allocation3 + $0x3e] sm:$0xff]
    %v1041 = vld [vmem:[#allocation10] sm:$0xff]
    %v1042 = vld [vmem:[#allocation10 + $0x8] sm:$0xff]
    %v1043 = vld [vmem:[#allocation10 + $0x10] sm:$0xff]
    %v1044 = vld [vmem:[#allocation10 + $0x18] sm:$0xff]
    %v1045 = vld [vmem:[#allocation10 + $0x20] sm:$0xff]
    %v1046 = vld [vmem:[#allocation10 + $0x28] sm:$0xff]
    %v1047 = vld [vmem:[#allocation10 + $0x30] sm:$0xff]
    %v1048 = vld [vmem:[#allocation10 + $0x38] sm:$0xff]
    %v1049 = vld [vmem:[#allocation10 + $0x40] sm:$0xff]
    %v1050 = vld [vmem:[#allocation10 + $0x48] sm:$0xff]
    %v1051 = vld [vmem:[#allocation10 + $0x50] sm:$0xff]
    %v1052 = vld [vmem:[#allocation10 + $0x58] sm:$0xff]
    %v1053 = vld [vmem:[#allocation10 + $0x60] sm:$0xff]
    %v1054 = vld [vmem:[#allocation10 + $0x68] sm:$0xff]
    %v1055 = vld [vmem:[#allocation10 + $0x70] sm:$0xff]
    %v1056 = vld [vmem:[#allocation10 + $0x78] sm:$0xff]
    %v1057 = vld [vmem:[#allocation3 + $0x7] sm:$0xff]
    %v1058 = vld [vmem:[#allocation3 + $0xf] sm:$0xff]
    %v1059 = vld [vmem:[#allocation3 + $0x17] sm:$0xff]
    %v1060 = vld [vmem:[#allocation3 + $0x1f] sm:$0xff]
    %v1061 = vld [vmem:[#allocation3 + $0x27] sm:$0xff]
    %v1062 = vld [vmem:[#allocation3 + $0x2f] sm:$0xff]
    %v1063 = vld [vmem:[#allocation3 + $0x37] sm:$0xff]
    %v1064 = vld [vmem:[#allocation3 + $0x3f] sm:$0xff]
    %s1065 = scalar_lea.vmem [#allocation10], 128
    %v1066 = vld [vmem:[%s1065] sm:$0xff]
    %v1067 = vld [vmem:[%s1065 + $0x8] sm:$0xff]
    %v1068 = vld [vmem:[%s1065 + $0x10] sm:$0xff]
    %v1069 = vld [vmem:[%s1065 + $0x18] sm:$0xff]
    %v1070 = vld [vmem:[%s1065 + $0x20] sm:$0xff]
    %v1071 = vld [vmem:[%s1065 + $0x28] sm:$0xff]
    %v1072 = vld [vmem:[%s1065 + $0x30] sm:$0xff]
    %v1073 = vld [vmem:[%s1065 + $0x38] sm:$0xff]
    %v1074 = vld [vmem:[%s1065 + $0x40] sm:$0xff]
    %v1075 = vld [vmem:[%s1065 + $0x48] sm:$0xff]
    %v1076 = vld [vmem:[%s1065 + $0x50] sm:$0xff]
    %v1077 = vld [vmem:[%s1065 + $0x58] sm:$0xff]
    %v1078 = vld [vmem:[%s1065 + $0x60] sm:$0xff]
    %v1079 = vld [vmem:[%s1065 + $0x68] sm:$0xff]
    %v1080 = vld [vmem:[%s1065 + $0x70] sm:$0xff]
    %v1081 = vld [vmem:[%s1065 + $0x78] sm:$0xff]
    %v1082 = vld [vmem:[#allocation3 + $0x8] sm:$0xff]
    %v1083 = vld [vmem:[#allocation3 + $0x10] sm:$0xff]
    %v1084 = vld [vmem:[#allocation3 + $0x18] sm:$0xff]
    %v1085 = vld [vmem:[#allocation3 + $0x20] sm:$0xff]
    %v1086 = vld [vmem:[#allocation3 + $0x28] sm:$0xff]
    %v1087 = vld [vmem:[#allocation3 + $0x30] sm:$0xff]
    %v1088 = vld [vmem:[#allocation3 + $0x38] sm:$0xff]
    %v1089 = vld [vmem:[#allocation3 + $0x40] sm:$0xff]
    %s1090 = scalar_lea.vmem [#allocation10], 256
    %v1091 = vld [vmem:[%s1090] sm:$0xff]
    %v1092 = vld [vmem:[%s1090 + $0x8] sm:$0xff]
    %v1093 = vld [vmem:[%s1090 + $0x10] sm:$0xff]
    %v1094 = vld [vmem:[%s1090 + $0x18] sm:$0xff]
    %v1095 = vld [vmem:[%s1090 + $0x20] sm:$0xff]
    %v1096 = vld [vmem:[%s1090 + $0x28] sm:$0xff]
    %v1097 = vld [vmem:[%s1090 + $0x30] sm:$0xff]
    %v1098 = vld [vmem:[%s1090 + $0x38] sm:$0xff]
    %v1099 = vld [vmem:[%s1090 + $0x40] sm:$0xff]
    %v1100 = vld [vmem:[%s1090 + $0x48] sm:$0xff]
    %v1101 = vld [vmem:[%s1090 + $0x50] sm:$0xff]
    %v1102 = vld [vmem:[%s1090 + $0x58] sm:$0xff]
    %v1103 = vld [vmem:[%s1090 + $0x60] sm:$0xff]
    %v1104 = vld [vmem:[%s1090 + $0x68] sm:$0xff]
    %v1105 = vld [vmem:[%s1090 + $0x70] sm:$0xff]
    %v1106 = vld [vmem:[%s1090 + $0x78] sm:$0xff]
    %1107 = vmatpush.msra.mxu0 %v1106
    %1108 = vmatpush.msra.mxu0 %v1105
    %1109 = vmatpush.msra.mxu0 %v1104
    %1110 = vmatpush.msra.mxu0 %v1103
    %1111 = vmatpush.msra.mxu0 %v1102
    %1112 = vmatpush.msra.mxu0 %v1101
    %1113 = vmatpush.msra.mxu0 %v1100
    %1114 = vmatpush.msra.mxu0 %v1099
    %1115 = vmatpush.msra.mxu0 %v1098
    %1116 = vmatpush.msra.mxu0 %v1097
    %1117 = vmatpush.msra.mxu0 %v1096
    %1118 = vmatpush.msra.mxu0 %v1095
    %1119 = vmatpush.msra.mxu0 %v1094
    %1120 = vmatpush.msra.mxu0 %v1093
    %1121 = vmatpush.msra.mxu0 %v1092
    %1122 = vmatpush.msra.mxu0 %v1091
    %1123 = vmatmul.f32.gmra.mxu0 %v1082
    %v1124 = vpop.f32.mrf.mxu0
    %v1125 = vadd.f32 0.0, %v1124
    %1126 = vmatmul.f32.gmra.mxu0 %v1083
    %v1127 = vpop.f32.mrf.mxu0
    %v1128 = vadd.f32 0.0, %v1127
    %1129 = vmatmul.f32.gmra.mxu0 %v1084
    %v1130 = vpop.f32.mrf.mxu0
    %v1131 = vadd.f32 0.0, %v1130
    %1132 = vmatmul.f32.gmra.mxu0 %v1085
    %v1133 = vpop.f32.mrf.mxu0
    %v1134 = vadd.f32 0.0, %v1133
    %1135 = vmatmul.f32.gmra.mxu0 %v1086
    %v1136 = vpop.f32.mrf.mxu0
    %v1137 = vadd.f32 0.0, %v1136
    %1138 = vmatmul.f32.gmra.mxu0 %v1087
    %v1139 = vpop.f32.mrf.mxu0
    %v1140 = vadd.f32 0.0, %v1139
    %1141 = vmatmul.f32.gmra.mxu0 %v1088
    %v1142 = vpop.f32.mrf.mxu0
    %v1143 = vadd.f32 0.0, %v1142
    %1144 = vmatmul.f32.gmra.mxu0 %v1089
    %v1145 = vpop.f32.mrf.mxu0
    %v1146 = vadd.f32 0.0, %v1145
    %1147 = vdwg.mxu0
    %1148 = vmatpush.msra.mxu0 %v1056
    %1149 = vmatpush.msra.mxu0 %v1055
    %1150 = vmatpush.msra.mxu0 %v1054
    %1151 = vmatpush.msra.mxu0 %v1053
    %1152 = vmatpush.msra.mxu0 %v1052
    %1153 = vmatpush.msra.mxu0 %v1051
    %1154 = vmatpush.msra.mxu0 %v1050
    %1155 = vmatpush.msra.mxu0 %v1049
    %1156 = vmatpush.msra.mxu0 %v1048
    %1157 = vmatpush.msra.mxu0 %v1047
    %1158 = vmatpush.msra.mxu0 %v1046
    %1159 = vmatpush.msra.mxu0 %v1045
    %1160 = vmatpush.msra.mxu0 %v1044
    %1161 = vmatpush.msra.mxu0 %v1043
    %1162 = vmatpush.msra.mxu0 %v1042
    %1163 = vmatpush.msra.mxu0 %v1041
    %1164 = vmatmul.f32.gmra.mxu0 %v1033
    %v1165 = vpop.f32.mrf.mxu0
    %v1166 = vadd.f32 %v1125, %v1165
    %1167 = vmatmul.f32.gmra.mxu0 %v1034
    %v1168 = vpop.f32.mrf.mxu0
    %v1169 = vadd.f32 %v1128, %v1168
    %1170 = vmatmul.f32.gmra.mxu0 %v1035
    %v1171 = vpop.f32.mrf.mxu0
    %v1172 = vadd.f32 %v1131, %v1171
    %1173 = vmatmul.f32.gmra.mxu0 %v1036
    %v1174 = vpop.f32.mrf.mxu0
    %v1175 = vadd.f32 %v1134, %v1174
    %1176 = vmatmul.f32.gmra.mxu0 %v1037
    %v1177 = vpop.f32.mrf.mxu0
    %v1178 = vadd.f32 %v1137, %v1177
    %1179 = vmatmul.f32.gmra.mxu0 %v1038
    %v1180 = vpop.f32.mrf.mxu0
    %v1181 = vadd.f32 %v1140, %v1180
    %1182 = vmatmul.f32.gmra.mxu0 %v1039
    %v1183 = vpop.f32.mrf.mxu0
    %v1184 = vadd.f32 %v1143, %v1183
    %1185 = vmatmul.f32.gmra.mxu0 %v1040
    %v1186 = vpop.f32.mrf.mxu0
    %v1187 = vadd.f32 %v1146, %v1186
    %1188 = vdwg.mxu0
    %v1189 = vld [vmem:[#allocation3 + $0x9] sm:$0xff]
    %v1190 = vld [vmem:[#allocation3 + $0x11] sm:$0xff]
    %v1191 = vld [vmem:[#allocation3 + $0x19] sm:$0xff]
    %v1192 = vld [vmem:[#allocation3 + $0x21] sm:$0xff]
    %v1193 = vld [vmem:[#allocation3 + $0x29] sm:$0xff]
    %v1194 = vld [vmem:[#allocation3 + $0x31] sm:$0xff]
    %v1195 = vld [vmem:[#allocation3 + $0x39] sm:$0xff]
    %v1196 = vld [vmem:[#allocation3 + $0x41] sm:$0xff]
    %s1197 = scalar_lea.vmem [#allocation10], 384
    %v1198 = vld [vmem:[%s1197] sm:$0xff]
    %v1199 = vld [vmem:[%s1197 + $0x8] sm:$0xff]
    %v1200 = vld [vmem:[%s1197 + $0x10] sm:$0xff]
    %v1201 = vld [vmem:[%s1197 + $0x18] sm:$0xff]
    %v1202 = vld [vmem:[%s1197 + $0x20] sm:$0xff]
    %v1203 = vld [vmem:[%s1197 + $0x28] sm:$0xff]
    %v1204 = vld [vmem:[%s1197 + $0x30] sm:$0xff]
    %v1205 = vld [vmem:[%s1197 + $0x38] sm:$0xff]
    %v1206 = vld [vmem:[%s1197 + $0x40] sm:$0xff]
    %v1207 = vld [vmem:[%s1197 + $0x48] sm:$0xff]
    %v1208 = vld [vmem:[%s1197 + $0x50] sm:$0xff]
    %v1209 = vld [vmem:[%s1197 + $0x58] sm:$0xff]
    %v1210 = vld [vmem:[%s1197 + $0x60] sm:$0xff]
    %v1211 = vld [vmem:[%s1197 + $0x68] sm:$0xff]
    %v1212 = vld [vmem:[%s1197 + $0x70] sm:$0xff]
    %v1213 = vld [vmem:[%s1197 + $0x78] sm:$0xff]
    %1214 = vmatpush.msra.mxu0 %v1213
    %1215 = vmatpush.msra.mxu0 %v1212
    %1216 = vmatpush.msra.mxu0 %v1211
    %1217 = vmatpush.msra.mxu0 %v1210
    %1218 = vmatpush.msra.mxu0 %v1209
    %1219 = vmatpush.msra.mxu0 %v1208
    %1220 = vmatpush.msra.mxu0 %v1207
    %1221 = vmatpush.msra.mxu0 %v1206
    %1222 = vmatpush.msra.mxu0 %v1205
    %1223 = vmatpush.msra.mxu0 %v1204
    %1224 = vmatpush.msra.mxu0 %v1203
    %1225 = vmatpush.msra.mxu0 %v1202
    %1226 = vmatpush.msra.mxu0 %v1201
    %1227 = vmatpush.msra.mxu0 %v1200
    %1228 = vmatpush.msra.mxu0 %v1199
    %1229 = vmatpush.msra.mxu0 %v1198
    %1230 = vmatmul.f32.gmra.mxu0 %v1189
    %v1231 = vpop.f32.mrf.mxu0
    %v1232 = vadd.f32 0.0, %v1231
    %1233 = vmatmul.f32.gmra.mxu0 %v1190
    %v1234 = vpop.f32.mrf.mxu0
    %v1235 = vadd.f32 0.0, %v1234
    %1236 = vmatmul.f32.gmra.mxu0 %v1191
    %v1237 = vpop.f32.mrf.mxu0
    %v1238 = vadd.f32 0.0, %v1237
    %1239 = vmatmul.f32.gmra.mxu0 %v1192
    %v1240 = vpop.f32.mrf.mxu0
    %v1241 = vadd.f32 0.0, %v1240
    %1242 = vmatmul.f32.gmra.mxu0 %v1193
    %v1243 = vpop.f32.mrf.mxu0
    %v1244 = vadd.f32 0.0, %v1243
    %1245 = vmatmul.f32.gmra.mxu0 %v1194
    %v1246 = vpop.f32.mrf.mxu0
    %v1247 = vadd.f32 0.0, %v1246
    %1248 = vmatmul.f32.gmra.mxu0 %v1195
    %v1249 = vpop.f32.mrf.mxu0
    %v1250 = vadd.f32 0.0, %v1249
    %1251 = vmatmul.f32.gmra.mxu0 %v1196
    %v1252 = vpop.f32.mrf.mxu0
    %v1253 = vadd.f32 0.0, %v1252
    %1254 = vdwg.mxu0
    %1255 = vmatpush.msra.mxu0 %v1081
    %1256 = vmatpush.msra.mxu0 %v1080
    %1257 = vmatpush.msra.mxu0 %v1079
    %1258 = vmatpush.msra.mxu0 %v1078
    %1259 = vmatpush.msra.mxu0 %v1077
    %1260 = vmatpush.msra.mxu0 %v1076
    %1261 = vmatpush.msra.mxu0 %v1075
    %1262 = vmatpush.msra.mxu0 %v1074
    %1263 = vmatpush.msra.mxu0 %v1073
    %1264 = vmatpush.msra.mxu0 %v1072
    %1265 = vmatpush.msra.mxu0 %v1071
    %1266 = vmatpush.msra.mxu0 %v1070
    %1267 = vmatpush.msra.mxu0 %v1069
    %1268 = vmatpush.msra.mxu0 %v1068
    %1269 = vmatpush.msra.mxu0 %v1067
    %1270 = vmatpush.msra.mxu0 %v1066
    %1271 = vmatmul.f32.gmra.mxu0 %v1057
    %v1272 = vpop.f32.mrf.mxu0
    %v1273 = vadd.f32 %v1232, %v1272
    %1274 = vmatmul.f32.gmra.mxu0 %v1058
    %v1275 = vpop.f32.mrf.mxu0
    %v1276 = vadd.f32 %v1235, %v1275
    %1277 = vmatmul.f32.gmra.mxu0 %v1059
    %v1278 = vpop.f32.mrf.mxu0
    %v1279 = vadd.f32 %v1238, %v1278
    %1280 = vmatmul.f32.gmra.mxu0 %v1060
    %v1281 = vpop.f32.mrf.mxu0
    %v1282 = vadd.f32 %v1241, %v1281
    %1283 = vmatmul.f32.gmra.mxu0 %v1061
    %v1284 = vpop.f32.mrf.mxu0
    %v1285 = vadd.f32 %v1244, %v1284
    %1286 = vmatmul.f32.gmra.mxu0 %v1062
    %v1287 = vpop.f32.mrf.mxu0
    %v1288 = vadd.f32 %v1247, %v1287
    %1289 = vmatmul.f32.gmra.mxu0 %v1063
    %v1290 = vpop.f32.mrf.mxu0
    %v1291 = vadd.f32 %v1250, %v1290
    %1292 = vmatmul.f32.gmra.mxu0 %v1064
    %v1293 = vpop.f32.mrf.mxu0
    %v1294 = vadd.f32 %v1253, %v1293
    %1295 = vdwg.mxu0
    %v1296 = vld [vmem:[#allocation3 + $0xa] sm:$0xff]
    %v1297 = vld [vmem:[#allocation3 + $0x12] sm:$0xff]
    %v1298 = vld [vmem:[#allocation3 + $0x1a] sm:$0xff]
    %v1299 = vld [vmem:[#allocation3 + $0x22] sm:$0xff]
    %v1300 = vld [vmem:[#allocation3 + $0x2a] sm:$0xff]
    %v1301 = vld [vmem:[#allocation3 + $0x32] sm:$0xff]
    %v1302 = vld [vmem:[#allocation3 + $0x3a] sm:$0xff]
    %v1303 = vld [vmem:[#allocation3 + $0x42] sm:$0xff]
    %s1304 = scalar_lea.vmem [#allocation10], 512
    %v1305 = vld [vmem:[%s1304] sm:$0xff]
    %v1306 = vld [vmem:[%s1304 + $0x8] sm:$0xff]
    %v1307 = vld [vmem:[%s1304 + $0x10] sm:$0xff]
    %v1308 = vld [vmem:[%s1304 + $0x18] sm:$0xff]
    %v1309 = vld [vmem:[%s1304 + $0x20] sm:$0xff]
    %v1310 = vld [vmem:[%s1304 + $0x28] sm:$0xff]
    %v1311 = vld [vmem:[%s1304 + $0x30] sm:$0xff]
    %v1312 = vld [vmem:[%s1304 + $0x38] sm:$0xff]
    %v1313 = vld [vmem:[%s1304 + $0x40] sm:$0xff]
    %v1314 = vld [vmem:[%s1304 + $0x48] sm:$0xff]
    %v1315 = vld [vmem:[%s1304 + $0x50] sm:$0xff]
    %v1316 = vld [vmem:[%s1304 + $0x58] sm:$0xff]
    %v1317 = vld [vmem:[%s1304 + $0x60] sm:$0xff]
    %v1318 = vld [vmem:[%s1304 + $0x68] sm:$0xff]
    %v1319 = vld [vmem:[%s1304 + $0x70] sm:$0xff]
    %v1320 = vld [vmem:[%s1304 + $0x78] sm:$0xff]
    %1321 = vmatpush.msra.mxu0 %v1320
    %1322 = vmatpush.msra.mxu0 %v1319
    %1323 = vmatpush.msra.mxu0 %v1318
    %1324 = vmatpush.msra.mxu0 %v1317
    %1325 = vmatpush.msra.mxu0 %v1316
    %1326 = vmatpush.msra.mxu0 %v1315
    %1327 = vmatpush.msra.mxu0 %v1314
    %1328 = vmatpush.msra.mxu0 %v1313
    %1329 = vmatpush.msra.mxu0 %v1312
    %1330 = vmatpush.msra.mxu0 %v1311
    %1331 = vmatpush.msra.mxu0 %v1310
    %1332 = vmatpush.msra.mxu0 %v1309
    %1333 = vmatpush.msra.mxu0 %v1308
    %1334 = vmatpush.msra.mxu0 %v1307
    %1335 = vmatpush.msra.mxu0 %v1306
    %1336 = vmatpush.msra.mxu0 %v1305
    %1337 = vmatmul.f32.gmra.mxu0 %v1296
    %v1338 = vpop.f32.mrf.mxu0
    %v1339 = vadd.f32 0.0, %v1338
    %1340 = vmatmul.f32.gmra.mxu0 %v1297
    %v1341 = vpop.f32.mrf.mxu0
    %v1342 = vadd.f32 0.0, %v1341
    %1343 = vmatmul.f32.gmra.mxu0 %v1298
    %v1344 = vpop.f32.mrf.mxu0
    %v1345 = vadd.f32 0.0, %v1344
    %1346 = vmatmul.f32.gmra.mxu0 %v1299
    %v1347 = vpop.f32.mrf.mxu0
    %v1348 = vadd.f32 0.0, %v1347
    %1349 = vmatmul.f32.gmra.mxu0 %v1300
    %v1350 = vpop.f32.mrf.mxu0
    %v1351 = vadd.f32 0.0, %v1350
    %1352 = vmatmul.f32.gmra.mxu0 %v1301
    %v1353 = vpop.f32.mrf.mxu0
    %v1354 = vadd.f32 0.0, %v1353
    %1355 = vmatmul.f32.gmra.mxu0 %v1302
    %v1356 = vpop.f32.mrf.mxu0
    %v1357 = vadd.f32 0.0, %v1356
    %1358 = vmatmul.f32.gmra.mxu0 %v1303
    %v1359 = vpop.f32.mrf.mxu0
    %v1360 = vadd.f32 0.0, %v1359
    %1361 = vdwg.mxu0
    %v1362 = vadd.f32 %v1166, %v1339
    %v1363 = vadd.f32 %v1169, %v1342
    %v1364 = vadd.f32 %v1172, %v1345
    %v1365 = vadd.f32 %v1175, %v1348
    %v1366 = vadd.f32 %v1178, %v1351
    %v1367 = vadd.f32 %v1181, %v1354
    %v1368 = vadd.f32 %v1184, %v1357
    %v1369 = vadd.f32 %v1187, %v1360
    %v1370 = vld [vmem:[#allocation3 + $0xb] sm:$0xff]
    %v1371 = vld [vmem:[#allocation3 + $0x13] sm:$0xff]
    %v1372 = vld [vmem:[#allocation3 + $0x1b] sm:$0xff]
    %v1373 = vld [vmem:[#allocation3 + $0x23] sm:$0xff]
    %v1374 = vld [vmem:[#allocation3 + $0x2b] sm:$0xff]
    %v1375 = vld [vmem:[#allocation3 + $0x33] sm:$0xff]
    %v1376 = vld [vmem:[#allocation3 + $0x3b] sm:$0xff]
    %v1377 = vld [vmem:[#allocation3 + $0x43] sm:$0xff]
    %s1378 = scalar_lea.vmem [#allocation10], 640
    %v1379 = vld [vmem:[%s1378] sm:$0xff]
    %v1380 = vld [vmem:[%s1378 + $0x8] sm:$0xff]
    %v1381 = vld [vmem:[%s1378 + $0x10] sm:$0xff]
    %v1382 = vld [vmem:[%s1378 + $0x18] sm:$0xff]
    %v1383 = vld [vmem:[%s1378 + $0x20] sm:$0xff]
    %v1384 = vld [vmem:[%s1378 + $0x28] sm:$0xff]
    %v1385 = vld [vmem:[%s1378 + $0x30] sm:$0xff]
    %v1386 = vld [vmem:[%s1378 + $0x38] sm:$0xff]
    %v1387 = vld [vmem:[%s1378 + $0x40] sm:$0xff]
    %v1388 = vld [vmem:[%s1378 + $0x48] sm:$0xff]
    %v1389 = vld [vmem:[%s1378 + $0x50] sm:$0xff]
    %v1390 = vld [vmem:[%s1378 + $0x58] sm:$0xff]
    %v1391 = vld [vmem:[%s1378 + $0x60] sm:$0xff]
    %v1392 = vld [vmem:[%s1378 + $0x68] sm:$0xff]
    %v1393 = vld [vmem:[%s1378 + $0x70] sm:$0xff]
    %v1394 = vld [vmem:[%s1378 + $0x78] sm:$0xff]
    %1395 = vmatpush.msra.mxu0 %v1394
    %1396 = vmatpush.msra.mxu0 %v1393
    %1397 = vmatpush.msra.mxu0 %v1392
    %1398 = vmatpush.msra.mxu0 %v1391
    %1399 = vmatpush.msra.mxu0 %v1390
    %1400 = vmatpush.msra.mxu0 %v1389
    %1401 = vmatpush.msra.mxu0 %v1388
    %1402 = vmatpush.msra.mxu0 %v1387
    %1403 = vmatpush.msra.mxu0 %v1386
    %1404 = vmatpush.msra.mxu0 %v1385
    %1405 = vmatpush.msra.mxu0 %v1384
    %1406 = vmatpush.msra.mxu0 %v1383
    %1407 = vmatpush.msra.mxu0 %v1382
    %1408 = vmatpush.msra.mxu0 %v1381
    %1409 = vmatpush.msra.mxu0 %v1380
    %1410 = vmatpush.msra.mxu0 %v1379
    %1411 = vmatmul.f32.gmra.mxu0 %v1370
    %v1412 = vpop.f32.mrf.mxu0
    %v1413 = vadd.f32 0.0, %v1412
    %1414 = vmatmul.f32.gmra.mxu0 %v1371
    %v1415 = vpop.f32.mrf.mxu0
    %v1416 = vadd.f32 0.0, %v1415
    %1417 = vmatmul.f32.gmra.mxu0 %v1372
    %v1418 = vpop.f32.mrf.mxu0
    %v1419 = vadd.f32 0.0, %v1418
    %1420 = vmatmul.f32.gmra.mxu0 %v1373
    %v1421 = vpop.f32.mrf.mxu0
    %v1422 = vadd.f32 0.0, %v1421
    %1423 = vmatmul.f32.gmra.mxu0 %v1374
    %v1424 = vpop.f32.mrf.mxu0
    %v1425 = vadd.f32 0.0, %v1424
    %1426 = vmatmul.f32.gmra.mxu0 %v1375
    %v1427 = vpop.f32.mrf.mxu0
    %v1428 = vadd.f32 0.0, %v1427
    %1429 = vmatmul.f32.gmra.mxu0 %v1376
    %v1430 = vpop.f32.mrf.mxu0
    %v1431 = vadd.f32 0.0, %v1430
    %1432 = vmatmul.f32.gmra.mxu0 %v1377
    %v1433 = vpop.f32.mrf.mxu0
    %v1434 = vadd.f32 0.0, %v1433
    %1435 = vdwg.mxu0
    %v1436 = vadd.f32 %v1273, %v1413
    %v1437 = vadd.f32 %v1276, %v1416
    %v1438 = vadd.f32 %v1279, %v1419
    %v1439 = vadd.f32 %v1282, %v1422
    %v1440 = vadd.f32 %v1285, %v1425
    %v1441 = vadd.f32 %v1288, %v1428
    %v1442 = vadd.f32 %v1291, %v1431
    %v1443 = vadd.f32 %v1294, %v1434
    %v1444 = vld [vmem:[#allocation3 + $0xc] sm:$0xff]
    %v1445 = vld [vmem:[#allocation3 + $0x14] sm:$0xff]
    %v1446 = vld [vmem:[#allocation3 + $0x1c] sm:$0xff]
    %v1447 = vld [vmem:[#allocation3 + $0x24] sm:$0xff]
    %v1448 = vld [vmem:[#allocation3 + $0x2c] sm:$0xff]
    %v1449 = vld [vmem:[#allocation3 + $0x34] sm:$0xff]
    %v1450 = vld [vmem:[#allocation3 + $0x3c] sm:$0xff]
    %v1451 = vld [vmem:[#allocation3 + $0x44] sm:$0xff]
    %s1452 = scalar_lea.vmem [#allocation10], 768
    %v1453 = vld [vmem:[%s1452] sm:$0xff]
    %v1454 = vld [vmem:[%s1452 + $0x8] sm:$0xff]
    %v1455 = vld [vmem:[%s1452 + $0x10] sm:$0xff]
    %v1456 = vld [vmem:[%s1452 + $0x18] sm:$0xff]
    %v1457 = vld [vmem:[%s1452 + $0x20] sm:$0xff]
    %v1458 = vld [vmem:[%s1452 + $0x28] sm:$0xff]
    %v1459 = vld [vmem:[%s1452 + $0x30] sm:$0xff]
    %v1460 = vld [vmem:[%s1452 + $0x38] sm:$0xff]
    %v1461 = vld [vmem:[%s1452 + $0x40] sm:$0xff]
    %v1462 = vld [vmem:[%s1452 + $0x48] sm:$0xff]
    %v1463 = vld [vmem:[%s1452 + $0x50] sm:$0xff]
    %v1464 = vld [vmem:[%s1452 + $0x58] sm:$0xff]
    %v1465 = vld [vmem:[%s1452 + $0x60] sm:$0xff]
    %v1466 = vld [vmem:[%s1452 + $0x68] sm:$0xff]
    %v1467 = vld [vmem:[%s1452 + $0x70] sm:$0xff]
    %v1468 = vld [vmem:[%s1452 + $0x78] sm:$0xff]
    %1469 = vmatpush.msra.mxu0 %v1468
    %1470 = vmatpush.msra.mxu0 %v1467
    %1471 = vmatpush.msra.mxu0 %v1466
    %1472 = vmatpush.msra.mxu0 %v1465
    %1473 = vmatpush.msra.mxu0 %v1464
    %1474 = vmatpush.msra.mxu0 %v1463
    %1475 = vmatpush.msra.mxu0 %v1462
    %1476 = vmatpush.msra.mxu0 %v1461
    %1477 = vmatpush.msra.mxu0 %v1460
    %1478 = vmatpush.msra.mxu0 %v1459
    %1479 = vmatpush.msra.mxu0 %v1458
    %1480 = vmatpush.msra.mxu0 %v1457
    %1481 = vmatpush.msra.mxu0 %v1456
    %1482 = vmatpush.msra.mxu0 %v1455
    %1483 = vmatpush.msra.mxu0 %v1454
    %1484 = vmatpush.msra.mxu0 %v1453
    %1485 = vmatmul.f32.gmra.mxu0 %v1444
    %v1486 = vpop.f32.mrf.mxu0
    %v1487 = vadd.f32 0.0, %v1486
    %1488 = vmatmul.f32.gmra.mxu0 %v1445
    %v1489 = vpop.f32.mrf.mxu0
    %v1490 = vadd.f32 0.0, %v1489
    %1491 = vmatmul.f32.gmra.mxu0 %v1446
    %v1492 = vpop.f32.mrf.mxu0
    %v1493 = vadd.f32 0.0, %v1492
    %1494 = vmatmul.f32.gmra.mxu0 %v1447
    %v1495 = vpop.f32.mrf.mxu0
    %v1496 = vadd.f32 0.0, %v1495
    %1497 = vmatmul.f32.gmra.mxu0 %v1448
    %v1498 = vpop.f32.mrf.mxu0
    %v1499 = vadd.f32 0.0, %v1498
    %1500 = vmatmul.f32.gmra.mxu0 %v1449
    %v1501 = vpop.f32.mrf.mxu0
    %v1502 = vadd.f32 0.0, %v1501
    %1503 = vmatmul.f32.gmra.mxu0 %v1450
    %v1504 = vpop.f32.mrf.mxu0
    %v1505 = vadd.f32 0.0, %v1504
    %1506 = vmatmul.f32.gmra.mxu0 %v1451
    %v1507 = vpop.f32.mrf.mxu0
    %v1508 = vadd.f32 0.0, %v1507
    %1509 = vdwg.mxu0
    %v1510 = vadd.f32 %v1362, %v1487
    %v1511 = vadd.f32 %v1363, %v1490
    %v1512 = vadd.f32 %v1364, %v1493
    %v1513 = vadd.f32 %v1365, %v1496
    %v1514 = vadd.f32 %v1366, %v1499
    %v1515 = vadd.f32 %v1367, %v1502
    %v1516 = vadd.f32 %v1368, %v1505
    %v1517 = vadd.f32 %v1369, %v1508
    %v1518 = vadd.f32 %v1510, %v1436
    %v1519 = vadd.f32 %v1511, %v1437
    %v1520 = vadd.f32 %v1512, %v1438
    %v1521 = vadd.f32 %v1513, %v1439
    %v1522 = vadd.f32 %v1514, %v1440
    %v1523 = vadd.f32 %v1515, %v1441
    %v1524 = vadd.f32 %v1516, %v1442
    %v1525 = vadd.f32 %v1517, %v1443
    %v1527 = vperm.slane %v1032, 0
    %v1529 = vadd.f32 %v1518, %v1527
    %v1530 = vadd.f32 %v1519, %v1527
    %v1531 = vadd.f32 %v1520, %v1527
    %v1532 = vadd.f32 %v1521, %v1527
    %v1533 = vadd.f32 %v1522, %v1527
    %v1534 = vadd.f32 %v1523, %v1527
    %v1535 = vadd.f32 %v1524, %v1527
    %v1536 = vadd.f32 %v1525, %v1527
    %v1537 = vmax.f32 %v1529, 0.0
    %v1538 = vmax.f32 %v1530, 0.0
    %v1539 = vmax.f32 %v1531, 0.0
    %v1540 = vmax.f32 %v1532, 0.0
    %v1541 = vmax.f32 %v1533, 0.0
    %v1542 = vmax.f32 %v1534, 0.0
    %v1543 = vmax.f32 %v1535, 0.0
    %v1544 = vmax.f32 %v1536, 0.0
    %s1545 = scalar_lea.vmem [#allocation5], 128
    %v1546 = vld [vmem:[%s1545] sm:$0xff]
    %v1547 = vld [vmem:[%s1545 + $0x8] sm:$0xff]
    %v1548 = vld [vmem:[%s1545 + $0x10] sm:$0xff]
    %v1549 = vld [vmem:[%s1545 + $0x18] sm:$0xff]
    %v1550 = vld [vmem:[%s1545 + $0x20] sm:$0xff]
    %v1551 = vld [vmem:[%s1545 + $0x28] sm:$0xff]
    %v1552 = vld [vmem:[%s1545 + $0x30] sm:$0xff]
    %v1553 = vld [vmem:[%s1545 + $0x38] sm:$0xff]
    %v1554 = vmul.f32 %v1537, %v1546
    %v1555 = vmul.f32 %v1538, %v1547
    %v1556 = vmul.f32 %v1539, %v1548
    %v1557 = vmul.f32 %v1540, %v1549
    %v1558 = vmul.f32 %v1541, %v1550
    %v1559 = vmul.f32 %v1542, %v1551
    %v1560 = vmul.f32 %v1543, %v1552
    %v1561 = vmul.f32 %v1544, %v1553
    %1562 = vst [vmem:[#allocation2 + $0x8] sm:$0xff] %v1554
    %1563 = vst [vmem:[#allocation2 + $0x10] sm:$0xff] %v1555
    %1564 = vst [vmem:[#allocation2 + $0x18] sm:$0xff] %v1556
    %1565 = vst [vmem:[#allocation2 + $0x20] sm:$0xff] %v1557
    %1566 = vst [vmem:[#allocation2 + $0x28] sm:$0xff] %v1558
    %1567 = vst [vmem:[#allocation2 + $0x30] sm:$0xff] %v1559
    %1568 = vst [vmem:[#allocation2 + $0x38] sm:$0xff] %v1560
    %1569 = vst [vmem:[#allocation2 + $0x40] sm:$0xff] %v1561
    %v1570 = vld [vmem:[%s9] sm:$0x1]
    %v1571 = vld [vmem:[#allocation2 + $0x6] sm:$0xff]
    %v1572 = vld [vmem:[#allocation2 + $0xe] sm:$0xff]
    %v1573 = vld [vmem:[#allocation2 + $0x16] sm:$0xff]
    %v1574 = vld [vmem:[#allocation2 + $0x1e] sm:$0xff]
    %v1575 = vld [vmem:[#allocation2 + $0x26] sm:$0xff]
    %v1576 = vld [vmem:[#allocation2 + $0x2e] sm:$0xff]
    %v1577 = vld [vmem:[#allocation2 + $0x36] sm:$0xff]
    %v1578 = vld [vmem:[#allocation2 + $0x3e] sm:$0xff]
    %v1579 = vld [vmem:[#allocation12] sm:$0xff]
    %v1580 = vld [vmem:[#allocation12 + $0x8] sm:$0xff]
    %v1581 = vld [vmem:[#allocation12 + $0x10] sm:$0xff]
    %v1582 = vld [vmem:[#allocation12 + $0x18] sm:$0xff]
    %v1583 = vld [vmem:[#allocation12 + $0x20] sm:$0xff]
    %v1584 = vld [vmem:[#allocation12 + $0x28] sm:$0xff]
    %v1585 = vld [vmem:[#allocation12 + $0x30] sm:$0xff]
    %v1586 = vld [vmem:[#allocation12 + $0x38] sm:$0xff]
    %v1587 = vld [vmem:[#allocation12 + $0x40] sm:$0xff]
    %v1588 = vld [vmem:[#allocation12 + $0x48] sm:$0xff]
    %v1589 = vld [vmem:[#allocation12 + $0x50] sm:$0xff]
    %v1590 = vld [vmem:[#allocation12 + $0x58] sm:$0xff]
    %v1591 = vld [vmem:[#allocation12 + $0x60] sm:$0xff]
    %v1592 = vld [vmem:[#allocation12 + $0x68] sm:$0xff]
    %v1593 = vld [vmem:[#allocation12 + $0x70] sm:$0xff]
    %v1594 = vld [vmem:[#allocation12 + $0x78] sm:$0xff]
    %v1595 = vld [vmem:[#allocation2 + $0x7] sm:$0xff]
    %v1596 = vld [vmem:[#allocation2 + $0xf] sm:$0xff]
    %v1597 = vld [vmem:[#allocation2 + $0x17] sm:$0xff]
    %v1598 = vld [vmem:[#allocation2 + $0x1f] sm:$0xff]
    %v1599 = vld [vmem:[#allocation2 + $0x27] sm:$0xff]
    %v1600 = vld [vmem:[#allocation2 + $0x2f] sm:$0xff]
    %v1601 = vld [vmem:[#allocation2 + $0x37] sm:$0xff]
    %v1602 = vld [vmem:[#allocation2 + $0x3f] sm:$0xff]
    %s1603 = scalar_lea.vmem [#allocation12], 128
    %v1604 = vld [vmem:[%s1603] sm:$0xff]
    %v1605 = vld [vmem:[%s1603 + $0x8] sm:$0xff]
    %v1606 = vld [vmem:[%s1603 + $0x10] sm:$0xff]
    %v1607 = vld [vmem:[%s1603 + $0x18] sm:$0xff]
    %v1608 = vld [vmem:[%s1603 + $0x20] sm:$0xff]
    %v1609 = vld [vmem:[%s1603 + $0x28] sm:$0xff]
    %v1610 = vld [vmem:[%s1603 + $0x30] sm:$0xff]
    %v1611 = vld [vmem:[%s1603 + $0x38] sm:$0xff]
    %v1612 = vld [vmem:[%s1603 + $0x40] sm:$0xff]
    %v1613 = vld [vmem:[%s1603 + $0x48] sm:$0xff]
    %v1614 = vld [vmem:[%s1603 + $0x50] sm:$0xff]
    %v1615 = vld [vmem:[%s1603 + $0x58] sm:$0xff]
    %v1616 = vld [vmem:[%s1603 + $0x60] sm:$0xff]
    %v1617 = vld [vmem:[%s1603 + $0x68] sm:$0xff]
    %v1618 = vld [vmem:[%s1603 + $0x70] sm:$0xff]
    %v1619 = vld [vmem:[%s1603 + $0x78] sm:$0xff]
    %v1620 = vld [vmem:[#allocation2 + $0x8] sm:$0xff]
    %v1621 = vld [vmem:[#allocation2 + $0x10] sm:$0xff]
    %v1622 = vld [vmem:[#allocation2 + $0x18] sm:$0xff]
    %v1623 = vld [vmem:[#allocation2 + $0x20] sm:$0xff]
    %v1624 = vld [vmem:[#allocation2 + $0x28] sm:$0xff]
    %v1625 = vld [vmem:[#allocation2 + $0x30] sm:$0xff]
    %v1626 = vld [vmem:[#allocation2 + $0x38] sm:$0xff]
    %v1627 = vld [vmem:[#allocation2 + $0x40] sm:$0xff]
    %s1628 = scalar_lea.vmem [#allocation12], 256
    %v1629 = vld [vmem:[%s1628] sm:$0xff]
    %v1630 = vld [vmem:[%s1628 + $0x8] sm:$0xff]
    %v1631 = vld [vmem:[%s1628 + $0x10] sm:$0xff]
    %v1632 = vld [vmem:[%s1628 + $0x18] sm:$0xff]
    %v1633 = vld [vmem:[%s1628 + $0x20] sm:$0xff]
    %v1634 = vld [vmem:[%s1628 + $0x28] sm:$0xff]
    %v1635 = vld [vmem:[%s1628 + $0x30] sm:$0xff]
    %v1636 = vld [vmem:[%s1628 + $0x38] sm:$0xff]
    %v1637 = vld [vmem:[%s1628 + $0x40] sm:$0xff]
    %v1638 = vld [vmem:[%s1628 + $0x48] sm:$0xff]
    %v1639 = vld [vmem:[%s1628 + $0x50] sm:$0xff]
    %v1640 = vld [vmem:[%s1628 + $0x58] sm:$0xff]
    %v1641 = vld [vmem:[%s1628 + $0x60] sm:$0xff]
    %v1642 = vld [vmem:[%s1628 + $0x68] sm:$0xff]
    %v1643 = vld [vmem:[%s1628 + $0x70] sm:$0xff]
    %v1644 = vld [vmem:[%s1628 + $0x78] sm:$0xff]
    %1645 = vmatpush.msra.mxu0 %v1644
    %1646 = vmatpush.msra.mxu0 %v1643
    %1647 = vmatpush.msra.mxu0 %v1642
    %1648 = vmatpush.msra.mxu0 %v1641
    %1649 = vmatpush.msra.mxu0 %v1640
    %1650 = vmatpush.msra.mxu0 %v1639
    %1651 = vmatpush.msra.mxu0 %v1638
    %1652 = vmatpush.msra.mxu0 %v1637
    %1653 = vmatpush.msra.mxu0 %v1636
    %1654 = vmatpush.msra.mxu0 %v1635
    %1655 = vmatpush.msra.mxu0 %v1634
    %1656 = vmatpush.msra.mxu0 %v1633
    %1657 = vmatpush.msra.mxu0 %v1632
    %1658 = vmatpush.msra.mxu0 %v1631
    %1659 = vmatpush.msra.mxu0 %v1630
    %1660 = vmatpush.msra.mxu0 %v1629
    %1661 = vmatmul.f32.gmra.mxu0 %v1620
    %v1662 = vpop.f32.mrf.mxu0
    %v1663 = vadd.f32 0.0, %v1662
    %1664 = vmatmul.f32.gmra.mxu0 %v1621
    %v1665 = vpop.f32.mrf.mxu0
    %v1666 = vadd.f32 0.0, %v1665
    %1667 = vmatmul.f32.gmra.mxu0 %v1622
    %v1668 = vpop.f32.mrf.mxu0
    %v1669 = vadd.f32 0.0, %v1668
    %1670 = vmatmul.f32.gmra.mxu0 %v1623
    %v1671 = vpop.f32.mrf.mxu0
    %v1672 = vadd.f32 0.0, %v1671
    %1673 = vmatmul.f32.gmra.mxu0 %v1624
    %v1674 = vpop.f32.mrf.mxu0
    %v1675 = vadd.f32 0.0, %v1674
    %1676 = vmatmul.f32.gmra.mxu0 %v1625
    %v1677 = vpop.f32.mrf.mxu0
    %v1678 = vadd.f32 0.0, %v1677
    %1679 = vmatmul.f32.gmra.mxu0 %v1626
    %v1680 = vpop.f32.mrf.mxu0
    %v1681 = vadd.f32 0.0, %v1680
    %1682 = vmatmul.f32.gmra.mxu0 %v1627
    %v1683 = vpop.f32.mrf.mxu0
    %v1684 = vadd.f32 0.0, %v1683
    %1685 = vdwg.mxu0
    %1686 = vmatpush.msra.mxu0 %v1594
    %1687 = vmatpush.msra.mxu0 %v1593
    %1688 = vmatpush.msra.mxu0 %v1592
    %1689 = vmatpush.msra.mxu0 %v1591
    %1690 = vmatpush.msra.mxu0 %v1590
    %1691 = vmatpush.msra.mxu0 %v1589
    %1692 = vmatpush.msra.mxu0 %v1588
    %1693 = vmatpush.msra.mxu0 %v1587
    %1694 = vmatpush.msra.mxu0 %v1586
    %1695 = vmatpush.msra.mxu0 %v1585
    %1696 = vmatpush.msra.mxu0 %v1584
    %1697 = vmatpush.msra.mxu0 %v1583
    %1698 = vmatpush.msra.mxu0 %v1582
    %1699 = vmatpush.msra.mxu0 %v1581
    %1700 = vmatpush.msra.mxu0 %v1580
    %1701 = vmatpush.msra.mxu0 %v1579
    %1702 = vmatmul.f32.gmra.mxu0 %v1571
    %v1703 = vpop.f32.mrf.mxu0
    %v1704 = vadd.f32 %v1663, %v1703
    %1705 = vmatmul.f32.gmra.mxu0 %v1572
    %v1706 = vpop.f32.mrf.mxu0
    %v1707 = vadd.f32 %v1666, %v1706
    %1708 = vmatmul.f32.gmra.mxu0 %v1573
    %v1709 = vpop.f32.mrf.mxu0
    %v1710 = vadd.f32 %v1669, %v1709
    %1711 = vmatmul.f32.gmra.mxu0 %v1574
    %v1712 = vpop.f32.mrf.mxu0
    %v1713 = vadd.f32 %v1672, %v1712
    %1714 = vmatmul.f32.gmra.mxu0 %v1575
    %v1715 = vpop.f32.mrf.mxu0
    %v1716 = vadd.f32 %v1675, %v1715
    %1717 = vmatmul.f32.gmra.mxu0 %v1576
    %v1718 = vpop.f32.mrf.mxu0
    %v1719 = vadd.f32 %v1678, %v1718
    %1720 = vmatmul.f32.gmra.mxu0 %v1577
    %v1721 = vpop.f32.mrf.mxu0
    %v1722 = vadd.f32 %v1681, %v1721
    %1723 = vmatmul.f32.gmra.mxu0 %v1578
    %v1724 = vpop.f32.mrf.mxu0
    %v1725 = vadd.f32 %v1684, %v1724
    %1726 = vdwg.mxu0
    %v1727 = vld [vmem:[#allocation2 + $0x9] sm:$0xff]
    %v1728 = vld [vmem:[#allocation2 + $0x11] sm:$0xff]
    %v1729 = vld [vmem:[#allocation2 + $0x19] sm:$0xff]
    %v1730 = vld [vmem:[#allocation2 + $0x21] sm:$0xff]
    %v1731 = vld [vmem:[#allocation2 + $0x29] sm:$0xff]
    %v1732 = vld [vmem:[#allocation2 + $0x31] sm:$0xff]
    %v1733 = vld [vmem:[#allocation2 + $0x39] sm:$0xff]
    %v1734 = vld [vmem:[#allocation2 + $0x41] sm:$0xff]
    %s1735 = scalar_lea.vmem [#allocation12], 384
    %v1736 = vld [vmem:[%s1735] sm:$0xff]
    %v1737 = vld [vmem:[%s1735 + $0x8] sm:$0xff]
    %v1738 = vld [vmem:[%s1735 + $0x10] sm:$0xff]
    %v1739 = vld [vmem:[%s1735 + $0x18] sm:$0xff]
    %v1740 = vld [vmem:[%s1735 + $0x20] sm:$0xff]
    %v1741 = vld [vmem:[%s1735 + $0x28] sm:$0xff]
    %v1742 = vld [vmem:[%s1735 + $0x30] sm:$0xff]
    %v1743 = vld [vmem:[%s1735 + $0x38] sm:$0xff]
    %v1744 = vld [vmem:[%s1735 + $0x40] sm:$0xff]
    %v1745 = vld [vmem:[%s1735 + $0x48] sm:$0xff]
    %v1746 = vld [vmem:[%s1735 + $0x50] sm:$0xff]
    %v1747 = vld [vmem:[%s1735 + $0x58] sm:$0xff]
    %v1748 = vld [vmem:[%s1735 + $0x60] sm:$0xff]
    %v1749 = vld [vmem:[%s1735 + $0x68] sm:$0xff]
    %v1750 = vld [vmem:[%s1735 + $0x70] sm:$0xff]
    %v1751 = vld [vmem:[%s1735 + $0x78] sm:$0xff]
    %1752 = vmatpush.msra.mxu0 %v1751
    %1753 = vmatpush.msra.mxu0 %v1750
    %1754 = vmatpush.msra.mxu0 %v1749
    %1755 = vmatpush.msra.mxu0 %v1748
    %1756 = vmatpush.msra.mxu0 %v1747
    %1757 = vmatpush.msra.mxu0 %v1746
    %1758 = vmatpush.msra.mxu0 %v1745
    %1759 = vmatpush.msra.mxu0 %v1744
    %1760 = vmatpush.msra.mxu0 %v1743
    %1761 = vmatpush.msra.mxu0 %v1742
    %1762 = vmatpush.msra.mxu0 %v1741
    %1763 = vmatpush.msra.mxu0 %v1740
    %1764 = vmatpush.msra.mxu0 %v1739
    %1765 = vmatpush.msra.mxu0 %v1738
    %1766 = vmatpush.msra.mxu0 %v1737
    %1767 = vmatpush.msra.mxu0 %v1736
    %1768 = vmatmul.f32.gmra.mxu0 %v1727
    %v1769 = vpop.f32.mrf.mxu0
    %v1770 = vadd.f32 0.0, %v1769
    %1771 = vmatmul.f32.gmra.mxu0 %v1728
    %v1772 = vpop.f32.mrf.mxu0
    %v1773 = vadd.f32 0.0, %v1772
    %1774 = vmatmul.f32.gmra.mxu0 %v1729
    %v1775 = vpop.f32.mrf.mxu0
    %v1776 = vadd.f32 0.0, %v1775
    %1777 = vmatmul.f32.gmra.mxu0 %v1730
    %v1778 = vpop.f32.mrf.mxu0
    %v1779 = vadd.f32 0.0, %v1778
    %1780 = vmatmul.f32.gmra.mxu0 %v1731
    %v1781 = vpop.f32.mrf.mxu0
    %v1782 = vadd.f32 0.0, %v1781
    %1783 = vmatmul.f32.gmra.mxu0 %v1732
    %v1784 = vpop.f32.mrf.mxu0
    %v1785 = vadd.f32 0.0, %v1784
    %1786 = vmatmul.f32.gmra.mxu0 %v1733
    %v1787 = vpop.f32.mrf.mxu0
    %v1788 = vadd.f32 0.0, %v1787
    %1789 = vmatmul.f32.gmra.mxu0 %v1734
    %v1790 = vpop.f32.mrf.mxu0
    %v1791 = vadd.f32 0.0, %v1790
    %1792 = vdwg.mxu0
    %1793 = vmatpush.msra.mxu0 %v1619
    %1794 = vmatpush.msra.mxu0 %v1618
    %1795 = vmatpush.msra.mxu0 %v1617
    %1796 = vmatpush.msra.mxu0 %v1616
    %1797 = vmatpush.msra.mxu0 %v1615
    %1798 = vmatpush.msra.mxu0 %v1614
    %1799 = vmatpush.msra.mxu0 %v1613
    %1800 = vmatpush.msra.mxu0 %v1612
    %1801 = vmatpush.msra.mxu0 %v1611
    %1802 = vmatpush.msra.mxu0 %v1610
    %1803 = vmatpush.msra.mxu0 %v1609
    %1804 = vmatpush.msra.mxu0 %v1608
    %1805 = vmatpush.msra.mxu0 %v1607
    %1806 = vmatpush.msra.mxu0 %v1606
    %1807 = vmatpush.msra.mxu0 %v1605
    %1808 = vmatpush.msra.mxu0 %v1604
    %1809 = vmatmul.f32.gmra.mxu0 %v1595
    %v1810 = vpop.f32.mrf.mxu0
    %v1811 = vadd.f32 %v1770, %v1810
    %1812 = vmatmul.f32.gmra.mxu0 %v1596
    %v1813 = vpop.f32.mrf.mxu0
    %v1814 = vadd.f32 %v1773, %v1813
    %1815 = vmatmul.f32.gmra.mxu0 %v1597
    %v1816 = vpop.f32.mrf.mxu0
    %v1817 = vadd.f32 %v1776, %v1816
    %1818 = vmatmul.f32.gmra.mxu0 %v1598
    %v1819 = vpop.f32.mrf.mxu0
    %v1820 = vadd.f32 %v1779, %v1819
    %1821 = vmatmul.f32.gmra.mxu0 %v1599
    %v1822 = vpop.f32.mrf.mxu0
    %v1823 = vadd.f32 %v1782, %v1822
    %1824 = vmatmul.f32.gmra.mxu0 %v1600
    %v1825 = vpop.f32.mrf.mxu0
    %v1826 = vadd.f32 %v1785, %v1825
    %1827 = vmatmul.f32.gmra.mxu0 %v1601
    %v1828 = vpop.f32.mrf.mxu0
    %v1829 = vadd.f32 %v1788, %v1828
    %1830 = vmatmul.f32.gmra.mxu0 %v1602
    %v1831 = vpop.f32.mrf.mxu0
    %v1832 = vadd.f32 %v1791, %v1831
    %1833 = vdwg.mxu0
    %v1834 = vld [vmem:[#allocation2 + $0xa] sm:$0xff]
    %v1835 = vld [vmem:[#allocation2 + $0x12] sm:$0xff]
    %v1836 = vld [vmem:[#allocation2 + $0x1a] sm:$0xff]
    %v1837 = vld [vmem:[#allocation2 + $0x22] sm:$0xff]
    %v1838 = vld [vmem:[#allocation2 + $0x2a] sm:$0xff]
    %v1839 = vld [vmem:[#allocation2 + $0x32] sm:$0xff]
    %v1840 = vld [vmem:[#allocation2 + $0x3a] sm:$0xff]
    %v1841 = vld [vmem:[#allocation2 + $0x42] sm:$0xff]
    %s1842 = scalar_lea.vmem [#allocation12], 512
    %v1843 = vld [vmem:[%s1842] sm:$0xff]
    %v1844 = vld [vmem:[%s1842 + $0x8] sm:$0xff]
    %v1845 = vld [vmem:[%s1842 + $0x10] sm:$0xff]
    %v1846 = vld [vmem:[%s1842 + $0x18] sm:$0xff]
    %v1847 = vld [vmem:[%s1842 + $0x20] sm:$0xff]
    %v1848 = vld [vmem:[%s1842 + $0x28] sm:$0xff]
    %v1849 = vld [vmem:[%s1842 + $0x30] sm:$0xff]
    %v1850 = vld [vmem:[%s1842 + $0x38] sm:$0xff]
    %v1851 = vld [vmem:[%s1842 + $0x40] sm:$0xff]
    %v1852 = vld [vmem:[%s1842 + $0x48] sm:$0xff]
    %v1853 = vld [vmem:[%s1842 + $0x50] sm:$0xff]
    %v1854 = vld [vmem:[%s1842 + $0x58] sm:$0xff]
    %v1855 = vld [vmem:[%s1842 + $0x60] sm:$0xff]
    %v1856 = vld [vmem:[%s1842 + $0x68] sm:$0xff]
    %v1857 = vld [vmem:[%s1842 + $0x70] sm:$0xff]
    %v1858 = vld [vmem:[%s1842 + $0x78] sm:$0xff]
    %1859 = vmatpush.msra.mxu0 %v1858
    %1860 = vmatpush.msra.mxu0 %v1857
    %1861 = vmatpush.msra.mxu0 %v1856
    %1862 = vmatpush.msra.mxu0 %v1855
    %1863 = vmatpush.msra.mxu0 %v1854
    %1864 = vmatpush.msra.mxu0 %v1853
    %1865 = vmatpush.msra.mxu0 %v1852
    %1866 = vmatpush.msra.mxu0 %v1851
    %1867 = vmatpush.msra.mxu0 %v1850
    %1868 = vmatpush.msra.mxu0 %v1849
    %1869 = vmatpush.msra.mxu0 %v1848
    %1870 = vmatpush.msra.mxu0 %v1847
    %1871 = vmatpush.msra.mxu0 %v1846
    %1872 = vmatpush.msra.mxu0 %v1845
    %1873 = vmatpush.msra.mxu0 %v1844
    %1874 = vmatpush.msra.mxu0 %v1843
    %1875 = vmatmul.f32.gmra.mxu0 %v1834
    %v1876 = vpop.f32.mrf.mxu0
    %v1877 = vadd.f32 0.0, %v1876
    %1878 = vmatmul.f32.gmra.mxu0 %v1835
    %v1879 = vpop.f32.mrf.mxu0
    %v1880 = vadd.f32 0.0, %v1879
    %1881 = vmatmul.f32.gmra.mxu0 %v1836
    %v1882 = vpop.f32.mrf.mxu0
    %v1883 = vadd.f32 0.0, %v1882
    %1884 = vmatmul.f32.gmra.mxu0 %v1837
    %v1885 = vpop.f32.mrf.mxu0
    %v1886 = vadd.f32 0.0, %v1885
    %1887 = vmatmul.f32.gmra.mxu0 %v1838
    %v1888 = vpop.f32.mrf.mxu0
    %v1889 = vadd.f32 0.0, %v1888
    %1890 = vmatmul.f32.gmra.mxu0 %v1839
    %v1891 = vpop.f32.mrf.mxu0
    %v1892 = vadd.f32 0.0, %v1891
    %1893 = vmatmul.f32.gmra.mxu0 %v1840
    %v1894 = vpop.f32.mrf.mxu0
    %v1895 = vadd.f32 0.0, %v1894
    %1896 = vmatmul.f32.gmra.mxu0 %v1841
    %v1897 = vpop.f32.mrf.mxu0
    %v1898 = vadd.f32 0.0, %v1897
    %1899 = vdwg.mxu0
    %v1900 = vadd.f32 %v1704, %v1877
    %v1901 = vadd.f32 %v1707, %v1880
    %v1902 = vadd.f32 %v1710, %v1883
    %v1903 = vadd.f32 %v1713, %v1886
    %v1904 = vadd.f32 %v1716, %v1889
    %v1905 = vadd.f32 %v1719, %v1892
    %v1906 = vadd.f32 %v1722, %v1895
    %v1907 = vadd.f32 %v1725, %v1898
    %v1908 = vld [vmem:[#allocation2 + $0xb] sm:$0xff]
    %v1909 = vld [vmem:[#allocation2 + $0x13] sm:$0xff]
    %v1910 = vld [vmem:[#allocation2 + $0x1b] sm:$0xff]
    %v1911 = vld [vmem:[#allocation2 + $0x23] sm:$0xff]
    %v1912 = vld [vmem:[#allocation2 + $0x2b] sm:$0xff]
    %v1913 = vld [vmem:[#allocation2 + $0x33] sm:$0xff]
    %v1914 = vld [vmem:[#allocation2 + $0x3b] sm:$0xff]
    %v1915 = vld [vmem:[#allocation2 + $0x43] sm:$0xff]
    %s1916 = scalar_lea.vmem [#allocation12], 640
    %v1917 = vld [vmem:[%s1916] sm:$0xff]
    %v1918 = vld [vmem:[%s1916 + $0x8] sm:$0xff]
    %v1919 = vld [vmem:[%s1916 + $0x10] sm:$0xff]
    %v1920 = vld [vmem:[%s1916 + $0x18] sm:$0xff]
    %v1921 = vld [vmem:[%s1916 + $0x20] sm:$0xff]
    %v1922 = vld [vmem:[%s1916 + $0x28] sm:$0xff]
    %v1923 = vld [vmem:[%s1916 + $0x30] sm:$0xff]
    %v1924 = vld [vmem:[%s1916 + $0x38] sm:$0xff]
    %v1925 = vld [vmem:[%s1916 + $0x40] sm:$0xff]
    %v1926 = vld [vmem:[%s1916 + $0x48] sm:$0xff]
    %v1927 = vld [vmem:[%s1916 + $0x50] sm:$0xff]
    %v1928 = vld [vmem:[%s1916 + $0x58] sm:$0xff]
    %v1929 = vld [vmem:[%s1916 + $0x60] sm:$0xff]
    %v1930 = vld [vmem:[%s1916 + $0x68] sm:$0xff]
    %v1931 = vld [vmem:[%s1916 + $0x70] sm:$0xff]
    %v1932 = vld [vmem:[%s1916 + $0x78] sm:$0xff]
    %1933 = vmatpush.msra.mxu0 %v1932
    %1934 = vmatpush.msra.mxu0 %v1931
    %1935 = vmatpush.msra.mxu0 %v1930
    %1936 = vmatpush.msra.mxu0 %v1929
    %1937 = vmatpush.msra.mxu0 %v1928
    %1938 = vmatpush.msra.mxu0 %v1927
    %1939 = vmatpush.msra.mxu0 %v1926
    %1940 = vmatpush.msra.mxu0 %v1925
    %1941 = vmatpush.msra.mxu0 %v1924
    %1942 = vmatpush.msra.mxu0 %v1923
    %1943 = vmatpush.msra.mxu0 %v1922
    %1944 = vmatpush.msra.mxu0 %v1921
    %1945 = vmatpush.msra.mxu0 %v1920
    %1946 = vmatpush.msra.mxu0 %v1919
    %1947 = vmatpush.msra.mxu0 %v1918
    %1948 = vmatpush.msra.mxu0 %v1917
    %1949 = vmatmul.f32.gmra.mxu0 %v1908
    %v1950 = vpop.f32.mrf.mxu0
    %v1951 = vadd.f32 0.0, %v1950
    %1952 = vmatmul.f32.gmra.mxu0 %v1909
    %v1953 = vpop.f32.mrf.mxu0
    %v1954 = vadd.f32 0.0, %v1953
    %1955 = vmatmul.f32.gmra.mxu0 %v1910
    %v1956 = vpop.f32.mrf.mxu0
    %v1957 = vadd.f32 0.0, %v1956
    %1958 = vmatmul.f32.gmra.mxu0 %v1911
    %v1959 = vpop.f32.mrf.mxu0
    %v1960 = vadd.f32 0.0, %v1959
    %1961 = vmatmul.f32.gmra.mxu0 %v1912
    %v1962 = vpop.f32.mrf.mxu0
    %v1963 = vadd.f32 0.0, %v1962
    %1964 = vmatmul.f32.gmra.mxu0 %v1913
    %v1965 = vpop.f32.mrf.mxu0
    %v1966 = vadd.f32 0.0, %v1965
    %1967 = vmatmul.f32.gmra.mxu0 %v1914
    %v1968 = vpop.f32.mrf.mxu0
    %v1969 = vadd.f32 0.0, %v1968
    %1970 = vmatmul.f32.gmra.mxu0 %v1915
    %v1971 = vpop.f32.mrf.mxu0
    %v1972 = vadd.f32 0.0, %v1971
    %1973 = vdwg.mxu0
    %v1974 = vadd.f32 %v1811, %v1951
    %v1975 = vadd.f32 %v1814, %v1954
    %v1976 = vadd.f32 %v1817, %v1957
    %v1977 = vadd.f32 %v1820, %v1960
    %v1978 = vadd.f32 %v1823, %v1963
    %v1979 = vadd.f32 %v1826, %v1966
    %v1980 = vadd.f32 %v1829, %v1969
    %v1981 = vadd.f32 %v1832, %v1972
    %v1982 = vld [vmem:[#allocation2 + $0xc] sm:$0xff]
    %v1983 = vld [vmem:[#allocation2 + $0x14] sm:$0xff]
    %v1984 = vld [vmem:[#allocation2 + $0x1c] sm:$0xff]
    %v1985 = vld [vmem:[#allocation2 + $0x24] sm:$0xff]
    %v1986 = vld [vmem:[#allocation2 + $0x2c] sm:$0xff]
    %v1987 = vld [vmem:[#allocation2 + $0x34] sm:$0xff]
    %v1988 = vld [vmem:[#allocation2 + $0x3c] sm:$0xff]
    %v1989 = vld [vmem:[#allocation2 + $0x44] sm:$0xff]
    %s1990 = scalar_lea.vmem [#allocation12], 768
    %v1991 = vld [vmem:[%s1990] sm:$0xff]
    %v1992 = vld [vmem:[%s1990 + $0x8] sm:$0xff]
    %v1993 = vld [vmem:[%s1990 + $0x10] sm:$0xff]
    %v1994 = vld [vmem:[%s1990 + $0x18] sm:$0xff]
    %v1995 = vld [vmem:[%s1990 + $0x20] sm:$0xff]
    %v1996 = vld [vmem:[%s1990 + $0x28] sm:$0xff]
    %v1997 = vld [vmem:[%s1990 + $0x30] sm:$0xff]
    %v1998 = vld [vmem:[%s1990 + $0x38] sm:$0xff]
    %v1999 = vld [vmem:[%s1990 + $0x40] sm:$0xff]
    %v2000 = vld [vmem:[%s1990 + $0x48] sm:$0xff]
    %v2001 = vld [vmem:[%s1990 + $0x50] sm:$0xff]
    %v2002 = vld [vmem:[%s1990 + $0x58] sm:$0xff]
    %v2003 = vld [vmem:[%s1990 + $0x60] sm:$0xff]
    %v2004 = vld [vmem:[%s1990 + $0x68] sm:$0xff]
    %v2005 = vld [vmem:[%s1990 + $0x70] sm:$0xff]
    %v2006 = vld [vmem:[%s1990 + $0x78] sm:$0xff]
    %2007 = vmatpush.msra.mxu0 %v2006
    %2008 = vmatpush.msra.mxu0 %v2005
    %2009 = vmatpush.msra.mxu0 %v2004
    %2010 = vmatpush.msra.mxu0 %v2003
    %2011 = vmatpush.msra.mxu0 %v2002
    %2012 = vmatpush.msra.mxu0 %v2001
    %2013 = vmatpush.msra.mxu0 %v2000
    %2014 = vmatpush.msra.mxu0 %v1999
    %2015 = vmatpush.msra.mxu0 %v1998
    %2016 = vmatpush.msra.mxu0 %v1997
    %2017 = vmatpush.msra.mxu0 %v1996
    %2018 = vmatpush.msra.mxu0 %v1995
    %2019 = vmatpush.msra.mxu0 %v1994
    %2020 = vmatpush.msra.mxu0 %v1993
    %2021 = vmatpush.msra.mxu0 %v1992
    %2022 = vmatpush.msra.mxu0 %v1991
    %2023 = vmatmul.f32.gmra.mxu0 %v1982
    %v2024 = vpop.f32.mrf.mxu0
    %v2025 = vadd.f32 0.0, %v2024
    %2026 = vmatmul.f32.gmra.mxu0 %v1983
    %v2027 = vpop.f32.mrf.mxu0
    %v2028 = vadd.f32 0.0, %v2027
    %2029 = vmatmul.f32.gmra.mxu0 %v1984
    %v2030 = vpop.f32.mrf.mxu0
    %v2031 = vadd.f32 0.0, %v2030
    %2032 = vmatmul.f32.gmra.mxu0 %v1985
    %v2033 = vpop.f32.mrf.mxu0
    %v2034 = vadd.f32 0.0, %v2033
    %2035 = vmatmul.f32.gmra.mxu0 %v1986
    %v2036 = vpop.f32.mrf.mxu0
    %v2037 = vadd.f32 0.0, %v2036
    %2038 = vmatmul.f32.gmra.mxu0 %v1987
    %v2039 = vpop.f32.mrf.mxu0
    %v2040 = vadd.f32 0.0, %v2039
    %2041 = vmatmul.f32.gmra.mxu0 %v1988
    %v2042 = vpop.f32.mrf.mxu0
    %v2043 = vadd.f32 0.0, %v2042
    %2044 = vmatmul.f32.gmra.mxu0 %v1989
    %v2045 = vpop.f32.mrf.mxu0
    %v2046 = vadd.f32 0.0, %v2045
    %2047 = vdwg.mxu0
    %v2048 = vadd.f32 %v1900, %v2025
    %v2049 = vadd.f32 %v1901, %v2028
    %v2050 = vadd.f32 %v1902, %v2031
    %v2051 = vadd.f32 %v1903, %v2034
    %v2052 = vadd.f32 %v1904, %v2037
    %v2053 = vadd.f32 %v1905, %v2040
    %v2054 = vadd.f32 %v1906, %v2043
    %v2055 = vadd.f32 %v1907, %v2046
    %v2056 = vadd.f32 %v2048, %v1974
    %v2057 = vadd.f32 %v2049, %v1975
    %v2058 = vadd.f32 %v2050, %v1976
    %v2059 = vadd.f32 %v2051, %v1977
    %v2060 = vadd.f32 %v2052, %v1978
    %v2061 = vadd.f32 %v2053, %v1979
    %v2062 = vadd.f32 %v2054, %v1980
    %v2063 = vadd.f32 %v2055, %v1981
    %v2065 = vperm.slane %v1570, 0
    %v2067 = vadd.f32 %v2056, %v2065
    %v2068 = vadd.f32 %v2057, %v2065
    %v2069 = vadd.f32 %v2058, %v2065
    %v2070 = vadd.f32 %v2059, %v2065
    %v2071 = vadd.f32 %v2060, %v2065
    %v2072 = vadd.f32 %v2061, %v2065
    %v2073 = vadd.f32 %v2062, %v2065
    %v2074 = vadd.f32 %v2063, %v2065
    %v2075 = vmax.f32 %v2067, 0.0
    %v2076 = vmax.f32 %v2068, 0.0
    %v2077 = vmax.f32 %v2069, 0.0
    %v2078 = vmax.f32 %v2070, 0.0
    %v2079 = vmax.f32 %v2071, 0.0
    %v2080 = vmax.f32 %v2072, 0.0
    %v2081 = vmax.f32 %v2073, 0.0
    %v2082 = vmax.f32 %v2074, 0.0
    %s2083 = scalar_lea.vmem [#allocation5], 192
    %v2084 = vld [vmem:[%s2083] sm:$0xff]
    %v2085 = vld [vmem:[%s2083 + $0x8] sm:$0xff]
    %v2086 = vld [vmem:[%s2083 + $0x10] sm:$0xff]
    %v2087 = vld [vmem:[%s2083 + $0x18] sm:$0xff]
    %v2088 = vld [vmem:[%s2083 + $0x20] sm:$0xff]
    %v2089 = vld [vmem:[%s2083 + $0x28] sm:$0xff]
    %v2090 = vld [vmem:[%s2083 + $0x30] sm:$0xff]
    %v2091 = vld [vmem:[%s2083 + $0x38] sm:$0xff]
    %v2092 = vmul.f32 %v2075, %v2084
    %v2093 = vmul.f32 %v2076, %v2085
    %v2094 = vmul.f32 %v2077, %v2086
    %v2095 = vmul.f32 %v2078, %v2087
    %v2096 = vmul.f32 %v2079, %v2088
    %v2097 = vmul.f32 %v2080, %v2089
    %v2098 = vmul.f32 %v2081, %v2090
    %v2099 = vmul.f32 %v2082, %v2091
    %2100 = vst [vmem:[#allocation3 + $0x8] sm:$0xff] %v2092
    %2101 = vst [vmem:[#allocation3 + $0x10] sm:$0xff] %v2093
    %2102 = vst [vmem:[#allocation3 + $0x18] sm:$0xff] %v2094
    %2103 = vst [vmem:[#allocation3 + $0x20] sm:$0xff] %v2095
    %2104 = vst [vmem:[#allocation3 + $0x28] sm:$0xff] %v2096
    %2105 = vst [vmem:[#allocation3 + $0x30] sm:$0xff] %v2097
    %2106 = vst [vmem:[#allocation3 + $0x38] sm:$0xff] %v2098
    %2107 = vst [vmem:[#allocation3 + $0x40] sm:$0xff] %v2099
    %v2108 = vld [vmem:[%s11] sm:$0x1]
    %v2109 = vld [vmem:[#allocation3 + $0x6] sm:$0xff]
    %v2110 = vld [vmem:[#allocation3 + $0xe] sm:$0xff]
    %v2111 = vld [vmem:[#allocation3 + $0x16] sm:$0xff]
    %v2112 = vld [vmem:[#allocation3 + $0x1e] sm:$0xff]
    %v2113 = vld [vmem:[#allocation3 + $0x26] sm:$0xff]
    %v2114 = vld [vmem:[#allocation3 + $0x2e] sm:$0xff]
    %v2115 = vld [vmem:[#allocation3 + $0x36] sm:$0xff]
    %v2116 = vld [vmem:[#allocation3 + $0x3e] sm:$0xff]
    %v2117 = vld [vmem:[#allocation13] sm:$0xff]
    %v2118 = vld [vmem:[#allocation13 + $0x8] sm:$0xff]
    %v2119 = vld [vmem:[#allocation13 + $0x10] sm:$0xff]
    %v2120 = vld [vmem:[#allocation13 + $0x18] sm:$0xff]
    %v2121 = vld [vmem:[#allocation13 + $0x20] sm:$0xff]
    %v2122 = vld [vmem:[#allocation13 + $0x28] sm:$0xff]
    %v2123 = vld [vmem:[#allocation13 + $0x30] sm:$0xff]
    %v2124 = vld [vmem:[#allocation13 + $0x38] sm:$0xff]
    %v2125 = vld [vmem:[#allocation13 + $0x40] sm:$0xff]
    %v2126 = vld [vmem:[#allocation13 + $0x48] sm:$0xff]
    %v2127 = vld [vmem:[#allocation13 + $0x50] sm:$0xff]
    %v2128 = vld [vmem:[#allocation13 + $0x58] sm:$0xff]
    %v2129 = vld [vmem:[#allocation13 + $0x60] sm:$0xff]
    %v2130 = vld [vmem:[#allocation13 + $0x68] sm:$0xff]
    %v2131 = vld [vmem:[#allocation13 + $0x70] sm:$0xff]
    %v2132 = vld [vmem:[#allocation13 + $0x78] sm:$0xff]
    %v2133 = vld [vmem:[#allocation3 + $0x7] sm:$0xff]
    %v2134 = vld [vmem:[#allocation3 + $0xf] sm:$0xff]
    %v2135 = vld [vmem:[#allocation3 + $0x17] sm:$0xff]
    %v2136 = vld [vmem:[#allocation3 + $0x1f] sm:$0xff]
    %v2137 = vld [vmem:[#allocation3 + $0x27] sm:$0xff]
    %v2138 = vld [vmem:[#allocation3 + $0x2f] sm:$0xff]
    %v2139 = vld [vmem:[#allocation3 + $0x37] sm:$0xff]
    %v2140 = vld [vmem:[#allocation3 + $0x3f] sm:$0xff]
    %s2141 = scalar_lea.vmem [#allocation13], 128
    %v2142 = vld [vmem:[%s2141] sm:$0xff]
    %v2143 = vld [vmem:[%s2141 + $0x8] sm:$0xff]
    %v2144 = vld [vmem:[%s2141 + $0x10] sm:$0xff]
    %v2145 = vld [vmem:[%s2141 + $0x18] sm:$0xff]
    %v2146 = vld [vmem:[%s2141 + $0x20] sm:$0xff]
    %v2147 = vld [vmem:[%s2141 + $0x28] sm:$0xff]
    %v2148 = vld [vmem:[%s2141 + $0x30] sm:$0xff]
    %v2149 = vld [vmem:[%s2141 + $0x38] sm:$0xff]
    %v2150 = vld [vmem:[%s2141 + $0x40] sm:$0xff]
    %v2151 = vld [vmem:[%s2141 + $0x48] sm:$0xff]
    %v2152 = vld [vmem:[%s2141 + $0x50] sm:$0xff]
    %v2153 = vld [vmem:[%s2141 + $0x58] sm:$0xff]
    %v2154 = vld [vmem:[%s2141 + $0x60] sm:$0xff]
    %v2155 = vld [vmem:[%s2141 + $0x68] sm:$0xff]
    %v2156 = vld [vmem:[%s2141 + $0x70] sm:$0xff]
    %v2157 = vld [vmem:[%s2141 + $0x78] sm:$0xff]
    %v2158 = vld [vmem:[#allocation3 + $0x8] sm:$0xff]
    %v2159 = vld [vmem:[#allocation3 + $0x10] sm:$0xff]
    %v2160 = vld [vmem:[#allocation3 + $0x18] sm:$0xff]
    %v2161 = vld [vmem:[#allocation3 + $0x20] sm:$0xff]
    %v2162 = vld [vmem:[#allocation3 + $0x28] sm:$0xff]
    %v2163 = vld [vmem:[#allocation3 + $0x30] sm:$0xff]
    %v2164 = vld [vmem:[#allocation3 + $0x38] sm:$0xff]
    %v2165 = vld [vmem:[#allocation3 + $0x40] sm:$0xff]
    %s2166 = scalar_lea.vmem [#allocation13], 256
    %v2167 = vld [vmem:[%s2166] sm:$0xff]
    %v2168 = vld [vmem:[%s2166 + $0x8] sm:$0xff]
    %v2169 = vld [vmem:[%s2166 + $0x10] sm:$0xff]
    %v2170 = vld [vmem:[%s2166 + $0x18] sm:$0xff]
    %v2171 = vld [vmem:[%s2166 + $0x20] sm:$0xff]
    %v2172 = vld [vmem:[%s2166 + $0x28] sm:$0xff]
    %v2173 = vld [vmem:[%s2166 + $0x30] sm:$0xff]
    %v2174 = vld [vmem:[%s2166 + $0x38] sm:$0xff]
    %v2175 = vld [vmem:[%s2166 + $0x40] sm:$0xff]
    %v2176 = vld [vmem:[%s2166 + $0x48] sm:$0xff]
    %v2177 = vld [vmem:[%s2166 + $0x50] sm:$0xff]
    %v2178 = vld [vmem:[%s2166 + $0x58] sm:$0xff]
    %v2179 = vld [vmem:[%s2166 + $0x60] sm:$0xff]
    %v2180 = vld [vmem:[%s2166 + $0x68] sm:$0xff]
    %v2181 = vld [vmem:[%s2166 + $0x70] sm:$0xff]
    %v2182 = vld [vmem:[%s2166 + $0x78] sm:$0xff]
    %2183 = vmatpush.msra.mxu0 %v2182
    %2184 = vmatpush.msra.mxu0 %v2181
    %2185 = vmatpush.msra.mxu0 %v2180
    %2186 = vmatpush.msra.mxu0 %v2179
    %2187 = vmatpush.msra.mxu0 %v2178
    %2188 = vmatpush.msra.mxu0 %v2177
    %2189 = vmatpush.msra.mxu0 %v2176
    %2190 = vmatpush.msra.mxu0 %v2175
    %2191 = vmatpush.msra.mxu0 %v2174
    %2192 = vmatpush.msra.mxu0 %v2173
    %2193 = vmatpush.msra.mxu0 %v2172
    %2194 = vmatpush.msra.mxu0 %v2171
    %2195 = vmatpush.msra.mxu0 %v2170
    %2196 = vmatpush.msra.mxu0 %v2169
    %2197 = vmatpush.msra.mxu0 %v2168
    %2198 = vmatpush.msra.mxu0 %v2167
    %2199 = vmatmul.f32.gmra.mxu0 %v2158
    %v2200 = vpop.f32.mrf.mxu0
    %v2201 = vadd.f32 0.0, %v2200
    %2202 = vmatmul.f32.gmra.mxu0 %v2159
    %v2203 = vpop.f32.mrf.mxu0
    %v2204 = vadd.f32 0.0, %v2203
    %2205 = vmatmul.f32.gmra.mxu0 %v2160
    %v2206 = vpop.f32.mrf.mxu0
    %v2207 = vadd.f32 0.0, %v2206
    %2208 = vmatmul.f32.gmra.mxu0 %v2161
    %v2209 = vpop.f32.mrf.mxu0
    %v2210 = vadd.f32 0.0, %v2209
    %2211 = vmatmul.f32.gmra.mxu0 %v2162
    %v2212 = vpop.f32.mrf.mxu0
    %v2213 = vadd.f32 0.0, %v2212
    %2214 = vmatmul.f32.gmra.mxu0 %v2163
    %v2215 = vpop.f32.mrf.mxu0
    %v2216 = vadd.f32 0.0, %v2215
    %2217 = vmatmul.f32.gmra.mxu0 %v2164
    %v2218 = vpop.f32.mrf.mxu0
    %v2219 = vadd.f32 0.0, %v2218
    %2220 = vmatmul.f32.gmra.mxu0 %v2165
    %v2221 = vpop.f32.mrf.mxu0
    %v2222 = vadd.f32 0.0, %v2221
    %2223 = vdwg.mxu0
    %2224 = vmatpush.msra.mxu0 %v2132
    %2225 = vmatpush.msra.mxu0 %v2131
    %2226 = vmatpush.msra.mxu0 %v2130
    %2227 = vmatpush.msra.mxu0 %v2129
    %2228 = vmatpush.msra.mxu0 %v2128
    %2229 = vmatpush.msra.mxu0 %v2127
    %2230 = vmatpush.msra.mxu0 %v2126
    %2231 = vmatpush.msra.mxu0 %v2125
    %2232 = vmatpush.msra.mxu0 %v2124
    %2233 = vmatpush.msra.mxu0 %v2123
    %2234 = vmatpush.msra.mxu0 %v2122
    %2235 = vmatpush.msra.mxu0 %v2121
    %2236 = vmatpush.msra.mxu0 %v2120
    %2237 = vmatpush.msra.mxu0 %v2119
    %2238 = vmatpush.msra.mxu0 %v2118
    %2239 = vmatpush.msra.mxu0 %v2117
    %2240 = vmatmul.f32.gmra.mxu0 %v2109
    %v2241 = vpop.f32.mrf.mxu0
    %v2242 = vadd.f32 %v2201, %v2241
    %2243 = vmatmul.f32.gmra.mxu0 %v2110
    %v2244 = vpop.f32.mrf.mxu0
    %v2245 = vadd.f32 %v2204, %v2244
    %2246 = vmatmul.f32.gmra.mxu0 %v2111
    %v2247 = vpop.f32.mrf.mxu0
    %v2248 = vadd.f32 %v2207, %v2247
    %2249 = vmatmul.f32.gmra.mxu0 %v2112
    %v2250 = vpop.f32.mrf.mxu0
    %v2251 = vadd.f32 %v2210, %v2250
    %2252 = vmatmul.f32.gmra.mxu0 %v2113
    %v2253 = vpop.f32.mrf.mxu0
    %v2254 = vadd.f32 %v2213, %v2253
    %2255 = vmatmul.f32.gmra.mxu0 %v2114
    %v2256 = vpop.f32.mrf.mxu0
    %v2257 = vadd.f32 %v2216, %v2256
    %2258 = vmatmul.f32.gmra.mxu0 %v2115
    %v2259 = vpop.f32.mrf.mxu0
    %v2260 = vadd.f32 %v2219, %v2259
    %2261 = vmatmul.f32.gmra.mxu0 %v2116
    %v2262 = vpop.f32.mrf.mxu0
    %v2263 = vadd.f32 %v2222, %v2262
    %2264 = vdwg.mxu0
    %v2265 = vld [vmem:[#allocation3 + $0x9] sm:$0xff]
    %v2266 = vld [vmem:[#allocation3 + $0x11] sm:$0xff]
    %v2267 = vld [vmem:[#allocation3 + $0x19] sm:$0xff]
    %v2268 = vld [vmem:[#allocation3 + $0x21] sm:$0xff]
    %v2269 = vld [vmem:[#allocation3 + $0x29] sm:$0xff]
    %v2270 = vld [vmem:[#allocation3 + $0x31] sm:$0xff]
    %v2271 = vld [vmem:[#allocation3 + $0x39] sm:$0xff]
    %v2272 = vld [vmem:[#allocation3 + $0x41] sm:$0xff]
    %s2273 = scalar_lea.vmem [#allocation13], 384
    %v2274 = vld [vmem:[%s2273] sm:$0xff]
    %v2275 = vld [vmem:[%s2273 + $0x8] sm:$0xff]
    %v2276 = vld [vmem:[%s2273 + $0x10] sm:$0xff]
    %v2277 = vld [vmem:[%s2273 + $0x18] sm:$0xff]
    %v2278 = vld [vmem:[%s2273 + $0x20] sm:$0xff]
    %v2279 = vld [vmem:[%s2273 + $0x28] sm:$0xff]
    %v2280 = vld [vmem:[%s2273 + $0x30] sm:$0xff]
    %v2281 = vld [vmem:[%s2273 + $0x38] sm:$0xff]
    %v2282 = vld [vmem:[%s2273 + $0x40] sm:$0xff]
    %v2283 = vld [vmem:[%s2273 + $0x48] sm:$0xff]
    %v2284 = vld [vmem:[%s2273 + $0x50] sm:$0xff]
    %v2285 = vld [vmem:[%s2273 + $0x58] sm:$0xff]
    %v2286 = vld [vmem:[%s2273 + $0x60] sm:$0xff]
    %v2287 = vld [vmem:[%s2273 + $0x68] sm:$0xff]
    %v2288 = vld [vmem:[%s2273 + $0x70] sm:$0xff]
    %v2289 = vld [vmem:[%s2273 + $0x78] sm:$0xff]
    %2290 = vmatpush.msra.mxu0 %v2289
    %2291 = vmatpush.msra.mxu0 %v2288
    %2292 = vmatpush.msra.mxu0 %v2287
    %2293 = vmatpush.msra.mxu0 %v2286
    %2294 = vmatpush.msra.mxu0 %v2285
    %2295 = vmatpush.msra.mxu0 %v2284
    %2296 = vmatpush.msra.mxu0 %v2283
    %2297 = vmatpush.msra.mxu0 %v2282
    %2298 = vmatpush.msra.mxu0 %v2281
    %2299 = vmatpush.msra.mxu0 %v2280
    %2300 = vmatpush.msra.mxu0 %v2279
    %2301 = vmatpush.msra.mxu0 %v2278
    %2302 = vmatpush.msra.mxu0 %v2277
    %2303 = vmatpush.msra.mxu0 %v2276
    %2304 = vmatpush.msra.mxu0 %v2275
    %2305 = vmatpush.msra.mxu0 %v2274
    %2306 = vmatmul.f32.gmra.mxu0 %v2265
    %v2307 = vpop.f32.mrf.mxu0
    %v2308 = vadd.f32 0.0, %v2307
    %2309 = vmatmul.f32.gmra.mxu0 %v2266
    %v2310 = vpop.f32.mrf.mxu0
    %v2311 = vadd.f32 0.0, %v2310
    %2312 = vmatmul.f32.gmra.mxu0 %v2267
    %v2313 = vpop.f32.mrf.mxu0
    %v2314 = vadd.f32 0.0, %v2313
    %2315 = vmatmul.f32.gmra.mxu0 %v2268
    %v2316 = vpop.f32.mrf.mxu0
    %v2317 = vadd.f32 0.0, %v2316
    %2318 = vmatmul.f32.gmra.mxu0 %v2269
    %v2319 = vpop.f32.mrf.mxu0
    %v2320 = vadd.f32 0.0, %v2319
    %2321 = vmatmul.f32.gmra.mxu0 %v2270
    %v2322 = vpop.f32.mrf.mxu0
    %v2323 = vadd.f32 0.0, %v2322
    %2324 = vmatmul.f32.gmra.mxu0 %v2271
    %v2325 = vpop.f32.mrf.mxu0
    %v2326 = vadd.f32 0.0, %v2325
    %2327 = vmatmul.f32.gmra.mxu0 %v2272
    %v2328 = vpop.f32.mrf.mxu0
    %v2329 = vadd.f32 0.0, %v2328
    %2330 = vdwg.mxu0
    %2331 = vmatpush.msra.mxu0 %v2157
    %2332 = vmatpush.msra.mxu0 %v2156
    %2333 = vmatpush.msra.mxu0 %v2155
    %2334 = vmatpush.msra.mxu0 %v2154
    %2335 = vmatpush.msra.mxu0 %v2153
    %2336 = vmatpush.msra.mxu0 %v2152
    %2337 = vmatpush.msra.mxu0 %v2151
    %2338 = vmatpush.msra.mxu0 %v2150
    %2339 = vmatpush.msra.mxu0 %v2149
    %2340 = vmatpush.msra.mxu0 %v2148
    %2341 = vmatpush.msra.mxu0 %v2147
    %2342 = vmatpush.msra.mxu0 %v2146
    %2343 = vmatpush.msra.mxu0 %v2145
    %2344 = vmatpush.msra.mxu0 %v2144
    %2345 = vmatpush.msra.mxu0 %v2143
    %2346 = vmatpush.msra.mxu0 %v2142
    %2347 = vmatmul.f32.gmra.mxu0 %v2133
    %v2348 = vpop.f32.mrf.mxu0
    %v2349 = vadd.f32 %v2308, %v2348
    %2350 = vmatmul.f32.gmra.mxu0 %v2134
    %v2351 = vpop.f32.mrf.mxu0
    %v2352 = vadd.f32 %v2311, %v2351
    %2353 = vmatmul.f32.gmra.mxu0 %v2135
    %v2354 = vpop.f32.mrf.mxu0
    %v2355 = vadd.f32 %v2314, %v2354
    %2356 = vmatmul.f32.gmra.mxu0 %v2136
    %v2357 = vpop.f32.mrf.mxu0
    %v2358 = vadd.f32 %v2317, %v2357
    %2359 = vmatmul.f32.gmra.mxu0 %v2137
    %v2360 = vpop.f32.mrf.mxu0
    %v2361 = vadd.f32 %v2320, %v2360
    %2362 = vmatmul.f32.gmra.mxu0 %v2138
    %v2363 = vpop.f32.mrf.mxu0
    %v2364 = vadd.f32 %v2323, %v2363
    %2365 = vmatmul.f32.gmra.mxu0 %v2139
    %v2366 = vpop.f32.mrf.mxu0
    %v2367 = vadd.f32 %v2326, %v2366
    %2368 = vmatmul.f32.gmra.mxu0 %v2140
    %v2369 = vpop.f32.mrf.mxu0
    %v2370 = vadd.f32 %v2329, %v2369
    %2371 = vdwg.mxu0
    %v2372 = vld [vmem:[#allocation3 + $0xa] sm:$0xff]
    %v2373 = vld [vmem:[#allocation3 + $0x12] sm:$0xff]
    %v2374 = vld [vmem:[#allocation3 + $0x1a] sm:$0xff]
    %v2375 = vld [vmem:[#allocation3 + $0x22] sm:$0xff]
    %v2376 = vld [vmem:[#allocation3 + $0x2a] sm:$0xff]
    %v2377 = vld [vmem:[#allocation3 + $0x32] sm:$0xff]
    %v2378 = vld [vmem:[#allocation3 + $0x3a] sm:$0xff]
    %v2379 = vld [vmem:[#allocation3 + $0x42] sm:$0xff]
    %s2380 = scalar_lea.vmem [#allocation13], 512
    %v2381 = vld [vmem:[%s2380] sm:$0xff]
    %v2382 = vld [vmem:[%s2380 + $0x8] sm:$0xff]
    %v2383 = vld [vmem:[%s2380 + $0x10] sm:$0xff]
    %v2384 = vld [vmem:[%s2380 + $0x18] sm:$0xff]
    %v2385 = vld [vmem:[%s2380 + $0x20] sm:$0xff]
    %v2386 = vld [vmem:[%s2380 + $0x28] sm:$0xff]
    %v2387 = vld [vmem:[%s2380 + $0x30] sm:$0xff]
    %v2388 = vld [vmem:[%s2380 + $0x38] sm:$0xff]
    %v2389 = vld [vmem:[%s2380 + $0x40] sm:$0xff]
    %v2390 = vld [vmem:[%s2380 + $0x48] sm:$0xff]
    %v2391 = vld [vmem:[%s2380 + $0x50] sm:$0xff]
    %v2392 = vld [vmem:[%s2380 + $0x58] sm:$0xff]
    %v2393 = vld [vmem:[%s2380 + $0x60] sm:$0xff]
    %v2394 = vld [vmem:[%s2380 + $0x68] sm:$0xff]
    %v2395 = vld [vmem:[%s2380 + $0x70] sm:$0xff]
    %v2396 = vld [vmem:[%s2380 + $0x78] sm:$0xff]
    %2397 = vmatpush.msra.mxu0 %v2396
    %2398 = vmatpush.msra.mxu0 %v2395
    %2399 = vmatpush.msra.mxu0 %v2394
    %2400 = vmatpush.msra.mxu0 %v2393
    %2401 = vmatpush.msra.mxu0 %v2392
    %2402 = vmatpush.msra.mxu0 %v2391
    %2403 = vmatpush.msra.mxu0 %v2390
    %2404 = vmatpush.msra.mxu0 %v2389
    %2405 = vmatpush.msra.mxu0 %v2388
    %2406 = vmatpush.msra.mxu0 %v2387
    %2407 = vmatpush.msra.mxu0 %v2386
    %2408 = vmatpush.msra.mxu0 %v2385
    %2409 = vmatpush.msra.mxu0 %v2384
    %2410 = vmatpush.msra.mxu0 %v2383
    %2411 = vmatpush.msra.mxu0 %v2382
    %2412 = vmatpush.msra.mxu0 %v2381
    %2413 = vmatmul.f32.gmra.mxu0 %v2372
    %v2414 = vpop.f32.mrf.mxu0
    %v2415 = vadd.f32 0.0, %v2414
    %2416 = vmatmul.f32.gmra.mxu0 %v2373
    %v2417 = vpop.f32.mrf.mxu0
    %v2418 = vadd.f32 0.0, %v2417
    %2419 = vmatmul.f32.gmra.mxu0 %v2374
    %v2420 = vpop.f32.mrf.mxu0
    %v2421 = vadd.f32 0.0, %v2420
    %2422 = vmatmul.f32.gmra.mxu0 %v2375
    %v2423 = vpop.f32.mrf.mxu0
    %v2424 = vadd.f32 0.0, %v2423
    %2425 = vmatmul.f32.gmra.mxu0 %v2376
    %v2426 = vpop.f32.mrf.mxu0
    %v2427 = vadd.f32 0.0, %v2426
    %2428 = vmatmul.f32.gmra.mxu0 %v2377
    %v2429 = vpop.f32.mrf.mxu0
    %v2430 = vadd.f32 0.0, %v2429
    %2431 = vmatmul.f32.gmra.mxu0 %v2378
    %v2432 = vpop.f32.mrf.mxu0
    %v2433 = vadd.f32 0.0, %v2432
    %2434 = vmatmul.f32.gmra.mxu0 %v2379
    %v2435 = vpop.f32.mrf.mxu0
    %v2436 = vadd.f32 0.0, %v2435
    %2437 = vdwg.mxu0
    %v2438 = vadd.f32 %v2242, %v2415
    %v2439 = vadd.f32 %v2245, %v2418
    %v2440 = vadd.f32 %v2248, %v2421
    %v2441 = vadd.f32 %v2251, %v2424
    %v2442 = vadd.f32 %v2254, %v2427
    %v2443 = vadd.f32 %v2257, %v2430
    %v2444 = vadd.f32 %v2260, %v2433
    %v2445 = vadd.f32 %v2263, %v2436
    %v2446 = vld [vmem:[#allocation3 + $0xb] sm:$0xff]
    %v2447 = vld [vmem:[#allocation3 + $0x13] sm:$0xff]
    %v2448 = vld [vmem:[#allocation3 + $0x1b] sm:$0xff]
    %v2449 = vld [vmem:[#allocation3 + $0x23] sm:$0xff]
    %v2450 = vld [vmem:[#allocation3 + $0x2b] sm:$0xff]
    %v2451 = vld [vmem:[#allocation3 + $0x33] sm:$0xff]
    %v2452 = vld [vmem:[#allocation3 + $0x3b] sm:$0xff]
    %v2453 = vld [vmem:[#allocation3 + $0x43] sm:$0xff]
    %s2454 = scalar_lea.vmem [#allocation13], 640
    %v2455 = vld [vmem:[%s2454] sm:$0xff]
    %v2456 = vld [vmem:[%s2454 + $0x8] sm:$0xff]
    %v2457 = vld [vmem:[%s2454 + $0x10] sm:$0xff]
    %v2458 = vld [vmem:[%s2454 + $0x18] sm:$0xff]
    %v2459 = vld [vmem:[%s2454 + $0x20] sm:$0xff]
    %v2460 = vld [vmem:[%s2454 + $0x28] sm:$0xff]
    %v2461 = vld [vmem:[%s2454 + $0x30] sm:$0xff]
    %v2462 = vld [vmem:[%s2454 + $0x38] sm:$0xff]
    %v2463 = vld [vmem:[%s2454 + $0x40] sm:$0xff]
    %v2464 = vld [vmem:[%s2454 + $0x48] sm:$0xff]
    %v2465 = vld [vmem:[%s2454 + $0x50] sm:$0xff]
    %v2466 = vld [vmem:[%s2454 + $0x58] sm:$0xff]
    %v2467 = vld [vmem:[%s2454 + $0x60] sm:$0xff]
    %v2468 = vld [vmem:[%s2454 + $0x68] sm:$0xff]
    %v2469 = vld [vmem:[%s2454 + $0x70] sm:$0xff]
    %v2470 = vld [vmem:[%s2454 + $0x78] sm:$0xff]
    %2471 = vmatpush.msra.mxu0 %v2470
    %2472 = vmatpush.msra.mxu0 %v2469
    %2473 = vmatpush.msra.mxu0 %v2468
    %2474 = vmatpush.msra.mxu0 %v2467
    %2475 = vmatpush.msra.mxu0 %v2466
    %2476 = vmatpush.msra.mxu0 %v2465
    %2477 = vmatpush.msra.mxu0 %v2464
    %2478 = vmatpush.msra.mxu0 %v2463
    %2479 = vmatpush.msra.mxu0 %v2462
    %2480 = vmatpush.msra.mxu0 %v2461
    %2481 = vmatpush.msra.mxu0 %v2460
    %2482 = vmatpush.msra.mxu0 %v2459
    %2483 = vmatpush.msra.mxu0 %v2458
    %2484 = vmatpush.msra.mxu0 %v2457
    %2485 = vmatpush.msra.mxu0 %v2456
    %2486 = vmatpush.msra.mxu0 %v2455
    %2487 = vmatmul.f32.gmra.mxu0 %v2446
    %v2488 = vpop.f32.mrf.mxu0
    %v2489 = vadd.f32 0.0, %v2488
    %2490 = vmatmul.f32.gmra.mxu0 %v2447
    %v2491 = vpop.f32.mrf.mxu0
    %v2492 = vadd.f32 0.0, %v2491
    %2493 = vmatmul.f32.gmra.mxu0 %v2448
    %v2494 = vpop.f32.mrf.mxu0
    %v2495 = vadd.f32 0.0, %v2494
    %2496 = vmatmul.f32.gmra.mxu0 %v2449
    %v2497 = vpop.f32.mrf.mxu0
    %v2498 = vadd.f32 0.0, %v2497
    %2499 = vmatmul.f32.gmra.mxu0 %v2450
    %v2500 = vpop.f32.mrf.mxu0
    %v2501 = vadd.f32 0.0, %v2500
    %2502 = vmatmul.f32.gmra.mxu0 %v2451
    %v2503 = vpop.f32.mrf.mxu0
    %v2504 = vadd.f32 0.0, %v2503
    %2505 = vmatmul.f32.gmra.mxu0 %v2452
    %v2506 = vpop.f32.mrf.mxu0
    %v2507 = vadd.f32 0.0, %v2506
    %2508 = vmatmul.f32.gmra.mxu0 %v2453
    %v2509 = vpop.f32.mrf.mxu0
    %v2510 = vadd.f32 0.0, %v2509
    %2511 = vdwg.mxu0
    %v2512 = vadd.f32 %v2349, %v2489
    %v2513 = vadd.f32 %v2352, %v2492
    %v2514 = vadd.f32 %v2355, %v2495
    %v2515 = vadd.f32 %v2358, %v2498
    %v2516 = vadd.f32 %v2361, %v2501
    %v2517 = vadd.f32 %v2364, %v2504
    %v2518 = vadd.f32 %v2367, %v2507
    %v2519 = vadd.f32 %v2370, %v2510
    %v2520 = vld [vmem:[#allocation3 + $0xc] sm:$0xff]
    %v2521 = vld [vmem:[#allocation3 + $0x14] sm:$0xff]
    %v2522 = vld [vmem:[#allocation3 + $0x1c] sm:$0xff]
    %v2523 = vld [vmem:[#allocation3 + $0x24] sm:$0xff]
    %v2524 = vld [vmem:[#allocation3 + $0x2c] sm:$0xff]
    %v2525 = vld [vmem:[#allocation3 + $0x34] sm:$0xff]
    %v2526 = vld [vmem:[#allocation3 + $0x3c] sm:$0xff]
    %v2527 = vld [vmem:[#allocation3 + $0x44] sm:$0xff]
    %s2528 = scalar_lea.vmem [#allocation13], 768
    %v2529 = vld [vmem:[%s2528] sm:$0xff]
    %v2530 = vld [vmem:[%s2528 + $0x8] sm:$0xff]
    %v2531 = vld [vmem:[%s2528 + $0x10] sm:$0xff]
    %v2532 = vld [vmem:[%s2528 + $0x18] sm:$0xff]
    %v2533 = vld [vmem:[%s2528 + $0x20] sm:$0xff]
    %v2534 = vld [vmem:[%s2528 + $0x28] sm:$0xff]
    %v2535 = vld [vmem:[%s2528 + $0x30] sm:$0xff]
    %v2536 = vld [vmem:[%s2528 + $0x38] sm:$0xff]
    %v2537 = vld [vmem:[%s2528 + $0x40] sm:$0xff]
    %v2538 = vld [vmem:[%s2528 + $0x48] sm:$0xff]
    %v2539 = vld [vmem:[%s2528 + $0x50] sm:$0xff]
    %v2540 = vld [vmem:[%s2528 + $0x58] sm:$0xff]
    %v2541 = vld [vmem:[%s2528 + $0x60] sm:$0xff]
    %v2542 = vld [vmem:[%s2528 + $0x68] sm:$0xff]
    %v2543 = vld [vmem:[%s2528 + $0x70] sm:$0xff]
    %v2544 = vld [vmem:[%s2528 + $0x78] sm:$0xff]
    %2545 = vmatpush.msra.mxu0 %v2544
    %2546 = vmatpush.msra.mxu0 %v2543
    %2547 = vmatpush.msra.mxu0 %v2542
    %2548 = vmatpush.msra.mxu0 %v2541
    %2549 = vmatpush.msra.mxu0 %v2540
    %2550 = vmatpush.msra.mxu0 %v2539
    %2551 = vmatpush.msra.mxu0 %v2538
    %2552 = vmatpush.msra.mxu0 %v2537
    %2553 = vmatpush.msra.mxu0 %v2536
    %2554 = vmatpush.msra.mxu0 %v2535
    %2555 = vmatpush.msra.mxu0 %v2534
    %2556 = vmatpush.msra.mxu0 %v2533
    %2557 = vmatpush.msra.mxu0 %v2532
    %2558 = vmatpush.msra.mxu0 %v2531
    %2559 = vmatpush.msra.mxu0 %v2530
    %2560 = vmatpush.msra.mxu0 %v2529
    %2561 = vmatmul.f32.gmra.mxu0 %v2520
    %v2562 = vpop.f32.mrf.mxu0
    %v2563 = vadd.f32 0.0, %v2562
    %2564 = vmatmul.f32.gmra.mxu0 %v2521
    %v2565 = vpop.f32.mrf.mxu0
    %v2566 = vadd.f32 0.0, %v2565
    %2567 = vmatmul.f32.gmra.mxu0 %v2522
    %v2568 = vpop.f32.mrf.mxu0
    %v2569 = vadd.f32 0.0, %v2568
    %2570 = vmatmul.f32.gmra.mxu0 %v2523
    %v2571 = vpop.f32.mrf.mxu0
    %v2572 = vadd.f32 0.0, %v2571
    %2573 = vmatmul.f32.gmra.mxu0 %v2524
    %v2574 = vpop.f32.mrf.mxu0
    %v2575 = vadd.f32 0.0, %v2574
    %2576 = vmatmul.f32.gmra.mxu0 %v2525
    %v2577 = vpop.f32.mrf.mxu0
    %v2578 = vadd.f32 0.0, %v2577
    %2579 = vmatmul.f32.gmra.mxu0 %v2526
    %v2580 = vpop.f32.mrf.mxu0
    %v2581 = vadd.f32 0.0, %v2580
    %2582 = vmatmul.f32.gmra.mxu0 %v2527
    %v2583 = vpop.f32.mrf.mxu0
    %v2584 = vadd.f32 0.0, %v2583
    %2585 = vdwg.mxu0
    %v2586 = vadd.f32 %v2438, %v2563
    %v2587 = vadd.f32 %v2439, %v2566
    %v2588 = vadd.f32 %v2440, %v2569
    %v2589 = vadd.f32 %v2441, %v2572
    %v2590 = vadd.f32 %v2442, %v2575
    %v2591 = vadd.f32 %v2443, %v2578
    %v2592 = vadd.f32 %v2444, %v2581
    %v2593 = vadd.f32 %v2445, %v2584
    %v2594 = vadd.f32 %v2586, %v2512
    %v2595 = vadd.f32 %v2587, %v2513
    %v2596 = vadd.f32 %v2588, %v2514
    %v2597 = vadd.f32 %v2589, %v2515
    %v2598 = vadd.f32 %v2590, %v2516
    %v2599 = vadd.f32 %v2591, %v2517
    %v2600 = vadd.f32 %v2592, %v2518
    %v2601 = vadd.f32 %v2593, %v2519
    %v2603 = vperm.slane %v2108, 0
    %v2605 = vadd.f32 %v2594, %v2603
    %v2606 = vadd.f32 %v2595, %v2603
    %v2607 = vadd.f32 %v2596, %v2603
    %v2608 = vadd.f32 %v2597, %v2603
    %v2609 = vadd.f32 %v2598, %v2603
    %v2610 = vadd.f32 %v2599, %v2603
    %v2611 = vadd.f32 %v2600, %v2603
    %v2612 = vadd.f32 %v2601, %v2603
    %v2613 = vmax.f32 %v2605, 0.0
    %v2614 = vmax.f32 %v2606, 0.0
    %v2615 = vmax.f32 %v2607, 0.0
    %v2616 = vmax.f32 %v2608, 0.0
    %v2617 = vmax.f32 %v2609, 0.0
    %v2618 = vmax.f32 %v2610, 0.0
    %v2619 = vmax.f32 %v2611, 0.0
    %v2620 = vmax.f32 %v2612, 0.0
    %s2621 = scalar_lea.vmem [#allocation5], 256
    %v2622 = vld [vmem:[%s2621] sm:$0xff]
    %v2623 = vld [vmem:[%s2621 + $0x8] sm:$0xff]
    %v2624 = vld [vmem:[%s2621 + $0x10] sm:$0xff]
    %v2625 = vld [vmem:[%s2621 + $0x18] sm:$0xff]
    %v2626 = vld [vmem:[%s2621 + $0x20] sm:$0xff]
    %v2627 = vld [vmem:[%s2621 + $0x28] sm:$0xff]
    %v2628 = vld [vmem:[%s2621 + $0x30] sm:$0xff]
    %v2629 = vld [vmem:[%s2621 + $0x38] sm:$0xff]
    %v2630 = vmul.f32 %v2613, %v2622
    %v2631 = vmul.f32 %v2614, %v2623
    %v2632 = vmul.f32 %v2615, %v2624
    %v2633 = vmul.f32 %v2616, %v2625
    %v2634 = vmul.f32 %v2617, %v2626
    %v2635 = vmul.f32 %v2618, %v2627
    %v2636 = vmul.f32 %v2619, %v2628
    %v2637 = vmul.f32 %v2620, %v2629
    %2638 = vst [vmem:[#allocation2 + $0x8] sm:$0xff] %v2630
    %2639 = vst [vmem:[#allocation2 + $0x10] sm:$0xff] %v2631
    %2640 = vst [vmem:[#allocation2 + $0x18] sm:$0xff] %v2632
    %2641 = vst [vmem:[#allocation2 + $0x20] sm:$0xff] %v2633
    %2642 = vst [vmem:[#allocation2 + $0x28] sm:$0xff] %v2634
    %2643 = vst [vmem:[#allocation2 + $0x30] sm:$0xff] %v2635
    %2644 = vst [vmem:[#allocation2 + $0x38] sm:$0xff] %v2636
    %2645 = vst [vmem:[#allocation2 + $0x40] sm:$0xff] %v2637
    %v2646 = vld [vmem:[%s13] sm:$0x1]
    %v2647 = vld [vmem:[#allocation2 + $0x6] sm:$0xff]
    %v2648 = vld [vmem:[#allocation2 + $0xe] sm:$0xff]
    %v2649 = vld [vmem:[#allocation2 + $0x16] sm:$0xff]
    %v2650 = vld [vmem:[#allocation2 + $0x1e] sm:$0xff]
    %v2651 = vld [vmem:[#allocation2 + $0x26] sm:$0xff]
    %v2652 = vld [vmem:[#allocation2 + $0x2e] sm:$0xff]
    %v2653 = vld [vmem:[#allocation2 + $0x36] sm:$0xff]
    %v2654 = vld [vmem:[#allocation2 + $0x3e] sm:$0xff]
    %v2655 = vld [vmem:[#allocation15] sm:$0xff]
    %v2656 = vld [vmem:[#allocation15 + $0x8] sm:$0xff]
    %v2657 = vld [vmem:[#allocation15 + $0x10] sm:$0xff]
    %v2658 = vld [vmem:[#allocation15 + $0x18] sm:$0xff]
    %v2659 = vld [vmem:[#allocation15 + $0x20] sm:$0xff]
    %v2660 = vld [vmem:[#allocation15 + $0x28] sm:$0xff]
    %v2661 = vld [vmem:[#allocation15 + $0x30] sm:$0xff]
    %v2662 = vld [vmem:[#allocation15 + $0x38] sm:$0xff]
    %v2663 = vld [vmem:[#allocation15 + $0x40] sm:$0xff]
    %v2664 = vld [vmem:[#allocation15 + $0x48] sm:$0xff]
    %v2665 = vld [vmem:[#allocation15 + $0x50] sm:$0xff]
    %v2666 = vld [vmem:[#allocation15 + $0x58] sm:$0xff]
    %v2667 = vld [vmem:[#allocation15 + $0x60] sm:$0xff]
    %v2668 = vld [vmem:[#allocation15 + $0x68] sm:$0xff]
    %v2669 = vld [vmem:[#allocation15 + $0x70] sm:$0xff]
    %v2670 = vld [vmem:[#allocation15 + $0x78] sm:$0xff]
    %v2671 = vld [vmem:[#allocation2 + $0x7] sm:$0xff]
    %v2672 = vld [vmem:[#allocation2 + $0xf] sm:$0xff]
    %v2673 = vld [vmem:[#allocation2 + $0x17] sm:$0xff]
    %v2674 = vld [vmem:[#allocation2 + $0x1f] sm:$0xff]
    %v2675 = vld [vmem:[#allocation2 + $0x27] sm:$0xff]
    %v2676 = vld [vmem:[#allocation2 + $0x2f] sm:$0xff]
    %v2677 = vld [vmem:[#allocation2 + $0x37] sm:$0xff]
    %v2678 = vld [vmem:[#allocation2 + $0x3f] sm:$0xff]
    %s2679 = scalar_lea.vmem [#allocation15], 128
    %v2680 = vld [vmem:[%s2679] sm:$0xff]
    %v2681 = vld [vmem:[%s2679 + $0x8] sm:$0xff]
    %v2682 = vld [vmem:[%s2679 + $0x10] sm:$0xff]
    %v2683 = vld [vmem:[%s2679 + $0x18] sm:$0xff]
    %v2684 = vld [vmem:[%s2679 + $0x20] sm:$0xff]
    %v2685 = vld [vmem:[%s2679 + $0x28] sm:$0xff]
    %v2686 = vld [vmem:[%s2679 + $0x30] sm:$0xff]
    %v2687 = vld [vmem:[%s2679 + $0x38] sm:$0xff]
    %v2688 = vld [vmem:[%s2679 + $0x40] sm:$0xff]
    %v2689 = vld [vmem:[%s2679 + $0x48] sm:$0xff]
    %v2690 = vld [vmem:[%s2679 + $0x50] sm:$0xff]
    %v2691 = vld [vmem:[%s2679 + $0x58] sm:$0xff]
    %v2692 = vld [vmem:[%s2679 + $0x60] sm:$0xff]
    %v2693 = vld [vmem:[%s2679 + $0x68] sm:$0xff]
    %v2694 = vld [vmem:[%s2679 + $0x70] sm:$0xff]
    %v2695 = vld [vmem:[%s2679 + $0x78] sm:$0xff]
    %v2696 = vld [vmem:[#allocation2 + $0x8] sm:$0xff]
    %v2697 = vld [vmem:[#allocation2 + $0x10] sm:$0xff]
    %v2698 = vld [vmem:[#allocation2 + $0x18] sm:$0xff]
    %v2699 = vld [vmem:[#allocation2 + $0x20] sm:$0xff]
    %v2700 = vld [vmem:[#allocation2 + $0x28] sm:$0xff]
    %v2701 = vld [vmem:[#allocation2 + $0x30] sm:$0xff]
    %v2702 = vld [vmem:[#allocation2 + $0x38] sm:$0xff]
    %v2703 = vld [vmem:[#allocation2 + $0x40] sm:$0xff]
    %s2704 = scalar_lea.vmem [#allocation15], 256
    %v2705 = vld [vmem:[%s2704] sm:$0xff]
    %v2706 = vld [vmem:[%s2704 + $0x8] sm:$0xff]
    %v2707 = vld [vmem:[%s2704 + $0x10] sm:$0xff]
    %v2708 = vld [vmem:[%s2704 + $0x18] sm:$0xff]
    %v2709 = vld [vmem:[%s2704 + $0x20] sm:$0xff]
    %v2710 = vld [vmem:[%s2704 + $0x28] sm:$0xff]
    %v2711 = vld [vmem:[%s2704 + $0x30] sm:$0xff]
    %v2712 = vld [vmem:[%s2704 + $0x38] sm:$0xff]
    %v2713 = vld [vmem:[%s2704 + $0x40] sm:$0xff]
    %v2714 = vld [vmem:[%s2704 + $0x48] sm:$0xff]
    %v2715 = vld [vmem:[%s2704 + $0x50] sm:$0xff]
    %v2716 = vld [vmem:[%s2704 + $0x58] sm:$0xff]
    %v2717 = vld [vmem:[%s2704 + $0x60] sm:$0xff]
    %v2718 = vld [vmem:[%s2704 + $0x68] sm:$0xff]
    %v2719 = vld [vmem:[%s2704 + $0x70] sm:$0xff]
    %v2720 = vld [vmem:[%s2704 + $0x78] sm:$0xff]
    %2721 = vmatpush.msra.mxu0 %v2720
    %2722 = vmatpush.msra.mxu0 %v2719
    %2723 = vmatpush.msra.mxu0 %v2718
    %2724 = vmatpush.msra.mxu0 %v2717
    %2725 = vmatpush.msra.mxu0 %v2716
    %2726 = vmatpush.msra.mxu0 %v2715
    %2727 = vmatpush.msra.mxu0 %v2714
    %2728 = vmatpush.msra.mxu0 %v2713
    %2729 = vmatpush.msra.mxu0 %v2712
    %2730 = vmatpush.msra.mxu0 %v2711
    %2731 = vmatpush.msra.mxu0 %v2710
    %2732 = vmatpush.msra.mxu0 %v2709
    %2733 = vmatpush.msra.mxu0 %v2708
    %2734 = vmatpush.msra.mxu0 %v2707
    %2735 = vmatpush.msra.mxu0 %v2706
    %2736 = vmatpush.msra.mxu0 %v2705
    %2737 = vmatmul.f32.gmra.mxu0 %v2696
    %v2738 = vpop.f32.mrf.mxu0
    %2739 = vmatmul.f32.gmra.mxu0 %v2697
    %v2740 = vpop.f32.mrf.mxu0
    %v2741 = vadd.f32 0.0, %v2740
    %2742 = vmatmul.f32.gmra.mxu0 %v2698
    %v2743 = vpop.f32.mrf.mxu0
    %2744 = vmatmul.f32.gmra.mxu0 %v2699
    %v2745 = vpop.f32.mrf.mxu0
    %2746 = vmatmul.f32.gmra.mxu0 %v2700
    %v2747 = vpop.f32.mrf.mxu0
    %2748 = vmatmul.f32.gmra.mxu0 %v2701
    %v2749 = vpop.f32.mrf.mxu0
    %v2750 = vadd.f32 0.0, %v2749
    %2751 = vmatmul.f32.gmra.mxu0 %v2702
    %v2752 = vpop.f32.mrf.mxu0
    %2753 = vmatmul.f32.gmra.mxu0 %v2703
    %v2754 = vpop.f32.mrf.mxu0
    %2755 = vdwg.mxu0
    %2756 = vmatpush.msra.mxu0 %v2670
    %2757 = vmatpush.msra.mxu0 %v2669
    %2758 = vmatpush.msra.mxu0 %v2668
    %2759 = vmatpush.msra.mxu0 %v2667
    %2760 = vmatpush.msra.mxu0 %v2666
    %2761 = vmatpush.msra.mxu0 %v2665
    %2762 = vmatpush.msra.mxu0 %v2664
    %2763 = vmatpush.msra.mxu0 %v2663
    %2764 = vmatpush.msra.mxu0 %v2662
    %2765 = vmatpush.msra.mxu0 %v2661
    %2766 = vmatpush.msra.mxu0 %v2660
    %2767 = vmatpush.msra.mxu0 %v2659
    %2768 = vmatpush.msra.mxu0 %v2658
    %2769 = vmatpush.msra.mxu0 %v2657
    %2770 = vmatpush.msra.mxu0 %v2656
    %2771 = vmatpush.msra.mxu0 %v2655
    %2772 = vmatmul.f32.gmra.mxu0 %v2647
    %v2773 = vpop.f32.mrf.mxu0
    %2774 = vmatmul.f32.gmra.mxu0 %v2648
    %v2775 = vpop.f32.mrf.mxu0
    %v2776 = vadd.f32 %v2741, %v2775
    %2777 = vmatmul.f32.gmra.mxu0 %v2649
    %v2778 = vpop.f32.mrf.mxu0
    %2779 = vmatmul.f32.gmra.mxu0 %v2650
    %v2780 = vpop.f32.mrf.mxu0
    %2781 = vmatmul.f32.gmra.mxu0 %v2651
    %v2782 = vpop.f32.mrf.mxu0
    %2783 = vmatmul.f32.gmra.mxu0 %v2652
    %v2784 = vpop.f32.mrf.mxu0
    %v2785 = vadd.f32 %v2750, %v2784
    %2786 = vmatmul.f32.gmra.mxu0 %v2653
    %v2787 = vpop.f32.mrf.mxu0
    %2788 = vmatmul.f32.gmra.mxu0 %v2654
    %v2789 = vpop.f32.mrf.mxu0
    %2790 = vdwg.mxu0
    %v2791 = vld [vmem:[#allocation2 + $0x9] sm:$0xff]
    %v2792 = vld [vmem:[#allocation2 + $0x11] sm:$0xff]
    %v2793 = vld [vmem:[#allocation2 + $0x19] sm:$0xff]
    %v2794 = vld [vmem:[#allocation2 + $0x21] sm:$0xff]
    %v2795 = vld [vmem:[#allocation2 + $0x29] sm:$0xff]
    %v2796 = vld [vmem:[#allocation2 + $0x31] sm:$0xff]
    %v2797 = vld [vmem:[#allocation2 + $0x39] sm:$0xff]
    %v2798 = vld [vmem:[#allocation2 + $0x41] sm:$0xff]
    %s2799 = scalar_lea.vmem [#allocation15], 384
    %v2800 = vld [vmem:[%s2799] sm:$0xff]
    %v2801 = vld [vmem:[%s2799 + $0x8] sm:$0xff]
    %v2802 = vld [vmem:[%s2799 + $0x10] sm:$0xff]
    %v2803 = vld [vmem:[%s2799 + $0x18] sm:$0xff]
    %v2804 = vld [vmem:[%s2799 + $0x20] sm:$0xff]
    %v2805 = vld [vmem:[%s2799 + $0x28] sm:$0xff]
    %v2806 = vld [vmem:[%s2799 + $0x30] sm:$0xff]
    %v2807 = vld [vmem:[%s2799 + $0x38] sm:$0xff]
    %v2808 = vld [vmem:[%s2799 + $0x40] sm:$0xff]
    %v2809 = vld [vmem:[%s2799 + $0x48] sm:$0xff]
    %v2810 = vld [vmem:[%s2799 + $0x50] sm:$0xff]
    %v2811 = vld [vmem:[%s2799 + $0x58] sm:$0xff]
    %v2812 = vld [vmem:[%s2799 + $0x60] sm:$0xff]
    %v2813 = vld [vmem:[%s2799 + $0x68] sm:$0xff]
    %v2814 = vld [vmem:[%s2799 + $0x70] sm:$0xff]
    %v2815 = vld [vmem:[%s2799 + $0x78] sm:$0xff]
    %2816 = vmatpush.msra.mxu0 %v2815
    %2817 = vmatpush.msra.mxu0 %v2814
    %2818 = vmatpush.msra.mxu0 %v2813
    %2819 = vmatpush.msra.mxu0 %v2812
    %2820 = vmatpush.msra.mxu0 %v2811
    %2821 = vmatpush.msra.mxu0 %v2810
    %2822 = vmatpush.msra.mxu0 %v2809
    %2823 = vmatpush.msra.mxu0 %v2808
    %2824 = vmatpush.msra.mxu0 %v2807
    %2825 = vmatpush.msra.mxu0 %v2806
    %2826 = vmatpush.msra.mxu0 %v2805
    %2827 = vmatpush.msra.mxu0 %v2804
    %2828 = vmatpush.msra.mxu0 %v2803
    %2829 = vmatpush.msra.mxu0 %v2802
    %2830 = vmatpush.msra.mxu0 %v2801
    %2831 = vmatpush.msra.mxu0 %v2800
    %2832 = vmatmul.f32.gmra.mxu0 %v2791
    %v2833 = vpop.f32.mrf.mxu0
    %2834 = vmatmul.f32.gmra.mxu0 %v2792
    %v2835 = vpop.f32.mrf.mxu0
    %v2836 = vadd.f32 0.0, %v2835
    %2837 = vmatmul.f32.gmra.mxu0 %v2793
    %v2838 = vpop.f32.mrf.mxu0
    %2839 = vmatmul.f32.gmra.mxu0 %v2794
    %v2840 = vpop.f32.mrf.mxu0
    %2841 = vmatmul.f32.gmra.mxu0 %v2795
    %v2842 = vpop.f32.mrf.mxu0
    %2843 = vmatmul.f32.gmra.mxu0 %v2796
    %v2844 = vpop.f32.mrf.mxu0
    %v2845 = vadd.f32 0.0, %v2844
    %2846 = vmatmul.f32.gmra.mxu0 %v2797
    %v2847 = vpop.f32.mrf.mxu0
    %2848 = vmatmul.f32.gmra.mxu0 %v2798
    %v2849 = vpop.f32.mrf.mxu0
    %2850 = vdwg.mxu0
    %2851 = vmatpush.msra.mxu0 %v2695
    %2852 = vmatpush.msra.mxu0 %v2694
    %2853 = vmatpush.msra.mxu0 %v2693
    %2854 = vmatpush.msra.mxu0 %v2692
    %2855 = vmatpush.msra.mxu0 %v2691
    %2856 = vmatpush.msra.mxu0 %v2690
    %2857 = vmatpush.msra.mxu0 %v2689
    %2858 = vmatpush.msra.mxu0 %v2688
    %2859 = vmatpush.msra.mxu0 %v2687
    %2860 = vmatpush.msra.mxu0 %v2686
    %2861 = vmatpush.msra.mxu0 %v2685
    %2862 = vmatpush.msra.mxu0 %v2684
    %2863 = vmatpush.msra.mxu0 %v2683
    %2864 = vmatpush.msra.mxu0 %v2682
    %2865 = vmatpush.msra.mxu0 %v2681
    %2866 = vmatpush.msra.mxu0 %v2680
    %2867 = vmatmul.f32.gmra.mxu0 %v2671
    %v2868 = vpop.f32.mrf.mxu0
    %2869 = vmatmul.f32.gmra.mxu0 %v2672
    %v2870 = vpop.f32.mrf.mxu0
    %v2871 = vadd.f32 %v2836, %v2870
    %2872 = vmatmul.f32.gmra.mxu0 %v2673
    %v2873 = vpop.f32.mrf.mxu0
    %2874 = vmatmul.f32.gmra.mxu0 %v2674
    %v2875 = vpop.f32.mrf.mxu0
    %2876 = vmatmul.f32.gmra.mxu0 %v2675
    %v2877 = vpop.f32.mrf.mxu0
    %2878 = vmatmul.f32.gmra.mxu0 %v2676
    %v2879 = vpop.f32.mrf.mxu0
    %v2880 = vadd.f32 %v2845, %v2879
    %2881 = vmatmul.f32.gmra.mxu0 %v2677
    %v2882 = vpop.f32.mrf.mxu0
    %2883 = vmatmul.f32.gmra.mxu0 %v2678
    %v2884 = vpop.f32.mrf.mxu0
    %2885 = vdwg.mxu0
    %v2886 = vld [vmem:[#allocation2 + $0xa] sm:$0xff]
    %v2887 = vld [vmem:[#allocation2 + $0x12] sm:$0xff]
    %v2888 = vld [vmem:[#allocation2 + $0x1a] sm:$0xff]
    %v2889 = vld [vmem:[#allocation2 + $0x22] sm:$0xff]
    %v2890 = vld [vmem:[#allocation2 + $0x2a] sm:$0xff]
    %v2891 = vld [vmem:[#allocation2 + $0x32] sm:$0xff]
    %v2892 = vld [vmem:[#allocation2 + $0x3a] sm:$0xff]
    %v2893 = vld [vmem:[#allocation2 + $0x42] sm:$0xff]
    %s2894 = scalar_lea.vmem [#allocation15], 512
    %v2895 = vld [vmem:[%s2894] sm:$0xff]
    %v2896 = vld [vmem:[%s2894 + $0x8] sm:$0xff]
    %v2897 = vld [vmem:[%s2894 + $0x10] sm:$0xff]
    %v2898 = vld [vmem:[%s2894 + $0x18] sm:$0xff]
    %v2899 = vld [vmem:[%s2894 + $0x20] sm:$0xff]
    %v2900 = vld [vmem:[%s2894 + $0x28] sm:$0xff]
    %v2901 = vld [vmem:[%s2894 + $0x30] sm:$0xff]
    %v2902 = vld [vmem:[%s2894 + $0x38] sm:$0xff]
    %v2903 = vld [vmem:[%s2894 + $0x40] sm:$0xff]
    %v2904 = vld [vmem:[%s2894 + $0x48] sm:$0xff]
    %v2905 = vld [vmem:[%s2894 + $0x50] sm:$0xff]
    %v2906 = vld [vmem:[%s2894 + $0x58] sm:$0xff]
    %v2907 = vld [vmem:[%s2894 + $0x60] sm:$0xff]
    %v2908 = vld [vmem:[%s2894 + $0x68] sm:$0xff]
    %v2909 = vld [vmem:[%s2894 + $0x70] sm:$0xff]
    %v2910 = vld [vmem:[%s2894 + $0x78] sm:$0xff]
    %2911 = vmatpush.msra.mxu0 %v2910
    %2912 = vmatpush.msra.mxu0 %v2909
    %2913 = vmatpush.msra.mxu0 %v2908
    %2914 = vmatpush.msra.mxu0 %v2907
    %2915 = vmatpush.msra.mxu0 %v2906
    %2916 = vmatpush.msra.mxu0 %v2905
    %2917 = vmatpush.msra.mxu0 %v2904
    %2918 = vmatpush.msra.mxu0 %v2903
    %2919 = vmatpush.msra.mxu0 %v2902
    %2920 = vmatpush.msra.mxu0 %v2901
    %2921 = vmatpush.msra.mxu0 %v2900
    %2922 = vmatpush.msra.mxu0 %v2899
    %2923 = vmatpush.msra.mxu0 %v2898
    %2924 = vmatpush.msra.mxu0 %v2897
    %2925 = vmatpush.msra.mxu0 %v2896
    %2926 = vmatpush.msra.mxu0 %v2895
    %2927 = vmatmul.f32.gmra.mxu0 %v2886
    %v2928 = vpop.f32.mrf.mxu0
    %2929 = vmatmul.f32.gmra.mxu0 %v2887
    %v2930 = vpop.f32.mrf.mxu0
    %v2931 = vadd.f32 0.0, %v2930
    %2932 = vmatmul.f32.gmra.mxu0 %v2888
    %v2933 = vpop.f32.mrf.mxu0
    %2934 = vmatmul.f32.gmra.mxu0 %v2889
    %v2935 = vpop.f32.mrf.mxu0
    %2936 = vmatmul.f32.gmra.mxu0 %v2890
    %v2937 = vpop.f32.mrf.mxu0
    %2938 = vmatmul.f32.gmra.mxu0 %v2891
    %v2939 = vpop.f32.mrf.mxu0
    %v2940 = vadd.f32 0.0, %v2939
    %2941 = vmatmul.f32.gmra.mxu0 %v2892
    %v2942 = vpop.f32.mrf.mxu0
    %2943 = vmatmul.f32.gmra.mxu0 %v2893
    %v2944 = vpop.f32.mrf.mxu0
    %2945 = vdwg.mxu0
    %v2946 = vadd.f32 %v2776, %v2931
    %v2947 = vadd.f32 %v2785, %v2940
    %v2948 = vld [vmem:[#allocation2 + $0xb] sm:$0xff]
    %v2949 = vld [vmem:[#allocation2 + $0x13] sm:$0xff]
    %v2950 = vld [vmem:[#allocation2 + $0x1b] sm:$0xff]
    %v2951 = vld [vmem:[#allocation2 + $0x23] sm:$0xff]
    %v2952 = vld [vmem:[#allocation2 + $0x2b] sm:$0xff]
    %v2953 = vld [vmem:[#allocation2 + $0x33] sm:$0xff]
    %v2954 = vld [vmem:[#allocation2 + $0x3b] sm:$0xff]
    %v2955 = vld [vmem:[#allocation2 + $0x43] sm:$0xff]
    %s2956 = scalar_lea.vmem [#allocation15], 640
    %v2957 = vld [vmem:[%s2956] sm:$0xff]
    %v2958 = vld [vmem:[%s2956 + $0x8] sm:$0xff]
    %v2959 = vld [vmem:[%s2956 + $0x10] sm:$0xff]
    %v2960 = vld [vmem:[%s2956 + $0x18] sm:$0xff]
    %v2961 = vld [vmem:[%s2956 + $0x20] sm:$0xff]
    %v2962 = vld [vmem:[%s2956 + $0x28] sm:$0xff]
    %v2963 = vld [vmem:[%s2956 + $0x30] sm:$0xff]
    %v2964 = vld [vmem:[%s2956 + $0x38] sm:$0xff]
    %v2965 = vld [vmem:[%s2956 + $0x40] sm:$0xff]
    %v2966 = vld [vmem:[%s2956 + $0x48] sm:$0xff]
    %v2967 = vld [vmem:[%s2956 + $0x50] sm:$0xff]
    %v2968 = vld [vmem:[%s2956 + $0x58] sm:$0xff]
    %v2969 = vld [vmem:[%s2956 + $0x60] sm:$0xff]
    %v2970 = vld [vmem:[%s2956 + $0x68] sm:$0xff]
    %v2971 = vld [vmem:[%s2956 + $0x70] sm:$0xff]
    %v2972 = vld [vmem:[%s2956 + $0x78] sm:$0xff]
    %2973 = vmatpush.msra.mxu0 %v2972
    %2974 = vmatpush.msra.mxu0 %v2971
    %2975 = vmatpush.msra.mxu0 %v2970
    %2976 = vmatpush.msra.mxu0 %v2969
    %2977 = vmatpush.msra.mxu0 %v2968
    %2978 = vmatpush.msra.mxu0 %v2967
    %2979 = vmatpush.msra.mxu0 %v2966
    %2980 = vmatpush.msra.mxu0 %v2965
    %2981 = vmatpush.msra.mxu0 %v2964
    %2982 = vmatpush.msra.mxu0 %v2963
    %2983 = vmatpush.msra.mxu0 %v2962
    %2984 = vmatpush.msra.mxu0 %v2961
    %2985 = vmatpush.msra.mxu0 %v2960
    %2986 = vmatpush.msra.mxu0 %v2959
    %2987 = vmatpush.msra.mxu0 %v2958
    %2988 = vmatpush.msra.mxu0 %v2957
    %2989 = vmatmul.f32.gmra.mxu0 %v2948
    %v2990 = vpop.f32.mrf.mxu0
    %2991 = vmatmul.f32.gmra.mxu0 %v2949
    %v2992 = vpop.f32.mrf.mxu0
    %v2993 = vadd.f32 0.0, %v2992
    %2994 = vmatmul.f32.gmra.mxu0 %v2950
    %v2995 = vpop.f32.mrf.mxu0
    %2996 = vmatmul.f32.gmra.mxu0 %v2951
    %v2997 = vpop.f32.mrf.mxu0
    %2998 = vmatmul.f32.gmra.mxu0 %v2952
    %v2999 = vpop.f32.mrf.mxu0
    %3000 = vmatmul.f32.gmra.mxu0 %v2953
    %v3001 = vpop.f32.mrf.mxu0
    %v3002 = vadd.f32 0.0, %v3001
    %3003 = vmatmul.f32.gmra.mxu0 %v2954
    %v3004 = vpop.f32.mrf.mxu0
    %3005 = vmatmul.f32.gmra.mxu0 %v2955
    %v3006 = vpop.f32.mrf.mxu0
    %3007 = vdwg.mxu0
    %v3008 = vadd.f32 %v2871, %v2993
    %v3009 = vadd.f32 %v2880, %v3002
    %v3010 = vld [vmem:[#allocation2 + $0xc] sm:$0xff]
    %v3011 = vld [vmem:[#allocation2 + $0x14] sm:$0xff]
    %v3012 = vld [vmem:[#allocation2 + $0x1c] sm:$0xff]
    %v3013 = vld [vmem:[#allocation2 + $0x24] sm:$0xff]
    %v3014 = vld [vmem:[#allocation2 + $0x2c] sm:$0xff]
    %v3015 = vld [vmem:[#allocation2 + $0x34] sm:$0xff]
    %v3016 = vld [vmem:[#allocation2 + $0x3c] sm:$0xff]
    %v3017 = vld [vmem:[#allocation2 + $0x44] sm:$0xff]
    %s3018 = scalar_lea.vmem [#allocation15], 768
    %v3019 = vld [vmem:[%s3018] sm:$0xff]
    %v3020 = vld [vmem:[%s3018 + $0x8] sm:$0xff]
    %v3021 = vld [vmem:[%s3018 + $0x10] sm:$0xff]
    %v3022 = vld [vmem:[%s3018 + $0x18] sm:$0xff]
    %v3023 = vld [vmem:[%s3018 + $0x20] sm:$0xff]
    %v3024 = vld [vmem:[%s3018 + $0x28] sm:$0xff]
    %v3025 = vld [vmem:[%s3018 + $0x30] sm:$0xff]
    %v3026 = vld [vmem:[%s3018 + $0x38] sm:$0xff]
    %v3027 = vld [vmem:[%s3018 + $0x40] sm:$0xff]
    %v3028 = vld [vmem:[%s3018 + $0x48] sm:$0xff]
    %v3029 = vld [vmem:[%s3018 + $0x50] sm:$0xff]
    %v3030 = vld [vmem:[%s3018 + $0x58] sm:$0xff]
    %v3031 = vld [vmem:[%s3018 + $0x60] sm:$0xff]
    %v3032 = vld [vmem:[%s3018 + $0x68] sm:$0xff]
    %v3033 = vld [vmem:[%s3018 + $0x70] sm:$0xff]
    %v3034 = vld [vmem:[%s3018 + $0x78] sm:$0xff]
    %3035 = vmatpush.msra.mxu0 %v3034
    %3036 = vmatpush.msra.mxu0 %v3033
    %3037 = vmatpush.msra.mxu0 %v3032
    %3038 = vmatpush.msra.mxu0 %v3031
    %3039 = vmatpush.msra.mxu0 %v3030
    %3040 = vmatpush.msra.mxu0 %v3029
    %3041 = vmatpush.msra.mxu0 %v3028
    %3042 = vmatpush.msra.mxu0 %v3027
    %3043 = vmatpush.msra.mxu0 %v3026
    %3044 = vmatpush.msra.mxu0 %v3025
    %3045 = vmatpush.msra.mxu0 %v3024
    %3046 = vmatpush.msra.mxu0 %v3023
    %3047 = vmatpush.msra.mxu0 %v3022
    %3048 = vmatpush.msra.mxu0 %v3021
    %3049 = vmatpush.msra.mxu0 %v3020
    %3050 = vmatpush.msra.mxu0 %v3019
    %3051 = vmatmul.f32.gmra.mxu0 %v3010
    %v3052 = vpop.f32.mrf.mxu0
    %3053 = vmatmul.f32.gmra.mxu0 %v3011
    %v3054 = vpop.f32.mrf.mxu0
    %v3055 = vadd.f32 0.0, %v3054
    %3056 = vmatmul.f32.gmra.mxu0 %v3012
    %v3057 = vpop.f32.mrf.mxu0
    %3058 = vmatmul.f32.gmra.mxu0 %v3013
    %v3059 = vpop.f32.mrf.mxu0
    %3060 = vmatmul.f32.gmra.mxu0 %v3014
    %v3061 = vpop.f32.mrf.mxu0
    %3062 = vmatmul.f32.gmra.mxu0 %v3015
    %v3063 = vpop.f32.mrf.mxu0
    %v3064 = vadd.f32 0.0, %v3063
    %3065 = vmatmul.f32.gmra.mxu0 %v3016
    %v3066 = vpop.f32.mrf.mxu0
    %3067 = vmatmul.f32.gmra.mxu0 %v3017
    %v3068 = vpop.f32.mrf.mxu0
    %3069 = vdwg.mxu0
    %v3070 = vadd.f32 %v2946, %v3055
    %v3071 = vadd.f32 %v2947, %v3064
    %v3072 = vld [vmem:[#allocation2 + $0xd] sm:$0xff]
    %v3073 = vld [vmem:[#allocation2 + $0x15] sm:$0xff]
    %v3074 = vld [vmem:[#allocation2 + $0x1d] sm:$0xff]
    %v3075 = vld [vmem:[#allocation2 + $0x25] sm:$0xff]
    %v3076 = vld [vmem:[#allocation2 + $0x2d] sm:$0xff]
    %v3077 = vld [vmem:[#allocation2 + $0x35] sm:$0xff]
    %v3078 = vld [vmem:[#allocation2 + $0x3d] sm:$0xff]
    %v3079 = vld [vmem:[#allocation2 + $0x45] sm:$0xff]
    %s3080 = scalar_lea.vmem [#allocation15], 896
    %v3081 = vld [vmem:[%s3080] sm:$0xff]
    %v3082 = vld [vmem:[%s3080 + $0x8] sm:$0xff]
    %v3083 = vld [vmem:[%s3080 + $0x10] sm:$0xff]
    %v3084 = vld [vmem:[%s3080 + $0x18] sm:$0xff]
    %v3085 = vld [vmem:[%s3080 + $0x20] sm:$0xff]
    %v3086 = vld [vmem:[%s3080 + $0x28] sm:$0xff]
    %v3087 = vld [vmem:[%s3080 + $0x30] sm:$0xff]
    %v3088 = vld [vmem:[%s3080 + $0x38] sm:$0xff]
    %v3089 = vld [vmem:[%s3080 + $0x40] sm:$0xff]
    %v3090 = vld [vmem:[%s3080 + $0x48] sm:$0xff]
    %v3091 = vld [vmem:[%s3080 + $0x50] sm:$0xff]
    %v3092 = vld [vmem:[%s3080 + $0x58] sm:$0xff]
    %v3093 = vld [vmem:[%s3080 + $0x60] sm:$0xff]
    %v3094 = vld [vmem:[%s3080 + $0x68] sm:$0xff]
    %v3095 = vld [vmem:[%s3080 + $0x70] sm:$0xff]
    %v3096 = vld [vmem:[%s3080 + $0x78] sm:$0xff]
    %3097 = vmatpush.msra.mxu0 %v3096
    %3098 = vmatpush.msra.mxu0 %v3095
    %3099 = vmatpush.msra.mxu0 %v3094
    %3100 = vmatpush.msra.mxu0 %v3093
    %3101 = vmatpush.msra.mxu0 %v3092
    %3102 = vmatpush.msra.mxu0 %v3091
    %3103 = vmatpush.msra.mxu0 %v3090
    %3104 = vmatpush.msra.mxu0 %v3089
    %3105 = vmatpush.msra.mxu0 %v3088
    %3106 = vmatpush.msra.mxu0 %v3087
    %3107 = vmatpush.msra.mxu0 %v3086
    %3108 = vmatpush.msra.mxu0 %v3085
    %3109 = vmatpush.msra.mxu0 %v3084
    %3110 = vmatpush.msra.mxu0 %v3083
    %3111 = vmatpush.msra.mxu0 %v3082
    %3112 = vmatpush.msra.mxu0 %v3081
    %3113 = vmatmul.f32.gmra.mxu0 %v3072
    %v3114 = vpop.f32.mrf.mxu0
    %3115 = vmatmul.f32.gmra.mxu0 %v3073
    %v3116 = vpop.f32.mrf.mxu0
    %v3117 = vadd.f32 0.0, %v3116
    %3118 = vmatmul.f32.gmra.mxu0 %v3074
    %v3119 = vpop.f32.mrf.mxu0
    %3120 = vmatmul.f32.gmra.mxu0 %v3075
    %v3121 = vpop.f32.mrf.mxu0
    %3122 = vmatmul.f32.gmra.mxu0 %v3076
    %v3123 = vpop.f32.mrf.mxu0
    %3124 = vmatmul.f32.gmra.mxu0 %v3077
    %v3125 = vpop.f32.mrf.mxu0
    %v3126 = vadd.f32 0.0, %v3125
    %3127 = vmatmul.f32.gmra.mxu0 %v3078
    %v3128 = vpop.f32.mrf.mxu0
    %3129 = vmatmul.f32.gmra.mxu0 %v3079
    %v3130 = vpop.f32.mrf.mxu0
    %3131 = vdwg.mxu0
    %v3132 = vadd.f32 %v3008, %v3117
    %v3133 = vadd.f32 %v3009, %v3126
    %v3134 = vld [vmem:[#allocation2 + $0xe] sm:$0xff]
    %v3135 = vld [vmem:[#allocation2 + $0x16] sm:$0xff]
    %v3136 = vld [vmem:[#allocation2 + $0x1e] sm:$0xff]
    %v3137 = vld [vmem:[#allocation2 + $0x26] sm:$0xff]
    %v3138 = vld [vmem:[#allocation2 + $0x2e] sm:$0xff]
    %v3139 = vld [vmem:[#allocation2 + $0x36] sm:$0xff]
    %v3140 = vld [vmem:[#allocation2 + $0x3e] sm:$0xff]
    %v3141 = vld [vmem:[#allocation2 + $0x46] sm:$0xff]
    %s3142 = scalar_lea.vmem [#allocation15], 1024
    %v3143 = vld [vmem:[%s3142] sm:$0xff]
    %v3144 = vld [vmem:[%s3142 + $0x8] sm:$0xff]
    %v3145 = vld [vmem:[%s3142 + $0x10] sm:$0xff]
    %v3146 = vld [vmem:[%s3142 + $0x18] sm:$0xff]
    %v3147 = vld [vmem:[%s3142 + $0x20] sm:$0xff]
    %v3148 = vld [vmem:[%s3142 + $0x28] sm:$0xff]
    %v3149 = vld [vmem:[%s3142 + $0x30] sm:$0xff]
    %v3150 = vld [vmem:[%s3142 + $0x38] sm:$0xff]
    %v3151 = vld [vmem:[%s3142 + $0x40] sm:$0xff]
    %v3152 = vld [vmem:[%s3142 + $0x48] sm:$0xff]
    %v3153 = vld [vmem:[%s3142 + $0x50] sm:$0xff]
    %v3154 = vld [vmem:[%s3142 + $0x58] sm:$0xff]
    %v3155 = vld [vmem:[%s3142 + $0x60] sm:$0xff]
    %v3156 = vld [vmem:[%s3142 + $0x68] sm:$0xff]
    %v3157 = vld [vmem:[%s3142 + $0x70] sm:$0xff]
    %v3158 = vld [vmem:[%s3142 + $0x78] sm:$0xff]
    %3159 = vmatpush.msra.mxu0 %v3158
    %3160 = vmatpush.msra.mxu0 %v3157
    %3161 = vmatpush.msra.mxu0 %v3156
    %3162 = vmatpush.msra.mxu0 %v3155
    %3163 = vmatpush.msra.mxu0 %v3154
    %3164 = vmatpush.msra.mxu0 %v3153
    %3165 = vmatpush.msra.mxu0 %v3152
    %3166 = vmatpush.msra.mxu0 %v3151
    %3167 = vmatpush.msra.mxu0 %v3150
    %3168 = vmatpush.msra.mxu0 %v3149
    %3169 = vmatpush.msra.mxu0 %v3148
    %3170 = vmatpush.msra.mxu0 %v3147
    %3171 = vmatpush.msra.mxu0 %v3146
    %3172 = vmatpush.msra.mxu0 %v3145
    %3173 = vmatpush.msra.mxu0 %v3144
    %3174 = vmatpush.msra.mxu0 %v3143
    %3175 = vmatmul.f32.gmra.mxu0 %v3134
    %v3176 = vpop.f32.mrf.mxu0
    %3177 = vmatmul.f32.gmra.mxu0 %v3135
    %v3178 = vpop.f32.mrf.mxu0
    %v3179 = vadd.f32 0.0, %v3178
    %3180 = vmatmul.f32.gmra.mxu0 %v3136
    %v3181 = vpop.f32.mrf.mxu0
    %3182 = vmatmul.f32.gmra.mxu0 %v3137
    %v3183 = vpop.f32.mrf.mxu0
    %3184 = vmatmul.f32.gmra.mxu0 %v3138
    %v3185 = vpop.f32.mrf.mxu0
    %3186 = vmatmul.f32.gmra.mxu0 %v3139
    %v3187 = vpop.f32.mrf.mxu0
    %v3188 = vadd.f32 0.0, %v3187
    %3189 = vmatmul.f32.gmra.mxu0 %v3140
    %v3190 = vpop.f32.mrf.mxu0
    %3191 = vmatmul.f32.gmra.mxu0 %v3141
    %v3192 = vpop.f32.mrf.mxu0
    %3193 = vdwg.mxu0
    %v3194 = vadd.f32 %v3070, %v3179
    %v3195 = vadd.f32 %v3071, %v3188
    %v3196 = vadd.f32 %v3194, %v3132
    %v3197 = vadd.f32 %v3195, %v3133
    %v3199 = vperm.slane %v2646, 0
    %v3201 = vadd.f32 %v3196, %v3199
    %v3202 = vadd.f32 %v3197, %v3199
    %v3203 = vmax.f32 %v3201, 0.0
    %v3204 = vmax.f32 %v3202, 0.0
    %3205 = vst [vmem:[#allocation4] sm:$0x1] %v3203
    %v3207 = vrot.slane %v3203, 1
    %3209 = vst [vmem:[#allocation4 + $0x8] sm:$0x1] %v3207
    %v3210 = vrot.slane %v3203, 2
    %3212 = vst [vmem:[#allocation4 + $0x10] sm:$0x1] %v3210
    %v3213 = vrot.slane %v3203, 3
    %3215 = vst [vmem:[#allocation4 + $0x18] sm:$0x1] %v3213
    %v3216 = vrot.slane %v3203, 4
    %3218 = vst [vmem:[#allocation4 + $0x20] sm:$0x1] %v3216
    %v3219 = vrot.slane %v3203, 5
    %3221 = vst [vmem:[#allocation4 + $0x28] sm:$0x1] %v3219
    %3222 = vst [vmem:[#allocation4 + $0x1] sm:$0x1] %v3204
    %v3224 = vrot.slane %v3204, 1
    %3226 = vst [vmem:[#allocation4 + $0x9] sm:$0x1] %v3224
    %v3227 = vrot.slane %v3204, 2
    %3229 = vst [vmem:[#allocation4 + $0x11] sm:$0x1] %v3227
    %v3230 = vrot.slane %v3204, 3
    %3232 = vst [vmem:[#allocation4 + $0x19] sm:$0x1] %v3230
    %v3233 = vrot.slane %v3204, 4
    %3235 = vst [vmem:[#allocation4 + $0x21] sm:$0x1] %v3233
    %v3236 = vrot.slane %v3204, 5
    %3238 = vst [vmem:[#allocation4 + $0x29] sm:$0x1] %v3236
    %v3239 = vld [vmem:[#allocation4] sm:$0xff]
    %v3240 = vld [vmem:[#allocation4 + $0x8] sm:$0xff]
    %v3241 = vld [vmem:[#allocation4 + $0x10] sm:$0xff]
    %v3242 = vld [vmem:[#allocation4 + $0x18] sm:$0xff]
    %v3243 = vld [vmem:[#allocation4 + $0x20] sm:$0xff]
    %v3244 = vld [vmem:[#allocation4 + $0x28] sm:$0xff]
    %v3245 = vld [vmem:[#allocation16] sm:$0xff]
    %v3246 = vld [vmem:[#allocation16 + $0x8] sm:$0xff]
    %v3247 = vld [vmem:[#allocation16 + $0x10] sm:$0xff]
    %v3248 = vld [vmem:[#allocation16 + $0x18] sm:$0xff]
    %v3249 = vld [vmem:[#allocation16 + $0x20] sm:$0xff]
    %v3250 = vld [vmem:[#allocation16 + $0x28] sm:$0xff]
    %v3251 = vld [vmem:[#allocation16 + $0x30] sm:$0xff]
    %v3252 = vld [vmem:[#allocation16 + $0x38] sm:$0xff]
    %v3253 = vld [vmem:[#allocation16 + $0x40] sm:$0xff]
    %v3254 = vld [vmem:[#allocation16 + $0x48] sm:$0xff]
    %v3255 = vld [vmem:[#allocation16 + $0x50] sm:$0xff]
    %v3256 = vld [vmem:[#allocation16 + $0x58] sm:$0xff]
    %v3257 = vld [vmem:[#allocation16 + $0x60] sm:$0xff]
    %v3258 = vld [vmem:[#allocation16 + $0x68] sm:$0xff]
    %v3259 = vld [vmem:[#allocation16 + $0x70] sm:$0xff]
    %v3260 = vld [vmem:[#allocation16 + $0x78] sm:$0xff]
    %v3261 = vld [vmem:[#allocation16 + $0x80] sm:$0xff]
    %v3262 = vld [vmem:[#allocation16 + $0x88] sm:$0xff]
    %v3263 = vld [vmem:[#allocation16 + $0x90] sm:$0xff]
    %v3264 = vld [vmem:[#allocation16 + $0x98] sm:$0xff]
    %v3265 = vld [vmem:[#allocation16 + $0xa0] sm:$0xff]
    %v3266 = vld [vmem:[#allocation16 + $0xa8] sm:$0xff]
    %v3267 = vld [vmem:[#allocation16 + $0xb0] sm:$0xff]
    %v3268 = vld [vmem:[#allocation16 + $0xb8] sm:$0xff]
    %v3269 = vld [vmem:[#allocation16 + $0xc0] sm:$0xff]
    %v3270 = vld [vmem:[#allocation16 + $0xc8] sm:$0xff]
    %v3271 = vld [vmem:[#allocation16 + $0xd0] sm:$0xff]
    %v3272 = vld [vmem:[#allocation16 + $0xd8] sm:$0xff]
    %v3273 = vld [vmem:[#allocation16 + $0xe0] sm:$0xff]
    %v3274 = vld [vmem:[#allocation16 + $0xe8] sm:$0xff]
    %v3275 = vld [vmem:[#allocation16 + $0xf0] sm:$0xff]
    %v3276 = vld [vmem:[#allocation16 + $0xf8] sm:$0xff]
    %v3277 = vld [vmem:[#allocation16 + $0x100] sm:$0xff]
    %v3278 = vld [vmem:[#allocation16 + $0x108] sm:$0xff]
    %v3279 = vld [vmem:[#allocation16 + $0x110] sm:$0xff]
    %v3280 = vld [vmem:[#allocation16 + $0x118] sm:$0xff]
    %v3281 = vld [vmem:[#allocation16 + $0x120] sm:$0xff]
    %v3282 = vld [vmem:[#allocation16 + $0x128] sm:$0xff]
    %v3283 = vld [vmem:[#allocation16 + $0x130] sm:$0xff]
    %v3284 = vld [vmem:[#allocation16 + $0x138] sm:$0xff]
    %v3285 = vld [vmem:[#allocation16 + $0x140] sm:$0xff]
    %v3286 = vld [vmem:[#allocation16 + $0x148] sm:$0xff]
    %v3287 = vld [vmem:[#allocation16 + $0x150] sm:$0xff]
    %v3288 = vld [vmem:[#allocation16 + $0x158] sm:$0xff]
    %v3289 = vld [vmem:[#allocation16 + $0x160] sm:$0xff]
    %v3290 = vld [vmem:[#allocation16 + $0x168] sm:$0xff]
    %v3291 = vld [vmem:[#allocation16 + $0x170] sm:$0xff]
    %v3292 = vld [vmem:[#allocation16 + $0x178] sm:$0xff]
    %v3293 = vld [vmem:[#allocation16 + $0x180] sm:$0xff]
    %v3294 = vld [vmem:[#allocation16 + $0x188] sm:$0xff]
    %v3295 = vld [vmem:[#allocation16 + $0x190] sm:$0xff]
    %v3296 = vld [vmem:[#allocation16 + $0x198] sm:$0xff]
    %v3297 = vld [vmem:[#allocation16 + $0x1a0] sm:$0xff]
    %v3298 = vld [vmem:[#allocation16 + $0x1a8] sm:$0xff]
    %v3299 = vld [vmem:[#allocation16 + $0x1b0] sm:$0xff]
    %v3300 = vld [vmem:[#allocation16 + $0x1b8] sm:$0xff]
    %v3301 = vld [vmem:[#allocation16 + $0x1c0] sm:$0xff]
    %v3302 = vld [vmem:[#allocation16 + $0x1c8] sm:$0xff]
    %v3303 = vld [vmem:[#allocation16 + $0x1d0] sm:$0xff]
    %v3304 = vld [vmem:[#allocation16 + $0x1d8] sm:$0xff]
    %v3305 = vld [vmem:[#allocation16 + $0x1e0] sm:$0xff]
    %v3306 = vld [vmem:[#allocation16 + $0x1e8] sm:$0xff]
    %v3307 = vld [vmem:[#allocation16 + $0x1f0] sm:$0xff]
    %v3308 = vld [vmem:[#allocation16 + $0x1f8] sm:$0xff]
    %v3309 = vld [vmem:[#allocation16 + $0x200] sm:$0xff]
    %v3310 = vld [vmem:[#allocation16 + $0x208] sm:$0xff]
    %v3311 = vld [vmem:[#allocation16 + $0x210] sm:$0xff]
    %v3312 = vld [vmem:[#allocation16 + $0x218] sm:$0xff]
    %v3313 = vld [vmem:[#allocation16 + $0x220] sm:$0xff]
    %v3314 = vld [vmem:[#allocation16 + $0x228] sm:$0xff]
    %v3315 = vld [vmem:[#allocation16 + $0x230] sm:$0xff]
    %v3316 = vld [vmem:[#allocation16 + $0x238] sm:$0xff]
    %v3317 = vld [vmem:[#allocation16 + $0x240] sm:$0xff]
    %v3318 = vld [vmem:[#allocation16 + $0x248] sm:$0xff]
    %v3319 = vld [vmem:[#allocation16 + $0x250] sm:$0xff]
    %v3320 = vld [vmem:[#allocation16 + $0x258] sm:$0xff]
    %v3321 = vld [vmem:[#allocation16 + $0x260] sm:$0xff]
    %v3322 = vld [vmem:[#allocation16 + $0x268] sm:$0xff]
    %v3323 = vld [vmem:[#allocation16 + $0x270] sm:$0xff]
    %v3324 = vld [vmem:[#allocation16 + $0x278] sm:$0xff]
    %v3325 = vld [vmem:[#allocation16 + $0x280] sm:$0xff]
    %v3326 = vld [vmem:[#allocation16 + $0x288] sm:$0xff]
    %v3327 = vld [vmem:[#allocation16 + $0x290] sm:$0xff]
    %v3328 = vld [vmem:[#allocation16 + $0x298] sm:$0xff]
    %v3329 = vld [vmem:[#allocation16 + $0x2a0] sm:$0xff]
    %v3330 = vld [vmem:[#allocation16 + $0x2a8] sm:$0xff]
    %v3331 = vld [vmem:[#allocation16 + $0x2b0] sm:$0xff]
    %v3332 = vld [vmem:[#allocation16 + $0x2b8] sm:$0xff]
    %v3333 = vld [vmem:[#allocation16 + $0x2c0] sm:$0xff]
    %v3334 = vld [vmem:[#allocation16 + $0x2c8] sm:$0xff]
    %v3335 = vld [vmem:[#allocation16 + $0x2d0] sm:$0xff]
    %v3336 = vld [vmem:[#allocation16 + $0x2d8] sm:$0xff]
    %v3337 = vld [vmem:[#allocation16 + $0x2e0] sm:$0xff]
    %v3338 = vld [vmem:[#allocation16 + $0x2e8] sm:$0xff]
    %v3339 = vld [vmem:[#allocation16 + $0x2f0] sm:$0xff]
    %v3340 = vld [vmem:[#allocation16 + $0x2f8] sm:$0xff]
    %v3341 = vld [vmem:[%s15] sm:$0x1]
    %v3343 = vperm.slane %v3341, 0
    %3345 = vmatpush.msra.mxu0 %v3260
    %3346 = vmatpush.msra.mxu0 %v3259
    %3347 = vmatpush.msra.mxu0 %v3258
    %3348 = vmatpush.msra.mxu0 %v3257
    %3349 = vmatpush.msra.mxu0 %v3256
    %3350 = vmatpush.msra.mxu0 %v3255
    %3351 = vmatpush.msra.mxu0 %v3254
    %3352 = vmatpush.msra.mxu0 %v3253
    %3353 = vmatpush.msra.mxu0 %v3252
    %3354 = vmatpush.msra.mxu0 %v3251
    %3355 = vmatpush.msra.mxu0 %v3250
    %3356 = vmatpush.msra.mxu0 %v3249
    %3357 = vmatpush.msra.mxu0 %v3248
    %3358 = vmatpush.msra.mxu0 %v3247
    %3359 = vmatpush.msra.mxu0 %v3246
    %3360 = vmatpush.msra.mxu0 %v3245
    %3361 = vmatmul.f32.gmra.mxu0 %v3239
    %v3362 = vpop.f32.mrf.mxu0
    %v3363 = vadd.f32 %v3343, %v3362
    %3364 = vdwg.mxu0
    %3365 = vmatpush.msra.mxu0 %v3276
    %3366 = vmatpush.msra.mxu0 %v3275
    %3367 = vmatpush.msra.mxu0 %v3274
    %3368 = vmatpush.msra.mxu0 %v3273
    %3369 = vmatpush.msra.mxu0 %v3272
    %3370 = vmatpush.msra.mxu0 %v3271
    %3371 = vmatpush.msra.mxu0 %v3270
    %3372 = vmatpush.msra.mxu0 %v3269
    %3373 = vmatpush.msra.mxu0 %v3268
    %3374 = vmatpush.msra.mxu0 %v3267
    %3375 = vmatpush.msra.mxu0 %v3266
    %3376 = vmatpush.msra.mxu0 %v3265
    %3377 = vmatpush.msra.mxu0 %v3264
    %3378 = vmatpush.msra.mxu0 %v3263
    %3379 = vmatpush.msra.mxu0 %v3262
    %3380 = vmatpush.msra.mxu0 %v3261
    %3381 = vmatmul.f32.gmra.mxu0 %v3240
    %v3382 = vpop.f32.mrf.mxu0
    %v3383 = vadd.f32 %v3363, %v3382
    %3384 = vdwg.mxu0
    %3385 = vmatpush.msra.mxu0 %v3292
    %3386 = vmatpush.msra.mxu0 %v3291
    %3387 = vmatpush.msra.mxu0 %v3290
    %3388 = vmatpush.msra.mxu0 %v3289
    %3389 = vmatpush.msra.mxu0 %v3288
    %3390 = vmatpush.msra.mxu0 %v3287
    %3391 = vmatpush.msra.mxu0 %v3286
    %3392 = vmatpush.msra.mxu0 %v3285
    %3393 = vmatpush.msra.mxu0 %v3284
    %3394 = vmatpush.msra.mxu0 %v3283
    %3395 = vmatpush.msra.mxu0 %v3282
    %3396 = vmatpush.msra.mxu0 %v3281
    %3397 = vmatpush.msra.mxu0 %v3280
    %3398 = vmatpush.msra.mxu0 %v3279
    %3399 = vmatpush.msra.mxu0 %v3278
    %3400 = vmatpush.msra.mxu0 %v3277
    %3401 = vmatmul.f32.gmra.mxu0 %v3241
    %v3402 = vpop.f32.mrf.mxu0
    %v3403 = vadd.f32 %v3383, %v3402
    %3404 = vdwg.mxu0
    %3405 = vmatpush.msra.mxu0 %v3308
    %3406 = vmatpush.msra.mxu0 %v3307
    %3407 = vmatpush.msra.mxu0 %v3306
    %3408 = vmatpush.msra.mxu0 %v3305
    %3409 = vmatpush.msra.mxu0 %v3304
    %3410 = vmatpush.msra.mxu0 %v3303
    %3411 = vmatpush.msra.mxu0 %v3302
    %3412 = vmatpush.msra.mxu0 %v3301
    %3413 = vmatpush.msra.mxu0 %v3300
    %3414 = vmatpush.msra.mxu0 %v3299
    %3415 = vmatpush.msra.mxu0 %v3298
    %3416 = vmatpush.msra.mxu0 %v3297
    %3417 = vmatpush.msra.mxu0 %v3296
    %3418 = vmatpush.msra.mxu0 %v3295
    %3419 = vmatpush.msra.mxu0 %v3294
    %3420 = vmatpush.msra.mxu0 %v3293
    %3421 = vmatmul.f32.gmra.mxu0 %v3242
    %v3422 = vpop.f32.mrf.mxu0
    %v3423 = vadd.f32 %v3403, %v3422
    %3424 = vdwg.mxu0
    %3425 = vmatpush.msra.mxu0 %v3324
    %3426 = vmatpush.msra.mxu0 %v3323
    %3427 = vmatpush.msra.mxu0 %v3322
    %3428 = vmatpush.msra.mxu0 %v3321
    %3429 = vmatpush.msra.mxu0 %v3320
    %3430 = vmatpush.msra.mxu0 %v3319
    %3431 = vmatpush.msra.mxu0 %v3318
    %3432 = vmatpush.msra.mxu0 %v3317
    %3433 = vmatpush.msra.mxu0 %v3316
    %3434 = vmatpush.msra.mxu0 %v3315
    %3435 = vmatpush.msra.mxu0 %v3314
    %3436 = vmatpush.msra.mxu0 %v3313
    %3437 = vmatpush.msra.mxu0 %v3312
    %3438 = vmatpush.msra.mxu0 %v3311
    %3439 = vmatpush.msra.mxu0 %v3310
    %3440 = vmatpush.msra.mxu0 %v3309
    %3441 = vmatmul.f32.gmra.mxu0 %v3243
    %v3442 = vpop.f32.mrf.mxu0
    %v3443 = vadd.f32 %v3423, %v3442
    %3444 = vdwg.mxu0
    %3445 = vmatpush.msra.mxu0 %v3340
    %3446 = vmatpush.msra.mxu0 %v3339
    %3447 = vmatpush.msra.mxu0 %v3338
    %3448 = vmatpush.msra.mxu0 %v3337
    %3449 = vmatpush.msra.mxu0 %v3336
    %3450 = vmatpush.msra.mxu0 %v3335
    %3451 = vmatpush.msra.mxu0 %v3334
    %3452 = vmatpush.msra.mxu0 %v3333
    %3453 = vmatpush.msra.mxu0 %v3332
    %3454 = vmatpush.msra.mxu0 %v3331
    %3455 = vmatpush.msra.mxu0 %v3330
    %3456 = vmatpush.msra.mxu0 %v3329
    %3457 = vmatpush.msra.mxu0 %v3328
    %3458 = vmatpush.msra.mxu0 %v3327
    %3459 = vmatpush.msra.mxu0 %v3326
    %3460 = vmatpush.msra.mxu0 %v3325
    %3461 = vmatmul.f32.gmra.mxu0 %v3244
    %v3462 = vpop.f32.mrf.mxu0
    %v3463 = vadd.f32 %v3443, %v3462
    %3464 = vdwg.mxu0
    %v3465 = vmax.f32 %v3463, 0.0
    %v3466 = vld [vmem:[#allocation18] sm:$0xff]
    %v3467 = vld [vmem:[#allocation18 + $0x8] sm:$0xff]
    %v3468 = vld [vmem:[#allocation18 + $0x10] sm:$0xff]
    %v3469 = vld [vmem:[#allocation18 + $0x18] sm:$0xff]
    %v3470 = vld [vmem:[#allocation18 + $0x20] sm:$0xff]
    %v3471 = vld [vmem:[#allocation18 + $0x28] sm:$0xff]
    %v3472 = vld [vmem:[#allocation18 + $0x30] sm:$0xff]
    %v3473 = vld [vmem:[#allocation18 + $0x38] sm:$0xff]
    %v3474 = vld [vmem:[#allocation18 + $0x40] sm:$0xff]
    %v3475 = vld [vmem:[#allocation18 + $0x48] sm:$0xff]
    %v3476 = vld [vmem:[#allocation18 + $0x50] sm:$0xff]
    %v3477 = vld [vmem:[#allocation18 + $0x58] sm:$0xff]
    %v3478 = vld [vmem:[#allocation18 + $0x60] sm:$0xff]
    %v3479 = vld [vmem:[#allocation18 + $0x68] sm:$0xff]
    %v3480 = vld [vmem:[#allocation18 + $0x70] sm:$0xff]
    %v3481 = vld [vmem:[#allocation18 + $0x78] sm:$0xff]
    %v3482 = vld [vmem:[%s17] sm:$0x1]
    %v3484 = vperm.slane %v3482, 0
    %3486 = vmatpush.msra.mxu0 %v3481
    %3487 = vmatpush.msra.mxu0 %v3480
    %3488 = vmatpush.msra.mxu0 %v3479
    %3489 = vmatpush.msra.mxu0 %v3478
    %3490 = vmatpush.msra.mxu0 %v3477
    %3491 = vmatpush.msra.mxu0 %v3476
    %3492 = vmatpush.msra.mxu0 %v3475
    %3493 = vmatpush.msra.mxu0 %v3474
    %3494 = vmatpush.msra.mxu0 %v3473
    %3495 = vmatpush.msra.mxu0 %v3472
    %3496 = vmatpush.msra.mxu0 %v3471
    %3497 = vmatpush.msra.mxu0 %v3470
    %3498 = vmatpush.msra.mxu0 %v3469
    %3499 = vmatpush.msra.mxu0 %v3468
    %3500 = vmatpush.msra.mxu0 %v3467
    %3501 = vmatpush.msra.mxu0 %v3466
    %3502 = vmatmul.f32.gmra.mxu0 %v3465
    %v3503 = vpop.f32.mrf.mxu0
    %v3504 = vadd.f32 %v3484, %v3503
    %3505 = vdwg.mxu0
    %v3506 = vmax.f32 %v3504, 0.0
    %v3507 = vld [vmem:[%s18] sm:$0xff]
    %v3508 = vld [vmem:[%s18 + $0x8] sm:$0xff]
    %v3509 = vld [vmem:[%s18 + $0x10] sm:$0xff]
    %v3510 = vld [vmem:[%s18 + $0x18] sm:$0xff]
    %v3511 = vld [vmem:[%s18 + $0x20] sm:$0xff]
    %v3512 = vld [vmem:[%s18 + $0x28] sm:$0xff]
    %v3513 = vld [vmem:[%s18 + $0x30] sm:$0xff]
    %v3514 = vld [vmem:[%s18 + $0x38] sm:$0xff]
    %v3515 = vld [vmem:[%s18 + $0x40] sm:$0xff]
    %v3516 = vld [vmem:[%s18 + $0x48] sm:$0xff]
    %v3517 = vld [vmem:[%s18 + $0x50] sm:$0xff]
    %v3518 = vld [vmem:[%s18 + $0x58] sm:$0xff]
    %v3519 = vld [vmem:[%s18 + $0x60] sm:$0xff]
    %v3520 = vld [vmem:[%s18 + $0x68] sm:$0xff]
    %v3521 = vld [vmem:[%s18 + $0x70] sm:$0xff]
    %v3522 = vld [vmem:[%s18 + $0x78] sm:$0xff]
    %v3523 = vld [vmem:[%s18 + $0x80] sm:$0xff]
    %v3524 = vld [vmem:[%s18 + $0x88] sm:$0xff]
    %v3525 = vld [vmem:[%s18 + $0x90] sm:$0xff]
    %v3526 = vld [vmem:[%s18 + $0x98] sm:$0xff]
    %v3527 = vld [vmem:[%s18 + $0xa0] sm:$0xff]
    %v3528 = vld [vmem:[%s18 + $0xa8] sm:$0xff]
    %v3529 = vld [vmem:[%s18 + $0xb0] sm:$0xff]
    %v3530 = vld [vmem:[%s18 + $0xb8] sm:$0xff]
    %v3531 = vld [vmem:[%s18 + $0xc0] sm:$0xff]
    %v3532 = vld [vmem:[%s18 + $0xc8] sm:$0xff]
    %v3533 = vld [vmem:[%s18 + $0xd0] sm:$0xff]
    %v3534 = vld [vmem:[%s18 + $0xd8] sm:$0xff]
    %v3535 = vld [vmem:[%s18 + $0xe0] sm:$0xff]
    %v3536 = vld [vmem:[%s18 + $0xe8] sm:$0xff]
    %v3537 = vld [vmem:[%s18 + $0xf0] sm:$0xff]
    %v3538 = vld [vmem:[%s18 + $0xf8] sm:$0xff]
    %v3539 = vld [vmem:[%s19] sm:$0x3]
    %v3541 = vperm.slane %v3539, 0
    %v3542 = vperm.slane %v3539, 1
    %3545 = vmatpush.msra.mxu0 %v3537
    %3546 = vmatpush.msra.mxu0 %v3535
    %3547 = vmatpush.msra.mxu0 %v3533
    %3548 = vmatpush.msra.mxu0 %v3531
    %3549 = vmatpush.msra.mxu0 %v3529
    %3550 = vmatpush.msra.mxu0 %v3527
    %3551 = vmatpush.msra.mxu0 %v3525
    %3552 = vmatpush.msra.mxu0 %v3523
    %3553 = vmatpush.msra.mxu0 %v3521
    %3554 = vmatpush.msra.mxu0 %v3519
    %3555 = vmatpush.msra.mxu0 %v3517
    %3556 = vmatpush.msra.mxu0 %v3515
    %3557 = vmatpush.msra.mxu0 %v3513
    %3558 = vmatpush.msra.mxu0 %v3511
    %3559 = vmatpush.msra.mxu0 %v3509
    %3560 = vmatpush.msra.mxu0 %v3507
    %3561 = vmatmul.f32.gmra.mxu0 %v3506
    %v3562 = vpop.f32.mrf.mxu0
    %v3563 = vadd.f32 %v3541, %v3562
    %3564 = vdwg.mxu0
    %3565 = vmatpush.msra.mxu0 %v3538
    %3566 = vmatpush.msra.mxu0 %v3536
    %3567 = vmatpush.msra.mxu0 %v3534
    %3568 = vmatpush.msra.mxu0 %v3532
    %3569 = vmatpush.msra.mxu0 %v3530
    %3570 = vmatpush.msra.mxu0 %v3528
    %3571 = vmatpush.msra.mxu0 %v3526
    %3572 = vmatpush.msra.mxu0 %v3524
    %3573 = vmatpush.msra.mxu0 %v3522
    %3574 = vmatpush.msra.mxu0 %v3520
    %3575 = vmatpush.msra.mxu0 %v3518
    %3576 = vmatpush.msra.mxu0 %v3516
    %3577 = vmatpush.msra.mxu0 %v3514
    %3578 = vmatpush.msra.mxu0 %v3512
    %3579 = vmatpush.msra.mxu0 %v3510
    %3580 = vmatpush.msra.mxu0 %v3508
    %3581 = vmatmul.f32.gmra.mxu0 %v3506
    %v3582 = vpop.f32.mrf.mxu0
    %v3583 = vadd.f32 %v3542, %v3582
    %3584 = vdwg.mxu0
    %v3585 = vmax.f32 %v3563, 0.0
    %v3586 = vmax.f32 %v3583, 0.0
    %v3587 = vld [vmem:[#allocation19] sm:$0xff]
    %v3588 = vld [vmem:[#allocation19 + $0x8] sm:$0xff]
    %v3589 = vld [vmem:[#allocation19 + $0x10] sm:$0xff]
    %v3590 = vld [vmem:[#allocation19 + $0x18] sm:$0xff]
    %v3591 = vld [vmem:[#allocation19 + $0x20] sm:$0xff]
    %v3592 = vld [vmem:[#allocation19 + $0x28] sm:$0xff]
    %v3593 = vld [vmem:[#allocation19 + $0x30] sm:$0xff]
    %v3594 = vld [vmem:[#allocation19 + $0x38] sm:$0xff]
    %v3595 = vld [vmem:[#allocation19 + $0x40] sm:$0xff]
    %v3596 = vld [vmem:[#allocation19 + $0x48] sm:$0xff]
    %v3597 = vld [vmem:[#allocation19 + $0x50] sm:$0xff]
    %v3598 = vld [vmem:[#allocation19 + $0x58] sm:$0xff]
    %v3599 = vld [vmem:[#allocation19 + $0x60] sm:$0xff]
    %v3600 = vld [vmem:[#allocation19 + $0x68] sm:$0xff]
    %v3601 = vld [vmem:[#allocation19 + $0x70] sm:$0xff]
    %v3602 = vld [vmem:[#allocation19 + $0x78] sm:$0xff]
    %v3603 = vld [vmem:[#allocation19 + $0x80] sm:$0xff]
    %v3604 = vld [vmem:[#allocation19 + $0x88] sm:$0xff]
    %v3605 = vld [vmem:[#allocation19 + $0x90] sm:$0xff]
    %v3606 = vld [vmem:[#allocation19 + $0x98] sm:$0xff]
    %v3607 = vld [vmem:[#allocation19 + $0xa0] sm:$0xff]
    %v3608 = vld [vmem:[#allocation19 + $0xa8] sm:$0xff]
    %v3609 = vld [vmem:[#allocation19 + $0xb0] sm:$0xff]
    %v3610 = vld [vmem:[#allocation19 + $0xb8] sm:$0xff]
    %v3611 = vld [vmem:[#allocation19 + $0xc0] sm:$0xff]
    %v3612 = vld [vmem:[#allocation19 + $0xc8] sm:$0xff]
    %v3613 = vld [vmem:[#allocation19 + $0xd0] sm:$0xff]
    %v3614 = vld [vmem:[#allocation19 + $0xd8] sm:$0xff]
    %v3615 = vld [vmem:[#allocation19 + $0xe0] sm:$0xff]
    %v3616 = vld [vmem:[#allocation19 + $0xe8] sm:$0xff]
    %v3617 = vld [vmem:[#allocation19 + $0xf0] sm:$0xff]
    %v3618 = vld [vmem:[#allocation19 + $0xf8] sm:$0xff]
    %v3619 = vld [vmem:[%s21] sm:$0x1]
    %v3621 = vperm.slane %v3619, 0
    %3623 = vmatpush.msra.mxu0 %v3602
    %3624 = vmatpush.msra.mxu0 %v3601
    %3625 = vmatpush.msra.mxu0 %v3600
    %3626 = vmatpush.msra.mxu0 %v3599
    %3627 = vmatpush.msra.mxu0 %v3598
    %3628 = vmatpush.msra.mxu0 %v3597
    %3629 = vmatpush.msra.mxu0 %v3596
    %3630 = vmatpush.msra.mxu0 %v3595
    %3631 = vmatpush.msra.mxu0 %v3594
    %3632 = vmatpush.msra.mxu0 %v3593
    %3633 = vmatpush.msra.mxu0 %v3592
    %3634 = vmatpush.msra.mxu0 %v3591
    %3635 = vmatpush.msra.mxu0 %v3590
    %3636 = vmatpush.msra.mxu0 %v3589
    %3637 = vmatpush.msra.mxu0 %v3588
    %3638 = vmatpush.msra.mxu0 %v3587
    %3639 = vmatmul.f32.gmra.mxu0 %v3585
    %v3640 = vpop.f32.mrf.mxu0
    %v3641 = vadd.f32 %v3621, %v3640
    %3642 = vdwg.mxu0
    %3643 = vmatpush.msra.mxu0 %v3618
    %3644 = vmatpush.msra.mxu0 %v3617
    %3645 = vmatpush.msra.mxu0 %v3616
    %3646 = vmatpush.msra.mxu0 %v3615
    %3647 = vmatpush.msra.mxu0 %v3614
    %3648 = vmatpush.msra.mxu0 %v3613
    %3649 = vmatpush.msra.mxu0 %v3612
    %3650 = vmatpush.msra.mxu0 %v3611
    %3651 = vmatpush.msra.mxu0 %v3610
    %3652 = vmatpush.msra.mxu0 %v3609
    %3653 = vmatpush.msra.mxu0 %v3608
    %3654 = vmatpush.msra.mxu0 %v3607
    %3655 = vmatpush.msra.mxu0 %v3606
    %3656 = vmatpush.msra.mxu0 %v3605
    %3657 = vmatpush.msra.mxu0 %v3604
    %3658 = vmatpush.msra.mxu0 %v3603
    %3659 = vmatmul.f32.gmra.mxu0 %v3586
    %v3660 = vpop.f32.mrf.mxu0
    %v3661 = vadd.f32 %v3641, %v3660
    %3662 = vdwg.mxu0
    %3663 = vst [vmem:[%s22] sm:$0xff] %v3661
    // Predicated region
    $region130: #{dqn_forward.1} parent=1 // pred_check
      _
    $region131: #{dqn_forward.1} parent=1 // pred_check_branch
      %3665 = sbr.rel (0) target = $region133
    $region132: #{dqn_forward.1} parent=1 // pred_region
      _
    $region133: #{dqn_forward.1} parent=1 // pred_fallthru
      _
    // Predicated region
    $region134: #{dqn_forward.1} parent=1 // pred_check
      _
    $region135: #{dqn_forward.1} parent=1 // pred_check_branch
      %3667 = sbr.rel (0) target = $region137
    $region136: #{dqn_forward.1} parent=1 // pred_region
      _
    $region137: #{dqn_forward.1} parent=1 // pred_fallthru
      _
    %3668 = vsyncpa [#allocation6], 1
    %3669 = vsyncpa [#allocation8], 1
    %3670 = vsyncpa [#allocation11], 1
    %3671 = vsyncpa [#allocation14], 1
    %3672 = vsyncpa [#allocation17], 1
    %3673 = vsyncpa [#allocation20], 1

</llo_original>
